<compile_context>
chip_gen: v7x
topology: tpu7x:2x2x1
jax: 0.10.0
libtpu: 0.0.40
codegen_flags: <defaults>
</compile_context>

<pallas_src>
import functools
import math

import jax
import jax.numpy as jnp
from jax.experimental import pallas as pl
from jax.experimental.pallas import tpu as pltpu

EPS = 1e-5            # BatchNorm eps
NEG_SLOPE = 0.2       # LeakyReLU negative slope
KSIZE = 3             # every conv / deconv uses kernel_size = 3
CPAD = 128            # channel padding -> lane-dense layout everywhere
MEM_DIM = 1000
MEM_PAD = 1024        # lane-dense memory dimension (padded slots masked in softmax)
FEA_DIM = 64
PAD_OFF = 8           # 8-aligned sublane offset of the bulk store in the deconv pad scratch
VMEM_LIMIT = 32 * 1024 * 1024


def _zero_map(n):
    return lambda i: (0,) * n


# ---------------------------------------------------------------------------
# in-kernel building blocks
# ---------------------------------------------------------------------------
def _conv_bn_act(h, w_ref, b_ref, g_ref, be_ref, *, bn, act):
    """Valid Conv1d (channels-last) as KSIZE accumulating bf16 matmuls with f32
    accumulation + optional BatchNorm1d (training batch stats) + LeakyReLU.

    h: [B, Lin, CPAD] f32; w_ref: [KSIZE, CPAD, CPAD] bf16; b/g/be: [1, CPAD] f32.
    """
    B, Lin, C = h.shape
    Lout = Lin - KSIZE + 1
    acc = jnp.zeros((B * Lout, C), jnp.float32)
    for k in range(KSIZE):
        xk = h[:, k:k + Lout, :].reshape(B * Lout, C).astype(jnp.bfloat16)
        acc = acc + jnp.dot(xk, w_ref[k], preferred_element_type=jnp.float32)
    acc = acc + b_ref[...]
    if bn:
        mean = jnp.mean(acc, axis=0, keepdims=True)
        var = jnp.mean(jnp.square(acc - mean), axis=0, keepdims=True)
        acc = (acc - mean) * jax.lax.rsqrt(var + EPS)
        acc = acc * g_ref[...] + be_ref[...]
    if act:
        acc = jnp.where(acc >= 0.0, acc, NEG_SLOPE * acc)
    return acc.reshape(B, Lout, C)


def _deconv_bn_act(h, pad_ref, w_ref, b_ref, g_ref, be_ref, *, bn, act):
    """ConvTranspose1d(stride=1, pad=0) == valid conv of the (K-1)-zero-padded
    input with pre-flipped taps.  pad_ref is the shared, pre-zeroed scratch: per
    layer only the 8-aligned bulk store of h and one window load remain.  The
    halo rows [PAD_OFF-2, PAD_OFF) and [PAD_OFF+Lin, PAD_OFF+Lin+2) are still
    zero because decoder-layer input lengths grow monotonically.
    """
    B, Lin, C = h.shape
    pad_ref[:, PAD_OFF:PAD_OFF + Lin, :] = h
    hp = pad_ref[:, PAD_OFF - (KSIZE - 1):PAD_OFF + Lin + (KSIZE - 1), :]
    return _conv_bn_act(hp, w_ref, b_ref, g_ref, be_ref, bn=bn, act=act)


# ---------------------------------------------------------------------------
# fused MAE forward kernel
# ---------------------------------------------------------------------------
def _mae_kernel(*refs, train, inv_count, cin):
    (x_ref,
     ew1, eb1, eg1, ebe1,
     ew2, eb2, eg2, ebe2,
     ew3, eb3, eg3, ebe3,
     mwt_ref, mw_ref, mmask_ref,
     dw1, db1, dg1, dbe1,
     dw2, db2, dg2, dbe2,
     dw3, db3,
     out_ref,
     xpad_ref, pad_ref) = refs

    # zero-extend the compact input's channels to CPAD inside VMEM (the padded
    # input never exists in HBM); zero the shared deconv pad scratch once.
    xpad_ref[...] = jnp.zeros(xpad_ref.shape, jnp.float32)
    xpad_ref[:, :, :cin] = x_ref[...]
    pad_ref[...] = jnp.zeros(pad_ref.shape, jnp.float32)
    x = xpad_ref[...]                                              # [B, L0, CPAD] f32

    # ---------------- encoder: 3 x (Conv1d + BN + LeakyReLU) ----------------
    h = _conv_bn_act(x, ew1, eb1, eg1, ebe1, bn=True, act=True)
    h = _conv_bn_act(h, ew2, eb2, eg2, ebe2, bn=True, act=True)
    h = _conv_bn_act(h, ew3, eb3, eg3, ebe3, bn=True, act=True)    # [B, H, CPAD]
    B, H, C = h.shape

    # ---------------- memory: out = softmax(x @ M^T) @ M --------------------
    xf = h.reshape(B * H, C).astype(jnp.bfloat16)                  # [N, CPAD]
    logits = jnp.dot(xf, mwt_ref[...], preferred_element_type=jnp.float32)
    logits = logits + mmask_ref[...]                               # mask padded slots
    logits = logits - jnp.max(logits, axis=1, keepdims=True)
    p = jnp.exp(logits)                                            # [N, MEM_PAD]
    inv = pl.reciprocal(jnp.sum(p, axis=1, keepdims=True), approx=True)
    mem = jnp.dot(p.astype(jnp.bfloat16), mw_ref[...],
                  preferred_element_type=jnp.float32) * inv        # scale on [N, CPAD]
    h = mem.reshape(B, H, C)

    # ---- decoder: 2 x (ConvTranspose1d + BN + LeakyReLU) + ConvTranspose1d --
    h = _deconv_bn_act(h, pad_ref, dw1, db1, dg1, dbe1, bn=True, act=True)
    h = _deconv_bn_act(h, pad_ref, dw2, db2, dg2, dbe2, bn=True, act=True)
    h = _deconv_bn_act(h, pad_ref, dw3, db3, None, None, bn=False, act=False)

    if train:
        # Padded channels are exactly 0 in both h and x, so the MSE over the
        # padded tensors equals the MSE over the real channels.
        d = h - x
        out_ref[...] = jnp.broadcast_to(jnp.sum(d * d) * inv_count, (1, 1))
    else:
        out_ref[...] = h


def _mae_pallas(x_cl, pp, train):
    B, L0, cin = x_cl.shape
    e1, e2, e3 = pp["enc"]
    d1, d2, d3 = pp["dec"]
    args = [x_cl, *e1, *e2, *e3, pp["mem_wT"], pp["mem_w"], pp["mem_mask"],
            *d1, *d2, *d3]
    if train:
        out_shape = jax.ShapeDtypeStruct((1, 1), jnp.float32)
        out_spec = pl.BlockSpec((1, 1), _zero_map(2))
        inv_count = 1.0 / float(B * cin * L0)
    else:
        out_shape = jax.ShapeDtypeStruct((B, L0, CPAD), jnp.float32)
        out_spec = pl.BlockSpec((B, L0, CPAD), _zero_map(3))
        inv_count = 0.0
    kernel = functools.partial(_mae_kernel, train=train, inv_count=inv_count, cin=cin)
    return pl.pallas_call(
        kernel,
        grid=(1,),
        out_shape=out_shape,
        in_specs=[pl.BlockSpec(a.shape, _zero_map(a.ndim)) for a in args],
        out_specs=out_spec,
        scratch_shapes=[
            pltpu.VMEM((B, L0, CPAD), jnp.float32),            # channel-padded input
            pltpu.VMEM((B, PAD_OFF + L0, CPAD), jnp.float32),  # shared deconv pad buffer
        ],
        compiler_params=pltpu.CompilerParams(
            dimension_semantics=("arbitrary",), vmem_limit_bytes=VMEM_LIMIT),
    )(*args)


# ---------------------------------------------------------------------------
# Parameter init (deterministic, synthetic) + one-time kernel-layout preparation
# ---------------------------------------------------------------------------
def init_params(key):
    def uniform(k, shape, bound):
        return jax.random.uniform(k, shape, jnp.float32, -bound, bound)

    keys = iter(jax.random.split(key, 16))
    params = {"encoder": [], "decoder": []}

    for cin, cout, kk in [(3, 16, 3), (16, 32, 3), (32, 64, 3)]:
        bound = 1.0 / math.sqrt(cin * kk)
        w = uniform(next(keys), (cout, cin, kk), bound)            # Conv1d weight
        b = uniform(next(keys), (cout,), bound)
        params["encoder"].append(
            (w, b, jnp.ones((cout,), jnp.float32), jnp.zeros((cout,), jnp.float32)))

    params["mem_weight"] = uniform(next(keys), (MEM_DIM, FEA_DIM),
                                   1.0 / math.sqrt(FEA_DIM))

    for cin, cout, kk in [(64, 32, 3), (32, 16, 3), (16, 3, 3)]:
        bound = 1.0 / math.sqrt(cin * kk)
        w = uniform(next(keys), (cin, cout, kk), bound)            # ConvTranspose1d weight
        b = uniform(next(keys), (cout,), bound)
        params["decoder"].append(
            (w, b, jnp.ones((cout,), jnp.float32), jnp.zeros((cout,), jnp.float32)))

    return params


def _pad_vec(v, cout):
    return jnp.zeros((1, CPAD), jnp.float32).at[0, :cout].set(v)


def _pad_w(w_kcc, cin, cout):
    wp = jnp.zeros((KSIZE, CPAD, CPAD), jnp.float32)
    return wp.at[:, :cin, :cout].set(w_kcc).astype(jnp.bfloat16)


def prepare_params(params):
    """One-time layout glue: transpose/flip/channel-pad weights, cast to bf16."""
    pp = {"enc": [], "dec": []}

    for (w, b, g, be) in params["encoder"]:
        cout, cin, _ = w.shape
        w_kcc = jnp.transpose(w, (2, 1, 0))                        # [K, Cin, Cout]
        pp["enc"].append((_pad_w(w_kcc, cin, cout), _pad_vec(b, cout),
                          _pad_vec(g, cout), _pad_vec(be, cout)))

    for idx, layer in enumerate(params["decoder"]):
        w, b = layer[0], layer[1]
        cin, cout, _ = w.shape
        w_kcc = jnp.transpose(jnp.flip(w, axis=2), (2, 0, 1))      # flipped [K, Cin, Cout]
        if idx < 2:
            pp["dec"].append((_pad_w(w_kcc, cin, cout), _pad_vec(b, cout),
                              _pad_vec(layer[2], cout), _pad_vec(layer[3], cout)))
        else:
            pp["dec"].append((_pad_w(w_kcc, cin, cout), _pad_vec(b, cout)))

    mwp = jnp.zeros((MEM_PAD, CPAD), jnp.float32)
    mwp = mwp.at[:MEM_DIM, :FEA_DIM].set(params["mem_weight"])
    pp["mem_w"] = mwp.astype(jnp.bfloat16)            # [MEM_PAD, CPAD]: output matmul
    pp["mem_wT"] = mwp.T.astype(jnp.bfloat16)         # [CPAD, MEM_PAD]: logits matmul
    pp["mem_mask"] = jnp.where(jnp.arange(MEM_PAD) < MEM_DIM, 0.0,
                               -1e30).astype(jnp.float32).reshape(1, MEM_PAD)
    return pp


# ---------------------------------------------------------------------------
# Full MAE forward
# ---------------------------------------------------------------------------
@functools.partial(jax.jit, static_argnames=("mode",))
def mae_forward(prepared, x_ncl, mode="train"):
    B, cin, L0 = x_ncl.shape
    x_cl = jnp.transpose(x_ncl, (0, 2, 1)).astype(jnp.float32)     # compact [B, L, Cin]
    if mode == "train":
        loss = _mae_pallas(x_cl, prepared, train=True)
        return loss[0, 0]
    recon_pad = _mae_pallas(x_cl, prepared, train=False)           # [B, L, CPAD]
    return jnp.transpose(recon_pad[:, :, :cin], (0, 2, 1))         # [B, Cin, L]


if __name__ == "__main__":
    key = jax.random.PRNGKey(0)
    pkey, xkey = jax.random.split(key)
    params = init_params(pkey)
    prepared = prepare_params(params)

    # small input consistent with Conv1d(3, ...): [B=2, C=3, L=16]
    x = jax.random.normal(xkey, (2, 3, 16), dtype=jnp.float32)

    loss = mae_forward(prepared, x, mode="train")
    out = mae_forward(prepared, x, mode="eval")
    jax.block_until_ready((loss, out))

    assert out.shape == x.shape, out.shape
    assert loss.shape == (), loss.shape
    assert bool(jnp.isfinite(loss)) and bool(jnp.all(jnp.isfinite(out)))
    print("KERNEL_OK")
</pallas_src>

<mosaic_0001>
module attributes {stable_mosaic.version = 11 : i64} {
  func.func @_mae_kernel(%arg0: i32, %arg1: memref<2x16x3xf32, #tpu.memory_space<vmem>>, %arg2: memref<3x128x128xbf16, #tpu.memory_space<vmem>>, %arg3: memref<1x128xf32, #tpu.memory_space<vmem>>, %arg4: memref<1x128xf32, #tpu.memory_space<vmem>>, %arg5: memref<1x128xf32, #tpu.memory_space<vmem>>, %arg6: memref<3x128x128xbf16, #tpu.memory_space<vmem>>, %arg7: memref<1x128xf32, #tpu.memory_space<vmem>>, %arg8: memref<1x128xf32, #tpu.memory_space<vmem>>, %arg9: memref<1x128xf32, #tpu.memory_space<vmem>>, %arg10: memref<3x128x128xbf16, #tpu.memory_space<vmem>>, %arg11: memref<1x128xf32, #tpu.memory_space<vmem>>, %arg12: memref<1x128xf32, #tpu.memory_space<vmem>>, %arg13: memref<1x128xf32, #tpu.memory_space<vmem>>, %arg14: memref<128x1024xbf16, #tpu.memory_space<vmem>>, %arg15: memref<1024x128xbf16, #tpu.memory_space<vmem>>, %arg16: memref<1x1024xf32, #tpu.memory_space<vmem>>, %arg17: memref<3x128x128xbf16, #tpu.memory_space<vmem>>, %arg18: memref<1x128xf32, #tpu.memory_space<vmem>>, %arg19: memref<1x128xf32, #tpu.memory_space<vmem>>, %arg20: memref<1x128xf32, #tpu.memory_space<vmem>>, %arg21: memref<3x128x128xbf16, #tpu.memory_space<vmem>>, %arg22: memref<1x128xf32, #tpu.memory_space<vmem>>, %arg23: memref<1x128xf32, #tpu.memory_space<vmem>>, %arg24: memref<1x128xf32, #tpu.memory_space<vmem>>, %arg25: memref<3x128x128xbf16, #tpu.memory_space<vmem>>, %arg26: memref<1x128xf32, #tpu.memory_space<vmem>>, %arg27: memref<1x1xf32, #tpu.memory_space<vmem>>, %arg28: memref<2x16x128xf32, #tpu.memory_space<vmem>>, %arg29: memref<2x24x128xf32, #tpu.memory_space<vmem>>) attributes {dimension_semantics = [#tpu.dimension_semantics<arbitrary>], iteration_bounds = array<i64: 1>, scalar_prefetch = 0 : i64, scratch_operands = 2 : i64, tpu.core_type = #tpu.core_type<tc>, window_params = [{pipeline_mode = #tpu.pipeline_mode<synchronous>, transform_indices = @transform_0, window_bounds = array<i64: 2, 16, 3>}, {pipeline_mode = #tpu.pipeline_mode<synchronous>, transform_indices = @transform_1, window_bounds = array<i64: 3, 128, 128>}, {pipeline_mode = #tpu.pipeline_mode<synchronous>, transform_indices = @transform_2, window_bounds = array<i64: 1, 128>}, {pipeline_mode = #tpu.pipeline_mode<synchronous>, transform_indices = @transform_3, window_bounds = array<i64: 1, 128>}, {pipeline_mode = #tpu.pipeline_mode<synchronous>, transform_indices = @transform_4, window_bounds = array<i64: 1, 128>}, {pipeline_mode = #tpu.pipeline_mode<synchronous>, transform_indices = @transform_5, window_bounds = array<i64: 3, 128, 128>}, {pipeline_mode = #tpu.pipeline_mode<synchronous>, transform_indices = @transform_6, window_bounds = array<i64: 1, 128>}, {pipeline_mode = #tpu.pipeline_mode<synchronous>, transform_indices = @transform_7, window_bounds = array<i64: 1, 128>}, {pipeline_mode = #tpu.pipeline_mode<synchronous>, transform_indices = @transform_8, window_bounds = array<i64: 1, 128>}, {pipeline_mode = #tpu.pipeline_mode<synchronous>, transform_indices = @transform_9, window_bounds = array<i64: 3, 128, 128>}, {pipeline_mode = #tpu.pipeline_mode<synchronous>, transform_indices = @transform_10, window_bounds = array<i64: 1, 128>}, {pipeline_mode = #tpu.pipeline_mode<synchronous>, transform_indices = @transform_11, window_bounds = array<i64: 1, 128>}, {pipeline_mode = #tpu.pipeline_mode<synchronous>, transform_indices = @transform_12, window_bounds = array<i64: 1, 128>}, {pipeline_mode = #tpu.pipeline_mode<synchronous>, transform_indices = @transform_13, window_bounds = array<i64: 128, 1024>}, {pipeline_mode = #tpu.pipeline_mode<synchronous>, transform_indices = @transform_14, window_bounds = array<i64: 1024, 128>}, {pipeline_mode = #tpu.pipeline_mode<synchronous>, transform_indices = @transform_15, window_bounds = array<i64: 1, 1024>}, {pipeline_mode = #tpu.pipeline_mode<synchronous>, transform_indices = @transform_16, window_bounds = array<i64: 3, 128, 128>}, {pipeline_mode = #tpu.pipeline_mode<synchronous>, transform_indices = @transform_17, window_bounds = array<i64: 1, 128>}, {pipeline_mode = #tpu.pipeline_mode<synchronous>, transform_indices = @transform_18, window_bounds = array<i64: 1, 128>}, {pipeline_mode = #tpu.pipeline_mode<synchronous>, transform_indices = @transform_19, window_bounds = array<i64: 1, 128>}, {pipeline_mode = #tpu.pipeline_mode<synchronous>, transform_indices = @transform_20, window_bounds = array<i64: 3, 128, 128>}, {pipeline_mode = #tpu.pipeline_mode<synchronous>, transform_indices = @transform_21, window_bounds = array<i64: 1, 128>}, {pipeline_mode = #tpu.pipeline_mode<synchronous>, transform_indices = @transform_22, window_bounds = array<i64: 1, 128>}, {pipeline_mode = #tpu.pipeline_mode<synchronous>, transform_indices = @transform_23, window_bounds = array<i64: 1, 128>}, {pipeline_mode = #tpu.pipeline_mode<synchronous>, transform_indices = @transform_24, window_bounds = array<i64: 3, 128, 128>}, {pipeline_mode = #tpu.pipeline_mode<synchronous>, transform_indices = @transform_25, window_bounds = array<i64: 1, 128>}, {pipeline_mode = #tpu.pipeline_mode<synchronous>, transform_indices = @transform_26, window_bounds = array<i64: 1, 1>}]} {
    %cst = arith.constant 0.000000e+00 : f32
    %0 = vector.broadcast %cst : f32 to vector<2x16x128xf32>
    %c0 = arith.constant 0 : index
    %c0_0 = arith.constant 0 : index
    %c0_1 = arith.constant 0 : index
    %1 = vector.load %arg28[%c0, %c0_0, %c0_1] : memref<2x16x128xf32, #tpu.memory_space<vmem>>, vector<2x16x128xf32>
    tpu.vector_store %arg28[%c0, %c0_0, %c0_1], %0 {strides = array<i32>} : memref<2x16x128xf32, #tpu.memory_space<vmem>>, vector<2x16x128xf32>,
    %c0_2 = arith.constant 0 : index
    %c0_3 = arith.constant 0 : index
    %c0_4 = arith.constant 0 : index
    %2 = vector.load %arg1[%c0_2, %c0_3, %c0_4] : memref<2x16x3xf32, #tpu.memory_space<vmem>>, vector<2x16x3xf32>
    %c0_5 = arith.constant 0 : index
    %c0_6 = arith.constant 0 : index
    %c0_7 = arith.constant 0 : index
    %3 = vector.load %arg28[%c0_5, %c0_6, %c0_7] : memref<2x16x128xf32, #tpu.memory_space<vmem>>, vector<2x16x3xf32>
    tpu.vector_store %arg28[%c0_5, %c0_6, %c0_7], %2 {strides = array<i32>} : memref<2x16x128xf32, #tpu.memory_space<vmem>>, vector<2x16x3xf32>,
    %cst_8 = arith.constant 0.000000e+00 : f32
    %4 = vector.broadcast %cst_8 : f32 to vector<2x24x128xf32>
    %c0_9 = arith.constant 0 : index
    %c0_10 = arith.constant 0 : index
    %c0_11 = arith.constant 0 : index
    %5 = vector.load %arg29[%c0_9, %c0_10, %c0_11] : memref<2x24x128xf32, #tpu.memory_space<vmem>>, vector<2x24x128xf32>
    tpu.vector_store %arg29[%c0_9, %c0_10, %c0_11], %4 {strides = array<i32>} : memref<2x24x128xf32, #tpu.memory_space<vmem>>, vector<2x24x128xf32>,
    %c0_12 = arith.constant 0 : index
    %c0_13 = arith.constant 0 : index
    %c0_14 = arith.constant 0 : index
    %6 = vector.load %arg28[%c0_12, %c0_13, %c0_14] : memref<2x16x128xf32, #tpu.memory_space<vmem>>, vector<2x16x128xf32>
    %cst_15 = arith.constant 0.000000e+00 : f32
    %7 = vector.broadcast %cst_15 : f32 to vector<28x128xf32>
    %8 = vector.extract_strided_slice %6 {offsets = [0, 0, 0], sizes = [2, 14, 128], strides = [1, 1, 1]} : vector<2x16x128xf32> to vector<2x14x128xf32>
    %9 = vector.shape_cast %8 : vector<2x14x128xf32> to vector<28x128xf32>
    %10 = arith.truncf %9 : vector<28x128xf32> to vector<28x128xbf16>
    %c0_16 = arith.constant 0 : index
    %c0_17 = arith.constant 0 : index
    %c0_18 = arith.constant 0 : index
    %11 = vector.load %arg2[%c0_16, %c0_17, %c0_18] : memref<3x128x128xbf16, #tpu.memory_space<vmem>>, vector<1x128x128xbf16>
    %12 = vector.shape_cast %11 : vector<1x128x128xbf16> to vector<128x128xbf16>
    %cst_19 = arith.constant dense<0.000000e+00> : vector<28x128xf32>
    %13 = tpu.matmul %10, %12, %cst_19 {dimension_numbers = #tpu.dot_dimension_numbers<[1], [0], [0], [1], [0, 0, 1, 1], [], []>} : vector<28x128xbf16>, vector<128x128xbf16>, vector<28x128xf32> -> vector<28x128xf32>
    %14 = arith.addf %7, %13 : vector<28x128xf32>
    %15 = vector.extract_strided_slice %6 {offsets = [0, 1, 0], sizes = [2, 14, 128], strides = [1, 1, 1]} : vector<2x16x128xf32> to vector<2x14x128xf32>
    %16 = vector.shape_cast %15 : vector<2x14x128xf32> to vector<28x128xf32>
    %17 = arith.truncf %16 : vector<28x128xf32> to vector<28x128xbf16>
    %c1 = arith.constant 1 : index
    %c0_20 = arith.constant 0 : index
    %c0_21 = arith.constant 0 : index
    %18 = vector.load %arg2[%c1, %c0_20, %c0_21] : memref<3x128x128xbf16, #tpu.memory_space<vmem>>, vector<1x128x128xbf16>
    %19 = vector.shape_cast %18 : vector<1x128x128xbf16> to vector<128x128xbf16>
    %cst_22 = arith.constant dense<0.000000e+00> : vector<28x128xf32>
    %20 = tpu.matmul %17, %19, %cst_22 {dimension_numbers = #tpu.dot_dimension_numbers<[1], [0], [0], [1], [0, 0, 1, 1], [], []>} : vector<28x128xbf16>, vector<128x128xbf16>, vector<28x128xf32> -> vector<28x128xf32>
    %21 = arith.addf %14, %20 : vector<28x128xf32>
    %22 = vector.extract_strided_slice %6 {offsets = [0, 2, 0], sizes = [2, 14, 128], strides = [1, 1, 1]} : vector<2x16x128xf32> to vector<2x14x128xf32>
    %23 = vector.shape_cast %22 : vector<2x14x128xf32> to vector<28x128xf32>
    %24 = arith.truncf %23 : vector<28x128xf32> to vector<28x128xbf16>
    %c2 = arith.constant 2 : index
    %c0_23 = arith.constant 0 : index
    %c0_24 = arith.constant 0 : index
    %25 = vector.load %arg2[%c2, %c0_23, %c0_24] : memref<3x128x128xbf16, #tpu.memory_space<vmem>>, vector<1x128x128xbf16>
    %26 = vector.shape_cast %25 : vector<1x128x128xbf16> to vector<128x128xbf16>
    %cst_25 = arith.constant dense<0.000000e+00> : vector<28x128xf32>
    %27 = tpu.matmul %24, %26, %cst_25 {dimension_numbers = #tpu.dot_dimension_numbers<[1], [0], [0], [1], [0, 0, 1, 1], [], []>} : vector<28x128xbf16>, vector<128x128xbf16>, vector<28x128xf32> -> vector<28x128xf32>
    %28 = arith.addf %21, %27 : vector<28x128xf32>
    %c0_26 = arith.constant 0 : index
    %c0_27 = arith.constant 0 : index
    %29 = vector.load %arg3[%c0_26, %c0_27] : memref<1x128xf32, #tpu.memory_space<vmem>>, vector<1x128xf32>
    %30 = vector.broadcast %29 : vector<1x128xf32> to vector<28x128xf32>
    %31 = arith.addf %28, %30 : vector<28x128xf32>
    %cst_28 = arith.constant dense<0.000000e+00> : vector<128xf32>
    %32 = vector.multi_reduction <add>, %31, %cst_28 [0] : vector<28x128xf32> to vector<128xf32>
    %33 = vector.shape_cast %32 : vector<128xf32> to vector<1x128xf32>
    %cst_29 = arith.constant 2.800000e+01 : f32
    %34 = vector.broadcast %cst_29 : f32 to vector<1x128xf32>
    %35 = arith.divf %33, %34 : vector<1x128xf32>
    %36 = vector.broadcast %35 : vector<1x128xf32> to vector<28x128xf32>
    %37 = arith.subf %31, %36 : vector<28x128xf32>
    %38 = arith.mulf %37, %37 : vector<28x128xf32>
    %cst_30 = arith.constant dense<0.000000e+00> : vector<128xf32>
    %39 = vector.multi_reduction <add>, %38, %cst_30 [0] : vector<28x128xf32> to vector<128xf32>
    %40 = vector.shape_cast %39 : vector<128xf32> to vector<1x128xf32>
    %cst_31 = arith.constant 2.800000e+01 : f32
    %41 = vector.broadcast %cst_31 : f32 to vector<1x128xf32>
    %42 = arith.divf %40, %41 : vector<1x128xf32>
    %43 = vector.broadcast %35 : vector<1x128xf32> to vector<28x128xf32>
    %44 = arith.subf %31, %43 : vector<28x128xf32>
    %cst_32 = arith.constant 9.99999974E-6 : f32
    %45 = vector.broadcast %cst_32 : f32 to vector<1x128xf32>
    %46 = arith.addf %42, %45 : vector<1x128xf32>
    %47 = math.rsqrt %46 : vector<1x128xf32>
    %48 = vector.broadcast %47 : vector<1x128xf32> to vector<28x128xf32>
    %49 = arith.mulf %44, %48 : vector<28x128xf32>
    %c0_33 = arith.constant 0 : index
    %c0_34 = arith.constant 0 : index
    %50 = vector.load %arg4[%c0_33, %c0_34] : memref<1x128xf32, #tpu.memory_space<vmem>>, vector<1x128xf32>
    %51 = vector.broadcast %50 : vector<1x128xf32> to vector<28x128xf32>
    %52 = arith.mulf %49, %51 : vector<28x128xf32>
    %c0_35 = arith.constant 0 : index
    %c0_36 = arith.constant 0 : index
    %53 = vector.load %arg5[%c0_35, %c0_36] : memref<1x128xf32, #tpu.memory_space<vmem>>, vector<1x128xf32>
    %54 = vector.broadcast %53 : vector<1x128xf32> to vector<28x128xf32>
    %55 = arith.addf %52, %54 : vector<28x128xf32>
    %cst_37 = arith.constant 0.000000e+00 : f32
    %56 = vector.broadcast %cst_37 : f32 to vector<28x128xf32>
    %57 = arith.cmpf oge, %55, %56 : vector<28x128xf32>
    %cst_38 = arith.constant 2.000000e-01 : f32
    %58 = vector.broadcast %cst_38 : f32 to vector<28x128xf32>
    %59 = arith.mulf %58, %55 : vector<28x128xf32>
    %60 = arith.select %57, %55, %59 : vector<28x128xi1>, vector<28x128xf32>
    %61 = vector.shape_cast %60 : vector<28x128xf32> to vector<2x14x128xf32>
    %cst_39 = arith.constant 0.000000e+00 : f32
    %62 = vector.broadcast %cst_39 : f32 to vector<24x128xf32>
    %63 = vector.extract_strided_slice %61 {offsets = [0, 0, 0], sizes = [2, 12, 128], strides = [1, 1, 1]} : vector<2x14x128xf32> to vector<2x12x128xf32>
    %64 = vector.shape_cast %63 : vector<2x12x128xf32> to vector<24x128xf32>
    %65 = arith.truncf %64 : vector<24x128xf32> to vector<24x128xbf16>
    %c0_40 = arith.constant 0 : index
    %c0_41 = arith.constant 0 : index
    %c0_42 = arith.constant 0 : index
    %66 = vector.load %arg6[%c0_40, %c0_41, %c0_42] : memref<3x128x128xbf16, #tpu.memory_space<vmem>>, vector<1x128x128xbf16>
    %67 = vector.shape_cast %66 : vector<1x128x128xbf16> to vector<128x128xbf16>
    %cst_43 = arith.constant dense<0.000000e+00> : vector<24x128xf32>
    %68 = tpu.matmul %65, %67, %cst_43 {dimension_numbers = #tpu.dot_dimension_numbers<[1], [0], [0], [1], [0, 0, 1, 1], [], []>} : vector<24x128xbf16>, vector<128x128xbf16>, vector<24x128xf32> -> vector<24x128xf32>
    %69 = arith.addf %62, %68 : vector<24x128xf32>
    %70 = vector.extract_strided_slice %61 {offsets = [0, 1, 0], sizes = [2, 12, 128], strides = [1, 1, 1]} : vector<2x14x128xf32> to vector<2x12x128xf32>
    %71 = vector.shape_cast %70 : vector<2x12x128xf32> to vector<24x128xf32>
    %72 = arith.truncf %71 : vector<24x128xf32> to vector<24x128xbf16>
    %c1_44 = arith.constant 1 : index
    %c0_45 = arith.constant 0 : index
    %c0_46 = arith.constant 0 : index
    %73 = vector.load %arg6[%c1_44, %c0_45, %c0_46] : memref<3x128x128xbf16, #tpu.memory_space<vmem>>, vector<1x128x128xbf16>
    %74 = vector.shape_cast %73 : vector<1x128x128xbf16> to vector<128x128xbf16>
    %cst_47 = arith.constant dense<0.000000e+00> : vector<24x128xf32>
    %75 = tpu.matmul %72, %74, %cst_47 {dimension_numbers = #tpu.dot_dimension_numbers<[1], [0], [0], [1], [0, 0, 1, 1], [], []>} : vector<24x128xbf16>, vector<128x128xbf16>, vector<24x128xf32> -> vector<24x128xf32>
    %76 = arith.addf %69, %75 : vector<24x128xf32>
    %77 = vector.extract_strided_slice %61 {offsets = [0, 2, 0], sizes = [2, 12, 128], strides = [1, 1, 1]} : vector<2x14x128xf32> to vector<2x12x128xf32>
    %78 = vector.shape_cast %77 : vector<2x12x128xf32> to vector<24x128xf32>
    %79 = arith.truncf %78 : vector<24x128xf32> to vector<24x128xbf16>
    %c2_48 = arith.constant 2 : index
    %c0_49 = arith.constant 0 : index
    %c0_50 = arith.constant 0 : index
    %80 = vector.load %arg6[%c2_48, %c0_49, %c0_50] : memref<3x128x128xbf16, #tpu.memory_space<vmem>>, vector<1x128x128xbf16>
    %81 = vector.shape_cast %80 : vector<1x128x128xbf16> to vector<128x128xbf16>
    %cst_51 = arith.constant dense<0.000000e+00> : vector<24x128xf32>
    %82 = tpu.matmul %79, %81, %cst_51 {dimension_numbers = #tpu.dot_dimension_numbers<[1], [0], [0], [1], [0, 0, 1, 1], [], []>} : vector<24x128xbf16>, vector<128x128xbf16>, vector<24x128xf32> -> vector<24x128xf32>
    %83 = arith.addf %76, %82 : vector<24x128xf32>
    %c0_52 = arith.constant 0 : index
    %c0_53 = arith.constant 0 : index
    %84 = vector.load %arg7[%c0_52, %c0_53] : memref<1x128xf32, #tpu.memory_space<vmem>>, vector<1x128xf32>
    %85 = vector.broadcast %84 : vector<1x128xf32> to vector<24x128xf32>
    %86 = arith.addf %83, %85 : vector<24x128xf32>
    %cst_54 = arith.constant dense<0.000000e+00> : vector<128xf32>
    %87 = vector.multi_reduction <add>, %86, %cst_54 [0] : vector<24x128xf32> to vector<128xf32>
    %88 = vector.shape_cast %87 : vector<128xf32> to vector<1x128xf32>
    %cst_55 = arith.constant 2.400000e+01 : f32
    %89 = vector.broadcast %cst_55 : f32 to vector<1x128xf32>
    %90 = arith.divf %88, %89 : vector<1x128xf32>
    %91 = vector.broadcast %90 : vector<1x128xf32> to vector<24x128xf32>
    %92 = arith.subf %86, %91 : vector<24x128xf32>
    %93 = arith.mulf %92, %92 : vector<24x128xf32>
    %cst_56 = arith.constant dense<0.000000e+00> : vector<128xf32>
    %94 = vector.multi_reduction <add>, %93, %cst_56 [0] : vector<24x128xf32> to vector<128xf32>
    %95 = vector.shape_cast %94 : vector<128xf32> to vector<1x128xf32>
    %cst_57 = arith.constant 2.400000e+01 : f32
    %96 = vector.broadcast %cst_57 : f32 to vector<1x128xf32>
    %97 = arith.divf %95, %96 : vector<1x128xf32>
    %98 = vector.broadcast %90 : vector<1x128xf32> to vector<24x128xf32>
    %99 = arith.subf %86, %98 : vector<24x128xf32>
    %cst_58 = arith.constant 9.99999974E-6 : f32
    %100 = vector.broadcast %cst_58 : f32 to vector<1x128xf32>
    %101 = arith.addf %97, %100 : vector<1x128xf32>
    %102 = math.rsqrt %101 : vector<1x128xf32>
    %103 = vector.broadcast %102 : vector<1x128xf32> to vector<24x128xf32>
    %104 = arith.mulf %99, %103 : vector<24x128xf32>
    %c0_59 = arith.constant 0 : index
    %c0_60 = arith.constant 0 : index
    %105 = vector.load %arg8[%c0_59, %c0_60] : memref<1x128xf32, #tpu.memory_space<vmem>>, vector<1x128xf32>
    %106 = vector.broadcast %105 : vector<1x128xf32> to vector<24x128xf32>
    %107 = arith.mulf %104, %106 : vector<24x128xf32>
    %c0_61 = arith.constant 0 : index
    %c0_62 = arith.constant 0 : index
    %108 = vector.load %arg9[%c0_61, %c0_62] : memref<1x128xf32, #tpu.memory_space<vmem>>, vector<1x128xf32>
    %109 = vector.broadcast %108 : vector<1x128xf32> to vector<24x128xf32>
    %110 = arith.addf %107, %109 : vector<24x128xf32>
    %cst_63 = arith.constant 0.000000e+00 : f32
    %111 = vector.broadcast %cst_63 : f32 to vector<24x128xf32>
    %112 = arith.cmpf oge, %110, %111 : vector<24x128xf32>
    %cst_64 = arith.constant 2.000000e-01 : f32
    %113 = vector.broadcast %cst_64 : f32 to vector<24x128xf32>
    %114 = arith.mulf %113, %110 : vector<24x128xf32>
    %115 = arith.select %112, %110, %114 : vector<24x128xi1>, vector<24x128xf32>
    %116 = vector.shape_cast %115 : vector<24x128xf32> to vector<2x12x128xf32>
    %cst_65 = arith.constant 0.000000e+00 : f32
    %117 = vector.broadcast %cst_65 : f32 to vector<20x128xf32>
    %118 = vector.extract_strided_slice %116 {offsets = [0, 0, 0], sizes = [2, 10, 128], strides = [1, 1, 1]} : vector<2x12x128xf32> to vector<2x10x128xf32>
    %119 = vector.shape_cast %118 : vector<2x10x128xf32> to vector<20x128xf32>
    %120 = arith.truncf %119 : vector<20x128xf32> to vector<20x128xbf16>
    %c0_66 = arith.constant 0 : index
    %c0_67 = arith.constant 0 : index
    %c0_68 = arith.constant 0 : index
    %121 = vector.load %arg10[%c0_66, %c0_67, %c0_68] : memref<3x128x128xbf16, #tpu.memory_space<vmem>>, vector<1x128x128xbf16>
    %122 = vector.shape_cast %121 : vector<1x128x128xbf16> to vector<128x128xbf16>
    %cst_69 = arith.constant dense<0.000000e+00> : vector<20x128xf32>
    %123 = tpu.matmul %120, %122, %cst_69 {dimension_numbers = #tpu.dot_dimension_numbers<[1], [0], [0], [1], [0, 0, 1, 1], [], []>} : vector<20x128xbf16>, vector<128x128xbf16>, vector<20x128xf32> -> vector<20x128xf32>
    %124 = arith.addf %117, %123 : vector<20x128xf32>
    %125 = vector.extract_strided_slice %116 {offsets = [0, 1, 0], sizes = [2, 10, 128], strides = [1, 1, 1]} : vector<2x12x128xf32> to vector<2x10x128xf32>
    %126 = vector.shape_cast %125 : vector<2x10x128xf32> to vector<20x128xf32>
    %127 = arith.truncf %126 : vector<20x128xf32> to vector<20x128xbf16>
    %c1_70 = arith.constant 1 : index
    %c0_71 = arith.constant 0 : index
    %c0_72 = arith.constant 0 : index
    %128 = vector.load %arg10[%c1_70, %c0_71, %c0_72] : memref<3x128x128xbf16, #tpu.memory_space<vmem>>, vector<1x128x128xbf16>
    %129 = vector.shape_cast %128 : vector<1x128x128xbf16> to vector<128x128xbf16>
    %cst_73 = arith.constant dense<0.000000e+00> : vector<20x128xf32>
    %130 = tpu.matmul %127, %129, %cst_73 {dimension_numbers = #tpu.dot_dimension_numbers<[1], [0], [0], [1], [0, 0, 1, 1], [], []>} : vector<20x128xbf16>, vector<128x128xbf16>, vector<20x128xf32> -> vector<20x128xf32>
    %131 = arith.addf %124, %130 : vector<20x128xf32>
    %132 = vector.extract_strided_slice %116 {offsets = [0, 2, 0], sizes = [2, 10, 128], strides = [1, 1, 1]} : vector<2x12x128xf32> to vector<2x10x128xf32>
    %133 = vector.shape_cast %132 : vector<2x10x128xf32> to vector<20x128xf32>
    %134 = arith.truncf %133 : vector<20x128xf32> to vector<20x128xbf16>
    %c2_74 = arith.constant 2 : index
    %c0_75 = arith.constant 0 : index
    %c0_76 = arith.constant 0 : index
    %135 = vector.load %arg10[%c2_74, %c0_75, %c0_76] : memref<3x128x128xbf16, #tpu.memory_space<vmem>>, vector<1x128x128xbf16>
    %136 = vector.shape_cast %135 : vector<1x128x128xbf16> to vector<128x128xbf16>
    %cst_77 = arith.constant dense<0.000000e+00> : vector<20x128xf32>
    %137 = tpu.matmul %134, %136, %cst_77 {dimension_numbers = #tpu.dot_dimension_numbers<[1], [0], [0], [1], [0, 0, 1, 1], [], []>} : vector<20x128xbf16>, vector<128x128xbf16>, vector<20x128xf32> -> vector<20x128xf32>
    %138 = arith.addf %131, %137 : vector<20x128xf32>
    %c0_78 = arith.constant 0 : index
    %c0_79 = arith.constant 0 : index
    %139 = vector.load %arg11[%c0_78, %c0_79] : memref<1x128xf32, #tpu.memory_space<vmem>>, vector<1x128xf32>
    %140 = vector.broadcast %139 : vector<1x128xf32> to vector<20x128xf32>
    %141 = arith.addf %138, %140 : vector<20x128xf32>
    %cst_80 = arith.constant dense<0.000000e+00> : vector<128xf32>
    %142 = vector.multi_reduction <add>, %141, %cst_80 [0] : vector<20x128xf32> to vector<128xf32>
    %143 = vector.shape_cast %142 : vector<128xf32> to vector<1x128xf32>
    %cst_81 = arith.constant 2.000000e+01 : f32
    %144 = vector.broadcast %cst_81 : f32 to vector<1x128xf32>
    %145 = arith.divf %143, %144 : vector<1x128xf32>
    %146 = vector.broadcast %145 : vector<1x128xf32> to vector<20x128xf32>
    %147 = arith.subf %141, %146 : vector<20x128xf32>
    %148 = arith.mulf %147, %147 : vector<20x128xf32>
    %cst_82 = arith.constant dense<0.000000e+00> : vector<128xf32>
    %149 = vector.multi_reduction <add>, %148, %cst_82 [0] : vector<20x128xf32> to vector<128xf32>
    %150 = vector.shape_cast %149 : vector<128xf32> to vector<1x128xf32>
    %cst_83 = arith.constant 2.000000e+01 : f32
    %151 = vector.broadcast %cst_83 : f32 to vector<1x128xf32>
    %152 = arith.divf %150, %151 : vector<1x128xf32>
    %153 = vector.broadcast %145 : vector<1x128xf32> to vector<20x128xf32>
    %154 = arith.subf %141, %153 : vector<20x128xf32>
    %cst_84 = arith.constant 9.99999974E-6 : f32
    %155 = vector.broadcast %cst_84 : f32 to vector<1x128xf32>
    %156 = arith.addf %152, %155 : vector<1x128xf32>
    %157 = math.rsqrt %156 : vector<1x128xf32>
    %158 = vector.broadcast %157 : vector<1x128xf32> to vector<20x128xf32>
    %159 = arith.mulf %154, %158 : vector<20x128xf32>
    %c0_85 = arith.constant 0 : index
    %c0_86 = arith.constant 0 : index
    %160 = vector.load %arg12[%c0_85, %c0_86] : memref<1x128xf32, #tpu.memory_space<vmem>>, vector<1x128xf32>
    %161 = vector.broadcast %160 : vector<1x128xf32> to vector<20x128xf32>
    %162 = arith.mulf %159, %161 : vector<20x128xf32>
    %c0_87 = arith.constant 0 : index
    %c0_88 = arith.constant 0 : index
    %163 = vector.load %arg13[%c0_87, %c0_88] : memref<1x128xf32, #tpu.memory_space<vmem>>, vector<1x128xf32>
    %164 = vector.broadcast %163 : vector<1x128xf32> to vector<20x128xf32>
    %165 = arith.addf %162, %164 : vector<20x128xf32>
    %cst_89 = arith.constant 0.000000e+00 : f32
    %166 = vector.broadcast %cst_89 : f32 to vector<20x128xf32>
    %167 = arith.cmpf oge, %165, %166 : vector<20x128xf32>
    %cst_90 = arith.constant 2.000000e-01 : f32
    %168 = vector.broadcast %cst_90 : f32 to vector<20x128xf32>
    %169 = arith.mulf %168, %165 : vector<20x128xf32>
    %170 = arith.select %167, %165, %169 : vector<20x128xi1>, vector<20x128xf32>
    %171 = vector.shape_cast %170 : vector<20x128xf32> to vector<2x10x128xf32>
    %172 = vector.shape_cast %171 : vector<2x10x128xf32> to vector<20x128xf32>
    %173 = arith.truncf %172 : vector<20x128xf32> to vector<20x128xbf16>
    %c0_91 = arith.constant 0 : index
    %c0_92 = arith.constant 0 : index
    %174 = vector.load %arg14[%c0_91, %c0_92] : memref<128x1024xbf16, #tpu.memory_space<vmem>>, vector<128x1024xbf16>
    %cst_93 = arith.constant dense<0.000000e+00> : vector<20x1024xf32>
    %175 = tpu.matmul %173, %174, %cst_93 {dimension_numbers = #tpu.dot_dimension_numbers<[1], [0], [0], [1], [0, 0, 1, 1], [], []>} : vector<20x128xbf16>, vector<128x1024xbf16>, vector<20x1024xf32> -> vector<20x1024xf32>
    %c0_94 = arith.constant 0 : index
    %c0_95 = arith.constant 0 : index
    %176 = vector.load %arg16[%c0_94, %c0_95] : memref<1x1024xf32, #tpu.memory_space<vmem>>, vector<1x1024xf32>
    %177 = vector.broadcast %176 : vector<1x1024xf32> to vector<20x1024xf32>
    %178 = arith.addf %175, %177 : vector<20x1024xf32>
    %cst_96 = arith.constant dense<0xFF800000> : vector<20xf32>
    %179 = vector.multi_reduction <maximumf>, %178, %cst_96 [1] : vector<20x1024xf32> to vector<20xf32>
    %180 = vector.shape_cast %179 : vector<20xf32> to vector<20x1xf32>
    %181 = vector.broadcast %180 : vector<20x1xf32> to vector<20x1024xf32>
    %182 = arith.subf %178, %181 : vector<20x1024xf32>
    %183 = math.exp %182 : vector<20x1024xf32>
    %cst_97 = arith.constant dense<0.000000e+00> : vector<20xf32>
    %184 = vector.multi_reduction <add>, %183, %cst_97 [1] : vector<20x1024xf32> to vector<20xf32>
    %185 = vector.shape_cast %184 : vector<20xf32> to vector<20x1xf32>
    %186 = tpu.reciprocal %185 {approx = true} : vector<20x1xf32> -> vector<20x1xf32>
    %187 = arith.truncf %183 : vector<20x1024xf32> to vector<20x1024xbf16>
    %c0_98 = arith.constant 0 : index
    %c0_99 = arith.constant 0 : index
    %188 = vector.load %arg15[%c0_98, %c0_99] : memref<1024x128xbf16, #tpu.memory_space<vmem>>, vector<1024x128xbf16>
    %cst_100 = arith.constant dense<0.000000e+00> : vector<20x128xf32>
    %189 = tpu.matmul %187, %188, %cst_100 {dimension_numbers = #tpu.dot_dimension_numbers<[1], [0], [0], [1], [0, 0, 1, 1], [], []>} : vector<20x1024xbf16>, vector<1024x128xbf16>, vector<20x128xf32> -> vector<20x128xf32>
    %190 = vector.broadcast %186 : vector<20x1xf32> to vector<20x128xf32>
    %191 = arith.mulf %189, %190 : vector<20x128xf32>
    %192 = vector.shape_cast %191 : vector<20x128xf32> to vector<2x10x128xf32>
    %c0_101 = arith.constant 0 : index
    %c8 = arith.constant 8 : index
    %c0_102 = arith.constant 0 : index
    %193 = vector.load %arg29[%c0_101, %c8, %c0_102] : memref<2x24x128xf32, #tpu.memory_space<vmem>>, vector<2x10x128xf32>
    tpu.vector_store %arg29[%c0_101, %c8, %c0_102], %192 {strides = array<i32>} : memref<2x24x128xf32, #tpu.memory_space<vmem>>, vector<2x10x128xf32>,
    %c0_103 = arith.constant 0 : index
    %c6 = arith.constant 6 : index
    %c0_104 = arith.constant 0 : index
    %194 = vector.load %arg29[%c0_103, %c6, %c0_104] : memref<2x24x128xf32, #tpu.memory_space<vmem>>, vector<2x14x128xf32>
    %cst_105 = arith.constant 0.000000e+00 : f32
    %195 = vector.broadcast %cst_105 : f32 to vector<24x128xf32>
    %196 = vector.extract_strided_slice %194 {offsets = [0, 0, 0], sizes = [2, 12, 128], strides = [1, 1, 1]} : vector<2x14x128xf32> to vector<2x12x128xf32>
    %197 = vector.shape_cast %196 : vector<2x12x128xf32> to vector<24x128xf32>
    %198 = arith.truncf %197 : vector<24x128xf32> to vector<24x128xbf16>
    %c0_106 = arith.constant 0 : index
    %c0_107 = arith.constant 0 : index
    %c0_108 = arith.constant 0 : index
    %199 = vector.load %arg17[%c0_106, %c0_107, %c0_108] : memref<3x128x128xbf16, #tpu.memory_space<vmem>>, vector<1x128x128xbf16>
    %200 = vector.shape_cast %199 : vector<1x128x128xbf16> to vector<128x128xbf16>
    %cst_109 = arith.constant dense<0.000000e+00> : vector<24x128xf32>
    %201 = tpu.matmul %198, %200, %cst_109 {dimension_numbers = #tpu.dot_dimension_numbers<[1], [0], [0], [1], [0, 0, 1, 1], [], []>} : vector<24x128xbf16>, vector<128x128xbf16>, vector<24x128xf32> -> vector<24x128xf32>
    %202 = arith.addf %195, %201 : vector<24x128xf32>
    %203 = vector.extract_strided_slice %194 {offsets = [0, 1, 0], sizes = [2, 12, 128], strides = [1, 1, 1]} : vector<2x14x128xf32> to vector<2x12x128xf32>
    %204 = vector.shape_cast %203 : vector<2x12x128xf32> to vector<24x128xf32>
    %205 = arith.truncf %204 : vector<24x128xf32> to vector<24x128xbf16>
    %c1_110 = arith.constant 1 : index
    %c0_111 = arith.constant 0 : index
    %c0_112 = arith.constant 0 : index
    %206 = vector.load %arg17[%c1_110, %c0_111, %c0_112] : memref<3x128x128xbf16, #tpu.memory_space<vmem>>, vector<1x128x128xbf16>
    %207 = vector.shape_cast %206 : vector<1x128x128xbf16> to vector<128x128xbf16>
    %cst_113 = arith.constant dense<0.000000e+00> : vector<24x128xf32>
    %208 = tpu.matmul %205, %207, %cst_113 {dimension_numbers = #tpu.dot_dimension_numbers<[1], [0], [0], [1], [0, 0, 1, 1], [], []>} : vector<24x128xbf16>, vector<128x128xbf16>, vector<24x128xf32> -> vector<24x128xf32>
    %209 = arith.addf %202, %208 : vector<24x128xf32>
    %210 = vector.extract_strided_slice %194 {offsets = [0, 2, 0], sizes = [2, 12, 128], strides = [1, 1, 1]} : vector<2x14x128xf32> to vector<2x12x128xf32>
    %211 = vector.shape_cast %210 : vector<2x12x128xf32> to vector<24x128xf32>
    %212 = arith.truncf %211 : vector<24x128xf32> to vector<24x128xbf16>
    %c2_114 = arith.constant 2 : index
    %c0_115 = arith.constant 0 : index
    %c0_116 = arith.constant 0 : index
    %213 = vector.load %arg17[%c2_114, %c0_115, %c0_116] : memref<3x128x128xbf16, #tpu.memory_space<vmem>>, vector<1x128x128xbf16>
    %214 = vector.shape_cast %213 : vector<1x128x128xbf16> to vector<128x128xbf16>
    %cst_117 = arith.constant dense<0.000000e+00> : vector<24x128xf32>
    %215 = tpu.matmul %212, %214, %cst_117 {dimension_numbers = #tpu.dot_dimension_numbers<[1], [0], [0], [1], [0, 0, 1, 1], [], []>} : vector<24x128xbf16>, vector<128x128xbf16>, vector<24x128xf32> -> vector<24x128xf32>
    %216 = arith.addf %209, %215 : vector<24x128xf32>
    %c0_118 = arith.constant 0 : index
    %c0_119 = arith.constant 0 : index
    %217 = vector.load %arg18[%c0_118, %c0_119] : memref<1x128xf32, #tpu.memory_space<vmem>>, vector<1x128xf32>
    %218 = vector.broadcast %217 : vector<1x128xf32> to vector<24x128xf32>
    %219 = arith.addf %216, %218 : vector<24x128xf32>
    %cst_120 = arith.constant dense<0.000000e+00> : vector<128xf32>
    %220 = vector.multi_reduction <add>, %219, %cst_120 [0] : vector<24x128xf32> to vector<128xf32>
    %221 = vector.shape_cast %220 : vector<128xf32> to vector<1x128xf32>
    %cst_121 = arith.constant 2.400000e+01 : f32
    %222 = vector.broadcast %cst_121 : f32 to vector<1x128xf32>
    %223 = arith.divf %221, %222 : vector<1x128xf32>
    %224 = vector.broadcast %223 : vector<1x128xf32> to vector<24x128xf32>
    %225 = arith.subf %219, %224 : vector<24x128xf32>
    %226 = arith.mulf %225, %225 : vector<24x128xf32>
    %cst_122 = arith.constant dense<0.000000e+00> : vector<128xf32>
    %227 = vector.multi_reduction <add>, %226, %cst_122 [0] : vector<24x128xf32> to vector<128xf32>
    %228 = vector.shape_cast %227 : vector<128xf32> to vector<1x128xf32>
    %cst_123 = arith.constant 2.400000e+01 : f32
    %229 = vector.broadcast %cst_123 : f32 to vector<1x128xf32>
    %230 = arith.divf %228, %229 : vector<1x128xf32>
    %231 = vector.broadcast %223 : vector<1x128xf32> to vector<24x128xf32>
    %232 = arith.subf %219, %231 : vector<24x128xf32>
    %cst_124 = arith.constant 9.99999974E-6 : f32
    %233 = vector.broadcast %cst_124 : f32 to vector<1x128xf32>
    %234 = arith.addf %230, %233 : vector<1x128xf32>
    %235 = math.rsqrt %234 : vector<1x128xf32>
    %236 = vector.broadcast %235 : vector<1x128xf32> to vector<24x128xf32>
    %237 = arith.mulf %232, %236 : vector<24x128xf32>
    %c0_125 = arith.constant 0 : index
    %c0_126 = arith.constant 0 : index
    %238 = vector.load %arg19[%c0_125, %c0_126] : memref<1x128xf32, #tpu.memory_space<vmem>>, vector<1x128xf32>
    %239 = vector.broadcast %238 : vector<1x128xf32> to vector<24x128xf32>
    %240 = arith.mulf %237, %239 : vector<24x128xf32>
    %c0_127 = arith.constant 0 : index
    %c0_128 = arith.constant 0 : index
    %241 = vector.load %arg20[%c0_127, %c0_128] : memref<1x128xf32, #tpu.memory_space<vmem>>, vector<1x128xf32>
    %242 = vector.broadcast %241 : vector<1x128xf32> to vector<24x128xf32>
    %243 = arith.addf %240, %242 : vector<24x128xf32>
    %cst_129 = arith.constant 0.000000e+00 : f32
    %244 = vector.broadcast %cst_129 : f32 to vector<24x128xf32>
    %245 = arith.cmpf oge, %243, %244 : vector<24x128xf32>
    %cst_130 = arith.constant 2.000000e-01 : f32
    %246 = vector.broadcast %cst_130 : f32 to vector<24x128xf32>
    %247 = arith.mulf %246, %243 : vector<24x128xf32>
    %248 = arith.select %245, %243, %247 : vector<24x128xi1>, vector<24x128xf32>
    %249 = vector.shape_cast %248 : vector<24x128xf32> to vector<2x12x128xf32>
    %c0_131 = arith.constant 0 : index
    %c8_132 = arith.constant 8 : index
    %c0_133 = arith.constant 0 : index
    %250 = vector.load %arg29[%c0_131, %c8_132, %c0_133] : memref<2x24x128xf32, #tpu.memory_space<vmem>>, vector<2x12x128xf32>
    tpu.vector_store %arg29[%c0_131, %c8_132, %c0_133], %249 {strides = array<i32>} : memref<2x24x128xf32, #tpu.memory_space<vmem>>, vector<2x12x128xf32>,
    %c0_134 = arith.constant 0 : index
    %c6_135 = arith.constant 6 : index
    %c0_136 = arith.constant 0 : index
    %251 = vector.load %arg29[%c0_134, %c6_135, %c0_136] : memref<2x24x128xf32, #tpu.memory_space<vmem>>, vector<2x16x128xf32>
    %cst_137 = arith.constant 0.000000e+00 : f32
    %252 = vector.broadcast %cst_137 : f32 to vector<28x128xf32>
    %253 = vector.extract_strided_slice %251 {offsets = [0, 0, 0], sizes = [2, 14, 128], strides = [1, 1, 1]} : vector<2x16x128xf32> to vector<2x14x128xf32>
    %254 = vector.shape_cast %253 : vector<2x14x128xf32> to vector<28x128xf32>
    %255 = arith.truncf %254 : vector<28x128xf32> to vector<28x128xbf16>
    %c0_138 = arith.constant 0 : index
    %c0_139 = arith.constant 0 : index
    %c0_140 = arith.constant 0 : index
    %256 = vector.load %arg21[%c0_138, %c0_139, %c0_140] : memref<3x128x128xbf16, #tpu.memory_space<vmem>>, vector<1x128x128xbf16>
    %257 = vector.shape_cast %256 : vector<1x128x128xbf16> to vector<128x128xbf16>
    %cst_141 = arith.constant dense<0.000000e+00> : vector<28x128xf32>
    %258 = tpu.matmul %255, %257, %cst_141 {dimension_numbers = #tpu.dot_dimension_numbers<[1], [0], [0], [1], [0, 0, 1, 1], [], []>} : vector<28x128xbf16>, vector<128x128xbf16>, vector<28x128xf32> -> vector<28x128xf32>
    %259 = arith.addf %252, %258 : vector<28x128xf32>
    %260 = vector.extract_strided_slice %251 {offsets = [0, 1, 0], sizes = [2, 14, 128], strides = [1, 1, 1]} : vector<2x16x128xf32> to vector<2x14x128xf32>
    %261 = vector.shape_cast %260 : vector<2x14x128xf32> to vector<28x128xf32>
    %262 = arith.truncf %261 : vector<28x128xf32> to vector<28x128xbf16>
    %c1_142 = arith.constant 1 : index
    %c0_143 = arith.constant 0 : index
    %c0_144 = arith.constant 0 : index
    %263 = vector.load %arg21[%c1_142, %c0_143, %c0_144] : memref<3x128x128xbf16, #tpu.memory_space<vmem>>, vector<1x128x128xbf16>
    %264 = vector.shape_cast %263 : vector<1x128x128xbf16> to vector<128x128xbf16>
    %cst_145 = arith.constant dense<0.000000e+00> : vector<28x128xf32>
    %265 = tpu.matmul %262, %264, %cst_145 {dimension_numbers = #tpu.dot_dimension_numbers<[1], [0], [0], [1], [0, 0, 1, 1], [], []>} : vector<28x128xbf16>, vector<128x128xbf16>, vector<28x128xf32> -> vector<28x128xf32>
    %266 = arith.addf %259, %265 : vector<28x128xf32>
    %267 = vector.extract_strided_slice %251 {offsets = [0, 2, 0], sizes = [2, 14, 128], strides = [1, 1, 1]} : vector<2x16x128xf32> to vector<2x14x128xf32>
    %268 = vector.shape_cast %267 : vector<2x14x128xf32> to vector<28x128xf32>
    %269 = arith.truncf %268 : vector<28x128xf32> to vector<28x128xbf16>
    %c2_146 = arith.constant 2 : index
    %c0_147 = arith.constant 0 : index
    %c0_148 = arith.constant 0 : index
    %270 = vector.load %arg21[%c2_146, %c0_147, %c0_148] : memref<3x128x128xbf16, #tpu.memory_space<vmem>>, vector<1x128x128xbf16>
    %271 = vector.shape_cast %270 : vector<1x128x128xbf16> to vector<128x128xbf16>
    %cst_149 = arith.constant dense<0.000000e+00> : vector<28x128xf32>
    %272 = tpu.matmul %269, %271, %cst_149 {dimension_numbers = #tpu.dot_dimension_numbers<[1], [0], [0], [1], [0, 0, 1, 1], [], []>} : vector<28x128xbf16>, vector<128x128xbf16>, vector<28x128xf32> -> vector<28x128xf32>
    %273 = arith.addf %266, %272 : vector<28x128xf32>
    %c0_150 = arith.constant 0 : index
    %c0_151 = arith.constant 0 : index
    %274 = vector.load %arg22[%c0_150, %c0_151] : memref<1x128xf32, #tpu.memory_space<vmem>>, vector<1x128xf32>
    %275 = vector.broadcast %274 : vector<1x128xf32> to vector<28x128xf32>
    %276 = arith.addf %273, %275 : vector<28x128xf32>
    %cst_152 = arith.constant dense<0.000000e+00> : vector<128xf32>
    %277 = vector.multi_reduction <add>, %276, %cst_152 [0] : vector<28x128xf32> to vector<128xf32>
    %278 = vector.shape_cast %277 : vector<128xf32> to vector<1x128xf32>
    %cst_153 = arith.constant 2.800000e+01 : f32
    %279 = vector.broadcast %cst_153 : f32 to vector<1x128xf32>
    %280 = arith.divf %278, %279 : vector<1x128xf32>
    %281 = vector.broadcast %280 : vector<1x128xf32> to vector<28x128xf32>
    %282 = arith.subf %276, %281 : vector<28x128xf32>
    %283 = arith.mulf %282, %282 : vector<28x128xf32>
    %cst_154 = arith.constant dense<0.000000e+00> : vector<128xf32>
    %284 = vector.multi_reduction <add>, %283, %cst_154 [0] : vector<28x128xf32> to vector<128xf32>
    %285 = vector.shape_cast %284 : vector<128xf32> to vector<1x128xf32>
    %cst_155 = arith.constant 2.800000e+01 : f32
    %286 = vector.broadcast %cst_155 : f32 to vector<1x128xf32>
    %287 = arith.divf %285, %286 : vector<1x128xf32>
    %288 = vector.broadcast %280 : vector<1x128xf32> to vector<28x128xf32>
    %289 = arith.subf %276, %288 : vector<28x128xf32>
    %cst_156 = arith.constant 9.99999974E-6 : f32
    %290 = vector.broadcast %cst_156 : f32 to vector<1x128xf32>
    %291 = arith.addf %287, %290 : vector<1x128xf32>
    %292 = math.rsqrt %291 : vector<1x128xf32>
    %293 = vector.broadcast %292 : vector<1x128xf32> to vector<28x128xf32>
    %294 = arith.mulf %289, %293 : vector<28x128xf32>
    %c0_157 = arith.constant 0 : index
    %c0_158 = arith.constant 0 : index
    %295 = vector.load %arg23[%c0_157, %c0_158] : memref<1x128xf32, #tpu.memory_space<vmem>>, vector<1x128xf32>
    %296 = vector.broadcast %295 : vector<1x128xf32> to vector<28x128xf32>
    %297 = arith.mulf %294, %296 : vector<28x128xf32>
    %c0_159 = arith.constant 0 : index
    %c0_160 = arith.constant 0 : index
    %298 = vector.load %arg24[%c0_159, %c0_160] : memref<1x128xf32, #tpu.memory_space<vmem>>, vector<1x128xf32>
    %299 = vector.broadcast %298 : vector<1x128xf32> to vector<28x128xf32>
    %300 = arith.addf %297, %299 : vector<28x128xf32>
    %cst_161 = arith.constant 0.000000e+00 : f32
    %301 = vector.broadcast %cst_161 : f32 to vector<28x128xf32>
    %302 = arith.cmpf oge, %300, %301 : vector<28x128xf32>
    %cst_162 = arith.constant 2.000000e-01 : f32
    %303 = vector.broadcast %cst_162 : f32 to vector<28x128xf32>
    %304 = arith.mulf %303, %300 : vector<28x128xf32>
    %305 = arith.select %302, %300, %304 : vector<28x128xi1>, vector<28x128xf32>
    %306 = vector.shape_cast %305 : vector<28x128xf32> to vector<2x14x128xf32>
    %c0_163 = arith.constant 0 : index
    %c8_164 = arith.constant 8 : index
    %c0_165 = arith.constant 0 : index
    %307 = vector.load %arg29[%c0_163, %c8_164, %c0_165] : memref<2x24x128xf32, #tpu.memory_space<vmem>>, vector<2x14x128xf32>
    tpu.vector_store %arg29[%c0_163, %c8_164, %c0_165], %306 {strides = array<i32>} : memref<2x24x128xf32, #tpu.memory_space<vmem>>, vector<2x14x128xf32>,
    %c0_166 = arith.constant 0 : index
    %c6_167 = arith.constant 6 : index
    %c0_168 = arith.constant 0 : index
    %308 = vector.load %arg29[%c0_166, %c6_167, %c0_168] : memref<2x24x128xf32, #tpu.memory_space<vmem>>, vector<2x18x128xf32>
    %cst_169 = arith.constant 0.000000e+00 : f32
    %309 = vector.broadcast %cst_169 : f32 to vector<32x128xf32>
    %310 = vector.extract_strided_slice %308 {offsets = [0, 0, 0], sizes = [2, 16, 128], strides = [1, 1, 1]} : vector<2x18x128xf32> to vector<2x16x128xf32>
    %311 = vector.shape_cast %310 : vector<2x16x128xf32> to vector<32x128xf32>
    %312 = arith.truncf %311 : vector<32x128xf32> to vector<32x128xbf16>
    %c0_170 = arith.constant 0 : index
    %c0_171 = arith.constant 0 : index
    %c0_172 = arith.constant 0 : index
    %313 = vector.load %arg25[%c0_170, %c0_171, %c0_172] : memref<3x128x128xbf16, #tpu.memory_space<vmem>>, vector<1x128x128xbf16>
    %314 = vector.shape_cast %313 : vector<1x128x128xbf16> to vector<128x128xbf16>
    %cst_173 = arith.constant dense<0.000000e+00> : vector<32x128xf32>
    %315 = tpu.matmul %312, %314, %cst_173 {dimension_numbers = #tpu.dot_dimension_numbers<[1], [0], [0], [1], [0, 0, 1, 1], [], []>} : vector<32x128xbf16>, vector<128x128xbf16>, vector<32x128xf32> -> vector<32x128xf32>
    %316 = arith.addf %309, %315 : vector<32x128xf32>
    %317 = vector.extract_strided_slice %308 {offsets = [0, 1, 0], sizes = [2, 16, 128], strides = [1, 1, 1]} : vector<2x18x128xf32> to vector<2x16x128xf32>
    %318 = vector.shape_cast %317 : vector<2x16x128xf32> to vector<32x128xf32>
    %319 = arith.truncf %318 : vector<32x128xf32> to vector<32x128xbf16>
    %c1_174 = arith.constant 1 : index
    %c0_175 = arith.constant 0 : index
    %c0_176 = arith.constant 0 : index
    %320 = vector.load %arg25[%c1_174, %c0_175, %c0_176] : memref<3x128x128xbf16, #tpu.memory_space<vmem>>, vector<1x128x128xbf16>
    %321 = vector.shape_cast %320 : vector<1x128x128xbf16> to vector<128x128xbf16>
    %cst_177 = arith.constant dense<0.000000e+00> : vector<32x128xf32>
    %322 = tpu.matmul %319, %321, %cst_177 {dimension_numbers = #tpu.dot_dimension_numbers<[1], [0], [0], [1], [0, 0, 1, 1], [], []>} : vector<32x128xbf16>, vector<128x128xbf16>, vector<32x128xf32> -> vector<32x128xf32>
    %323 = arith.addf %316, %322 : vector<32x128xf32>
    %324 = vector.extract_strided_slice %308 {offsets = [0, 2, 0], sizes = [2, 16, 128], strides = [1, 1, 1]} : vector<2x18x128xf32> to vector<2x16x128xf32>
    %325 = vector.shape_cast %324 : vector<2x16x128xf32> to vector<32x128xf32>
    %326 = arith.truncf %325 : vector<32x128xf32> to vector<32x128xbf16>
    %c2_178 = arith.constant 2 : index
    %c0_179 = arith.constant 0 : index
    %c0_180 = arith.constant 0 : index
    %327 = vector.load %arg25[%c2_178, %c0_179, %c0_180] : memref<3x128x128xbf16, #tpu.memory_space<vmem>>, vector<1x128x128xbf16>
    %328 = vector.shape_cast %327 : vector<1x128x128xbf16> to vector<128x128xbf16>
    %cst_181 = arith.constant dense<0.000000e+00> : vector<32x128xf32>
    %329 = tpu.matmul %326, %328, %cst_181 {dimension_numbers = #tpu.dot_dimension_numbers<[1], [0], [0], [1], [0, 0, 1, 1], [], []>} : vector<32x128xbf16>, vector<128x128xbf16>, vector<32x128xf32> -> vector<32x128xf32>
    %330 = arith.addf %323, %329 : vector<32x128xf32>
    %c0_182 = arith.constant 0 : index
    %c0_183 = arith.constant 0 : index
    %331 = vector.load %arg26[%c0_182, %c0_183] : memref<1x128xf32, #tpu.memory_space<vmem>>, vector<1x128xf32>
    %332 = vector.broadcast %331 : vector<1x128xf32> to vector<32x128xf32>
    %333 = arith.addf %330, %332 : vector<32x128xf32>
    %334 = vector.shape_cast %333 : vector<32x128xf32> to vector<2x16x128xf32>
    %335 = arith.subf %334, %6 : vector<2x16x128xf32>
    %336 = arith.mulf %335, %335 : vector<2x16x128xf32>
    %337 = vector.shape_cast %336 : vector<2x16x128xf32> to vector<1x2x16x128xf32>
    %cst_184 = arith.constant dense<0.000000e+00> : vector<1xf32>
    %338 = vector.multi_reduction <add>, %337, %cst_184 [1, 2, 3] : vector<1x2x16x128xf32> to vector<1xf32>
    %339 = vector.shape_cast %338 : vector<1xf32> to vector<1x1x1x1xf32>
    %340 = vector.extract %339[0, 0, 0, 0] : f32 from vector<1x1x1x1xf32>
    %cst_185 = arith.constant 0.010416667 : f32
    %341 = arith.mulf %340, %cst_185 : f32
    %342 = vector.broadcast %341 : f32 to vector<1x1xf32>
    %c0_186 = arith.constant 0 : index
    %c0_187 = arith.constant 0 : index
    %343 = vector.load %arg27[%c0_186, %c0_187] : memref<1x1xf32, #tpu.memory_space<vmem>>, vector<1x1xf32>
    tpu.vector_store %arg27[%c0_186, %c0_187], %342 {strides = array<i32>} : memref<1x1xf32, #tpu.memory_space<vmem>>, vector<1x1xf32>,
    return
  }
  func.func @transform_0(%arg0: i32) -> (i32, i32, i32) {
    %c0_i32 = arith.constant 0 : i32
    %c0_i32_0 = arith.constant 0 : i32
    %c0_i32_1 = arith.constant 0 : i32
    %c0_i32_2 = arith.constant 0 : i32
    return %c0_i32, %c0_i32_0, %c0_i32_1 : i32, i32, i32
  }
  func.func @transform_1(%arg0: i32) -> (i32, i32, i32) {
    %c0_i32 = arith.constant 0 : i32
    %c0_i32_0 = arith.constant 0 : i32
    %c0_i32_1 = arith.constant 0 : i32
    %c0_i32_2 = arith.constant 0 : i32
    return %c0_i32, %c0_i32_0, %c0_i32_1 : i32, i32, i32
  }
  func.func @transform_2(%arg0: i32) -> (i32, i32) {
    %c0_i32 = arith.constant 0 : i32
    %c0_i32_0 = arith.constant 0 : i32
    %c0_i32_1 = arith.constant 0 : i32
    return %c0_i32, %c0_i32_0 : i32, i32
  }
  func.func @transform_3(%arg0: i32) -> (i32, i32) {
    %c0_i32 = arith.constant 0 : i32
    %c0_i32_0 = arith.constant 0 : i32
    %c0_i32_1 = arith.constant 0 : i32
    return %c0_i32, %c0_i32_0 : i32, i32
  }
  func.func @transform_4(%arg0: i32) -> (i32, i32) {
    %c0_i32 = arith.constant 0 : i32
    %c0_i32_0 = arith.constant 0 : i32
    %c0_i32_1 = arith.constant 0 : i32
    return %c0_i32, %c0_i32_0 : i32, i32
  }
  func.func @transform_5(%arg0: i32) -> (i32, i32, i32) {
    %c0_i32 = arith.constant 0 : i32
    %c0_i32_0 = arith.constant 0 : i32
    %c0_i32_1 = arith.constant 0 : i32
    %c0_i32_2 = arith.constant 0 : i32
    return %c0_i32, %c0_i32_0, %c0_i32_1 : i32, i32, i32
  }
  func.func @transform_6(%arg0: i32) -> (i32, i32) {
    %c0_i32 = arith.constant 0 : i32
    %c0_i32_0 = arith.constant 0 : i32
    %c0_i32_1 = arith.constant 0 : i32
    return %c0_i32, %c0_i32_0 : i32, i32
  }
  func.func @transform_7(%arg0: i32) -> (i32, i32) {
    %c0_i32 = arith.constant 0 : i32
    %c0_i32_0 = arith.constant 0 : i32
    %c0_i32_1 = arith.constant 0 : i32
    return %c0_i32, %c0_i32_0 : i32, i32
  }
  func.func @transform_8(%arg0: i32) -> (i32, i32) {
    %c0_i32 = arith.constant 0 : i32
    %c0_i32_0 = arith.constant 0 : i32
    %c0_i32_1 = arith.constant 0 : i32
    return %c0_i32, %c0_i32_0 : i32, i32
  }
  func.func @transform_9(%arg0: i32) -> (i32, i32, i32) {
    %c0_i32 = arith.constant 0 : i32
    %c0_i32_0 = arith.constant 0 : i32
    %c0_i32_1 = arith.constant 0 : i32
    %c0_i32_2 = arith.constant 0 : i32
    return %c0_i32, %c0_i32_0, %c0_i32_1 : i32, i32, i32
  }
  func.func @transform_10(%arg0: i32) -> (i32, i32) {
    %c0_i32 = arith.constant 0 : i32
    %c0_i32_0 = arith.constant 0 : i32
    %c0_i32_1 = arith.constant 0 : i32
    return %c0_i32, %c0_i32_0 : i32, i32
  }
  func.func @transform_11(%arg0: i32) -> (i32, i32) {
    %c0_i32 = arith.constant 0 : i32
    %c0_i32_0 = arith.constant 0 : i32
    %c0_i32_1 = arith.constant 0 : i32
    return %c0_i32, %c0_i32_0 : i32, i32
  }
  func.func @transform_12(%arg0: i32) -> (i32, i32) {
    %c0_i32 = arith.constant 0 : i32
    %c0_i32_0 = arith.constant 0 : i32
    %c0_i32_1 = arith.constant 0 : i32
    return %c0_i32, %c0_i32_0 : i32, i32
  }
  func.func @transform_13(%arg0: i32) -> (i32, i32) {
    %c0_i32 = arith.constant 0 : i32
    %c0_i32_0 = arith.constant 0 : i32
    %c0_i32_1 = arith.constant 0 : i32
    return %c0_i32, %c0_i32_0 : i32, i32
  }
  func.func @transform_14(%arg0: i32) -> (i32, i32) {
    %c0_i32 = arith.constant 0 : i32
    %c0_i32_0 = arith.constant 0 : i32
    %c0_i32_1 = arith.constant 0 : i32
    return %c0_i32, %c0_i32_0 : i32, i32
  }
  func.func @transform_15(%arg0: i32) -> (i32, i32) {
    %c0_i32 = arith.constant 0 : i32
    %c0_i32_0 = arith.constant 0 : i32
    %c0_i32_1 = arith.constant 0 : i32
    return %c0_i32, %c0_i32_0 : i32, i32
  }
  func.func @transform_16(%arg0: i32) -> (i32, i32, i32) {
    %c0_i32 = arith.constant 0 : i32
    %c0_i32_0 = arith.constant 0 : i32
    %c0_i32_1 = arith.constant 0 : i32
    %c0_i32_2 = arith.constant 0 : i32
    return %c0_i32, %c0_i32_0, %c0_i32_1 : i32, i32, i32
  }
  func.func @transform_17(%arg0: i32) -> (i32, i32) {
    %c0_i32 = arith.constant 0 : i32
    %c0_i32_0 = arith.constant 0 : i32
    %c0_i32_1 = arith.constant 0 : i32
    return %c0_i32, %c0_i32_0 : i32, i32
  }
  func.func @transform_18(%arg0: i32) -> (i32, i32) {
    %c0_i32 = arith.constant 0 : i32
    %c0_i32_0 = arith.constant 0 : i32
    %c0_i32_1 = arith.constant 0 : i32
    return %c0_i32, %c0_i32_0 : i32, i32
  }
  func.func @transform_19(%arg0: i32) -> (i32, i32) {
    %c0_i32 = arith.constant 0 : i32
    %c0_i32_0 = arith.constant 0 : i32
    %c0_i32_1 = arith.constant 0 : i32
    return %c0_i32, %c0_i32_0 : i32, i32
  }
  func.func @transform_20(%arg0: i32) -> (i32, i32, i32) {
    %c0_i32 = arith.constant 0 : i32
    %c0_i32_0 = arith.constant 0 : i32
    %c0_i32_1 = arith.constant 0 : i32
    %c0_i32_2 = arith.constant 0 : i32
    return %c0_i32, %c0_i32_0, %c0_i32_1 : i32, i32, i32
  }
  func.func @transform_21(%arg0: i32) -> (i32, i32) {
    %c0_i32 = arith.constant 0 : i32
    %c0_i32_0 = arith.constant 0 : i32
    %c0_i32_1 = arith.constant 0 : i32
    return %c0_i32, %c0_i32_0 : i32, i32
  }
  func.func @transform_22(%arg0: i32) -> (i32, i32) {
    %c0_i32 = arith.constant 0 : i32
    %c0_i32_0 = arith.constant 0 : i32
    %c0_i32_1 = arith.constant 0 : i32
    return %c0_i32, %c0_i32_0 : i32, i32
  }
  func.func @transform_23(%arg0: i32) -> (i32, i32) {
    %c0_i32 = arith.constant 0 : i32
    %c0_i32_0 = arith.constant 0 : i32
    %c0_i32_1 = arith.constant 0 : i32
    return %c0_i32, %c0_i32_0 : i32, i32
  }
  func.func @transform_24(%arg0: i32) -> (i32, i32, i32) {
    %c0_i32 = arith.constant 0 : i32
    %c0_i32_0 = arith.constant 0 : i32
    %c0_i32_1 = arith.constant 0 : i32
    %c0_i32_2 = arith.constant 0 : i32
    return %c0_i32, %c0_i32_0, %c0_i32_1 : i32, i32, i32
  }
  func.func @transform_25(%arg0: i32) -> (i32, i32) {
    %c0_i32 = arith.constant 0 : i32
    %c0_i32_0 = arith.constant 0 : i32
    %c0_i32_1 = arith.constant 0 : i32
    return %c0_i32, %c0_i32_0 : i32, i32
  }
  func.func @transform_26(%arg0: i32) -> (i32, i32) {
    %c0_i32 = arith.constant 0 : i32
    %c0_i32_0 = arith.constant 0 : i32
    %c0_i32_1 = arith.constant 0 : i32
    return %c0_i32, %c0_i32_0 : i32, i32
  }
}

</mosaic_0001>

<llo_original>
// kernel: mae_forward.1
$region0: #{mae_forward.1}
  #allocation0 [shape = 'u32[]', space=smem, size = 0x4, offset = 0x4, fixed_abs, tag = 'smem constant byte address 0x4 - core index']
  #allocation1 [shape = 'u32[144,128]{1,0:T(1,128)}', space=vmem, size = 0x12000, scoped, tag = 'internal scratch']
  #allocation2 [shape = 'f32[2,16,128]{2,1,0:T(8,128)}', space=vmem, size = 0x4000, scoped, tag = 'scratch operand']
  #allocation3 [shape = 'f32[2,24,128]{2,1,0:T(8,128)}', space=vmem, size = 0x6000, scoped, tag = 'scratch operand']
  %s0 = inlined_call_operand.vmem [shape: f32[2,16,3], index: 0, kind: input, shape index: {}]
  %s1 = inlined_call_operand.hbm [shape: bf16[3,128,128], index: 1, kind: input, shape index: {}]
  %s2 = inlined_call_operand.vmem [shape: f32[1,128], index: 2, kind: input, shape index: {}]
  %s3 = inlined_call_operand.vmem [shape: f32[1,128], index: 3, kind: input, shape index: {}]
  %s4 = inlined_call_operand.vmem [shape: f32[1,128], index: 4, kind: input, shape index: {}]
  %s5 = inlined_call_operand.hbm [shape: bf16[3,128,128], index: 5, kind: input, shape index: {}]
  %s6 = inlined_call_operand.vmem [shape: f32[1,128], index: 6, kind: input, shape index: {}]
  %s7 = inlined_call_operand.vmem [shape: f32[1,128], index: 7, kind: input, shape index: {}]
  %s8 = inlined_call_operand.vmem [shape: f32[1,128], index: 8, kind: input, shape index: {}]
  %s9 = inlined_call_operand.hbm [shape: bf16[3,128,128], index: 9, kind: input, shape index: {}]
  %s10 = inlined_call_operand.vmem [shape: f32[1,128], index: 10, kind: input, shape index: {}]
  %s11 = inlined_call_operand.vmem [shape: f32[1,128], index: 11, kind: input, shape index: {}]
  %s12 = inlined_call_operand.vmem [shape: f32[1,128], index: 12, kind: input, shape index: {}]
  %s13 = inlined_call_operand.hbm [shape: bf16[128,1024], index: 13, kind: input, shape index: {}]
  %s14 = inlined_call_operand.hbm [shape: bf16[1024,128], index: 14, kind: input, shape index: {}]
  %s15 = inlined_call_operand.vmem [shape: f32[1,1024], index: 15, kind: input, shape index: {}]
  %s16 = inlined_call_operand.hbm [shape: bf16[3,128,128], index: 16, kind: input, shape index: {}]
  %s17 = inlined_call_operand.vmem [shape: f32[1,128], index: 17, kind: input, shape index: {}]
  %s18 = inlined_call_operand.vmem [shape: f32[1,128], index: 18, kind: input, shape index: {}]
  %s19 = inlined_call_operand.vmem [shape: f32[1,128], index: 19, kind: input, shape index: {}]
  %s20 = inlined_call_operand.hbm [shape: bf16[3,128,128], index: 20, kind: input, shape index: {}]
  %s21 = inlined_call_operand.vmem [shape: f32[1,128], index: 21, kind: input, shape index: {}]
  %s22 = inlined_call_operand.vmem [shape: f32[1,128], index: 22, kind: input, shape index: {}]
  %s23 = inlined_call_operand.vmem [shape: f32[1,128], index: 23, kind: input, shape index: {}]
  %s24 = inlined_call_operand.hbm [shape: bf16[3,128,128], index: 24, kind: input, shape index: {}]
  %s25 = inlined_call_operand.vmem [shape: f32[1,128], index: 25, kind: input, shape index: {}]
  %s26 = inlined_call_operand.hbm [shape: f32[1,1], index: 26, kind: output, shape index: {}]
  %s27 = sld [smem:[#allocation0]]
  $region146: #{mae_forward.1} parent=0
    _
  %s29 = ssub.s32 1, %s27
  %s30 = scalar_select 0, %s29, %s27
  $region1: #{mae_forward.1} parent=0
    #allocation4 [shape = 'u8[98304]{0}', space=vmem, size = 0x18000, scoped, tag = 'input window, operand 1, single buffered']
    #allocation5 [shape = 's32[1]{0}', space=sflag, size = 0x4, scoped, tag = 'scoped memory for mae_forward.1']
    #allocation6 [shape = 's32[1]{0}', space=sflag, size = 0x4, scoped, tag = 'scoped memory for mae_forward.1']
    #allocation7 [shape = 'u8[98304]{0}', space=vmem, size = 0x18000, scoped, tag = 'input window, operand 5, single buffered']
    #allocation8 [shape = 's32[1]{0}', space=sflag, size = 0x4, scoped, tag = 'scoped memory for mae_forward.1']
    #allocation9 [shape = 'u8[98304]{0}', space=vmem, size = 0x18000, scoped, tag = 'input window, operand 9, single buffered']
    #allocation10 [shape = 'u8[262144]{0}', space=vmem, size = 0x40000, scoped, tag = 'input window, operand 13, single buffered']
    #allocation11 [shape = 's32[1]{0}', space=sflag, size = 0x4, scoped, tag = 'scoped memory for mae_forward.1']
    #allocation12 [shape = 'u8[262144]{0}', space=vmem, size = 0x40000, scoped, tag = 'input window, operand 14, single buffered']
    #allocation13 [shape = 'u8[98304]{0}', space=vmem, size = 0x18000, scoped, tag = 'input window, operand 16, single buffered']
    #allocation14 [shape = 's32[1]{0}', space=sflag, size = 0x4, scoped, tag = 'scoped memory for mae_forward.1']
    #allocation15 [shape = 'u8[98304]{0}', space=vmem, size = 0x18000, scoped, tag = 'input window, operand 20, single buffered']
    #allocation16 [shape = 'u8[98304]{0}', space=vmem, size = 0x18000, scoped, tag = 'input window, operand 24, single buffered']
    #allocation17 [shape = 's32[1]{0}', space=sflag, size = 0x4, scoped, tag = 'scoped memory for mae_forward.1']
    #allocation18 [shape = 'u8[512]{0}', space=vmem, size = 0x400, scoped, tag = 'output window, operand 0, single buffered']
    %31 = vsyncpa [#allocation5], 0
    %32 = vsyncpa [#allocation8], 0
    %33 = vsyncpa [#allocation11], 0
    %34 = vsyncpa [#allocation14], 0
    %35 = vsyncpa [#allocation17], 0
    %36 = vsyncpa [#allocation6], 0
    // Predicated region
    $region2: #{mae_forward.1} parent=1 // pred_check
      _
    $region3: #{mae_forward.1} parent=1 // pred_check_branch
      %38 = sbr.rel (0) target = $region5
    $region4: #{mae_forward.1} parent=1 // pred_region
      _
    $region5: #{mae_forward.1} parent=1 // pred_fallthru
      _
    // Predicated region
    $region6: #{mae_forward.1} parent=1 // pred_check
      _
    $region7: #{mae_forward.1} parent=1 // pred_check_branch
      %40 = sbr.rel (0) target = $region9
    $region8: #{mae_forward.1} parent=1 // pred_region
      %s42 = ssub.s32 3072, 3072
      %43 = vsyncadd [#allocation5], %s42
      %s44 = sshll.u32 [#allocation4], 4
      %s45 = int_to_ptr.vmem [resolvable:$true] %s44
      %50 = dma.hbm_to_vmem [thread:$0]  %s1, 3072, %s45, [#allocation5], 64, 64, 4
    $region9: #{mae_forward.1} parent=1 // pred_fallthru
      _
    // Predicated region
    $region10: #{mae_forward.1} parent=1 // pred_check
      _
    $region11: #{mae_forward.1} parent=1 // pred_check_branch
      %52 = sbr.rel (0) target = $region13
    $region12: #{mae_forward.1} parent=1 // pred_region
      _
    $region13: #{mae_forward.1} parent=1 // pred_fallthru
      _
    // Predicated region
    $region14: #{mae_forward.1} parent=1 // pred_check
      _
    $region15: #{mae_forward.1} parent=1 // pred_check_branch
      %54 = sbr.rel (0) target = $region17
    $region16: #{mae_forward.1} parent=1 // pred_region
      _
    $region17: #{mae_forward.1} parent=1 // pred_fallthru
      _
    // Predicated region
    $region18: #{mae_forward.1} parent=1 // pred_check
      _
    $region19: #{mae_forward.1} parent=1 // pred_check_branch
      %56 = sbr.rel (0) target = $region21
    $region20: #{mae_forward.1} parent=1 // pred_region
      _
    $region21: #{mae_forward.1} parent=1 // pred_fallthru
      _
    // Predicated region
    $region22: #{mae_forward.1} parent=1 // pred_check
      _
    $region23: #{mae_forward.1} parent=1 // pred_check_branch
      %58 = sbr.rel (0) target = $region25
    $region24: #{mae_forward.1} parent=1 // pred_region
      %s60 = ssub.s32 3072, 3072
      %61 = vsyncadd [#allocation8], %s60
      %s62 = sshll.u32 [#allocation7], 4
      %s63 = int_to_ptr.vmem [resolvable:$true] %s62
      %68 = dma.hbm_to_vmem [thread:$0]  %s5, 3072, %s63, [#allocation8], 64, 64, 4
    $region25: #{mae_forward.1} parent=1 // pred_fallthru
      _
    // Predicated region
    $region26: #{mae_forward.1} parent=1 // pred_check
      _
    $region27: #{mae_forward.1} parent=1 // pred_check_branch
      %70 = sbr.rel (0) target = $region29
    $region28: #{mae_forward.1} parent=1 // pred_region
      _
    $region29: #{mae_forward.1} parent=1 // pred_fallthru
      _
    // Predicated region
    $region30: #{mae_forward.1} parent=1 // pred_check
      _
    $region31: #{mae_forward.1} parent=1 // pred_check_branch
      %72 = sbr.rel (0) target = $region33
    $region32: #{mae_forward.1} parent=1 // pred_region
      _
    $region33: #{mae_forward.1} parent=1 // pred_fallthru
      _
    // Predicated region
    $region34: #{mae_forward.1} parent=1 // pred_check
      _
    $region35: #{mae_forward.1} parent=1 // pred_check_branch
      %74 = sbr.rel (0) target = $region37
    $region36: #{mae_forward.1} parent=1 // pred_region
      _
    $region37: #{mae_forward.1} parent=1 // pred_fallthru
      _
    // Predicated region
    $region38: #{mae_forward.1} parent=1 // pred_check
      _
    $region39: #{mae_forward.1} parent=1 // pred_check_branch
      %76 = sbr.rel (0) target = $region41
    $region40: #{mae_forward.1} parent=1 // pred_region
      %s78 = ssub.s32 3072, 3072
      %79 = vsyncadd [#allocation8], %s78
      %s80 = sshll.u32 [#allocation9], 4
      %s81 = int_to_ptr.vmem [resolvable:$true] %s80
      %86 = dma.hbm_to_vmem [thread:$0]  %s9, 3072, %s81, [#allocation8], 64, 64, 4
    $region41: #{mae_forward.1} parent=1 // pred_fallthru
      _
    // Predicated region
    $region42: #{mae_forward.1} parent=1 // pred_check
      _
    $region43: #{mae_forward.1} parent=1 // pred_check_branch
      %88 = sbr.rel (0) target = $region45
    $region44: #{mae_forward.1} parent=1 // pred_region
      _
    $region45: #{mae_forward.1} parent=1 // pred_fallthru
      _
    // Predicated region
    $region46: #{mae_forward.1} parent=1 // pred_check
      _
    $region47: #{mae_forward.1} parent=1 // pred_check_branch
      %90 = sbr.rel (0) target = $region49
    $region48: #{mae_forward.1} parent=1 // pred_region
      _
    $region49: #{mae_forward.1} parent=1 // pred_fallthru
      _
    // Predicated region
    $region50: #{mae_forward.1} parent=1 // pred_check
      _
    $region51: #{mae_forward.1} parent=1 // pred_check_branch
      %92 = sbr.rel (0) target = $region53
    $region52: #{mae_forward.1} parent=1 // pred_region
      _
    $region53: #{mae_forward.1} parent=1 // pred_fallthru
      _
    // Predicated region
    $region54: #{mae_forward.1} parent=1 // pred_check
      _
    $region55: #{mae_forward.1} parent=1 // pred_check_branch
      %94 = sbr.rel (0) target = $region57
    $region56: #{mae_forward.1} parent=1 // pred_region
      %s96 = ssub.s32 8192, 8192
      %97 = vsyncadd [#allocation11], %s96
      %s98 = sshll.u32 [#allocation10], 4
      %s99 = int_to_ptr.vmem [resolvable:$true] %s98
      %104 = dma.hbm_to_vmem [thread:$0]  %s13, 8192, %s99, [#allocation11], 512, 512, 32
    $region57: #{mae_forward.1} parent=1 // pred_fallthru
      _
    // Predicated region
    $region58: #{mae_forward.1} parent=1 // pred_check
      _
    $region59: #{mae_forward.1} parent=1 // pred_check_branch
      %106 = sbr.rel (0) target = $region61
    $region60: #{mae_forward.1} parent=1 // pred_region
      %s108 = ssub.s32 8192, 8192
      %109 = vsyncadd [#allocation11], %s108
      %s110 = sshll.u32 [#allocation12], 4
      %s111 = int_to_ptr.vmem [resolvable:$true] %s110
      %116 = dma.hbm_to_vmem [thread:$0]  %s14, 8192, %s111, [#allocation11], 64, 64, 4
    $region61: #{mae_forward.1} parent=1 // pred_fallthru
      _
    // Predicated region
    $region62: #{mae_forward.1} parent=1 // pred_check
      _
    $region63: #{mae_forward.1} parent=1 // pred_check_branch
      %118 = sbr.rel (0) target = $region65
    $region64: #{mae_forward.1} parent=1 // pred_region
      _
    $region65: #{mae_forward.1} parent=1 // pred_fallthru
      _
    // Predicated region
    $region66: #{mae_forward.1} parent=1 // pred_check
      _
    $region67: #{mae_forward.1} parent=1 // pred_check_branch
      %120 = sbr.rel (0) target = $region69
    $region68: #{mae_forward.1} parent=1 // pred_region
      %s122 = ssub.s32 3072, 3072
      %123 = vsyncadd [#allocation14], %s122
      %s124 = sshll.u32 [#allocation13], 4
      %s125 = int_to_ptr.vmem [resolvable:$true] %s124
      %130 = dma.hbm_to_vmem [thread:$0]  %s16, 3072, %s125, [#allocation14], 64, 64, 4
    $region69: #{mae_forward.1} parent=1 // pred_fallthru
      _
    // Predicated region
    $region70: #{mae_forward.1} parent=1 // pred_check
      _
    $region71: #{mae_forward.1} parent=1 // pred_check_branch
      %132 = sbr.rel (0) target = $region73
    $region72: #{mae_forward.1} parent=1 // pred_region
      _
    $region73: #{mae_forward.1} parent=1 // pred_fallthru
      _
    // Predicated region
    $region74: #{mae_forward.1} parent=1 // pred_check
      _
    $region75: #{mae_forward.1} parent=1 // pred_check_branch
      %134 = sbr.rel (0) target = $region77
    $region76: #{mae_forward.1} parent=1 // pred_region
      _
    $region77: #{mae_forward.1} parent=1 // pred_fallthru
      _
    // Predicated region
    $region78: #{mae_forward.1} parent=1 // pred_check
      _
    $region79: #{mae_forward.1} parent=1 // pred_check_branch
      %136 = sbr.rel (0) target = $region81
    $region80: #{mae_forward.1} parent=1 // pred_region
      _
    $region81: #{mae_forward.1} parent=1 // pred_fallthru
      _
    // Predicated region
    $region82: #{mae_forward.1} parent=1 // pred_check
      _
    $region83: #{mae_forward.1} parent=1 // pred_check_branch
      %138 = sbr.rel (0) target = $region85
    $region84: #{mae_forward.1} parent=1 // pred_region
      %s140 = ssub.s32 3072, 3072
      %141 = vsyncadd [#allocation14], %s140
      %s142 = sshll.u32 [#allocation15], 4
      %s143 = int_to_ptr.vmem [resolvable:$true] %s142
      %148 = dma.hbm_to_vmem [thread:$0]  %s20, 3072, %s143, [#allocation14], 64, 64, 4
    $region85: #{mae_forward.1} parent=1 // pred_fallthru
      _
    // Predicated region
    $region86: #{mae_forward.1} parent=1 // pred_check
      _
    $region87: #{mae_forward.1} parent=1 // pred_check_branch
      %150 = sbr.rel (0) target = $region89
    $region88: #{mae_forward.1} parent=1 // pred_region
      _
    $region89: #{mae_forward.1} parent=1 // pred_fallthru
      _
    // Predicated region
    $region90: #{mae_forward.1} parent=1 // pred_check
      _
    $region91: #{mae_forward.1} parent=1 // pred_check_branch
      %152 = sbr.rel (0) target = $region93
    $region92: #{mae_forward.1} parent=1 // pred_region
      _
    $region93: #{mae_forward.1} parent=1 // pred_fallthru
      _
    // Predicated region
    $region94: #{mae_forward.1} parent=1 // pred_check
      _
    $region95: #{mae_forward.1} parent=1 // pred_check_branch
      %154 = sbr.rel (0) target = $region97
    $region96: #{mae_forward.1} parent=1 // pred_region
      _
    $region97: #{mae_forward.1} parent=1 // pred_fallthru
      _
    // Predicated region
    $region98: #{mae_forward.1} parent=1 // pred_check
      _
    $region99: #{mae_forward.1} parent=1 // pred_check_branch
      %156 = sbr.rel (0) target = $region101
    $region100: #{mae_forward.1} parent=1 // pred_region
      %s158 = ssub.s32 3072, 3072
      %159 = vsyncadd [#allocation17], %s158
      %s160 = sshll.u32 [#allocation16], 4
      %s161 = int_to_ptr.vmem [resolvable:$true] %s160
      %166 = dma.hbm_to_vmem [thread:$0]  %s24, 3072, %s161, [#allocation17], 64, 64, 4
    $region101: #{mae_forward.1} parent=1 // pred_fallthru
      _
    // Predicated region
    $region102: #{mae_forward.1} parent=1 // pred_check
      _
    $region103: #{mae_forward.1} parent=1 // pred_check_branch
      %168 = sbr.rel (0) target = $region105
    $region104: #{mae_forward.1} parent=1 // pred_region
      _
    $region105: #{mae_forward.1} parent=1 // pred_fallthru
      _
    // Predicated region
    $region106: #{mae_forward.1} parent=1 // pred_check
      _
    $region107: #{mae_forward.1} parent=1 // pred_check_branch
      %170 = sbr.rel (0) target = $region109
    $region108: #{mae_forward.1} parent=1 // pred_region
      %171 = dma.done [#allocation5], 3072
    $region109: #{mae_forward.1} parent=1 // pred_fallthru
      _
    // Predicated region
    $region110: #{mae_forward.1} parent=1 // pred_check
      _
    $region111: #{mae_forward.1} parent=1 // pred_check_branch
      %173 = sbr.rel (0) target = $region113
    $region112: #{mae_forward.1} parent=1 // pred_region
      %174 = dma.done [#allocation8], 3072
    $region113: #{mae_forward.1} parent=1 // pred_fallthru
      _
    // Predicated region
    $region114: #{mae_forward.1} parent=1 // pred_check
      _
    $region115: #{mae_forward.1} parent=1 // pred_check_branch
      %176 = sbr.rel (0) target = $region117
    $region116: #{mae_forward.1} parent=1 // pred_region
      %177 = dma.done [#allocation8], 3072
    $region117: #{mae_forward.1} parent=1 // pred_fallthru
      _
    // Predicated region
    $region118: #{mae_forward.1} parent=1 // pred_check
      _
    $region119: #{mae_forward.1} parent=1 // pred_check_branch
      %179 = sbr.rel (0) target = $region121
    $region120: #{mae_forward.1} parent=1 // pred_region
      %180 = dma.done [#allocation11], 8192
    $region121: #{mae_forward.1} parent=1 // pred_fallthru
      _
    // Predicated region
    $region122: #{mae_forward.1} parent=1 // pred_check
      _
    $region123: #{mae_forward.1} parent=1 // pred_check_branch
      %182 = sbr.rel (0) target = $region125
    $region124: #{mae_forward.1} parent=1 // pred_region
      %183 = dma.done [#allocation11], 8192
    $region125: #{mae_forward.1} parent=1 // pred_fallthru
      _
    // Predicated region
    $region126: #{mae_forward.1} parent=1 // pred_check
      _
    $region127: #{mae_forward.1} parent=1 // pred_check_branch
      %185 = sbr.rel (0) target = $region129
    $region128: #{mae_forward.1} parent=1 // pred_region
      %186 = dma.done [#allocation14], 3072
    $region129: #{mae_forward.1} parent=1 // pred_fallthru
      _
    // Predicated region
    $region130: #{mae_forward.1} parent=1 // pred_check
      _
    $region131: #{mae_forward.1} parent=1 // pred_check_branch
      %188 = sbr.rel (0) target = $region133
    $region132: #{mae_forward.1} parent=1 // pred_region
      %189 = dma.done [#allocation14], 3072
    $region133: #{mae_forward.1} parent=1 // pred_fallthru
      _
    // Predicated region
    $region134: #{mae_forward.1} parent=1 // pred_check
      _
    $region135: #{mae_forward.1} parent=1 // pred_check_branch
      %191 = sbr.rel (0) target = $region137
    $region136: #{mae_forward.1} parent=1 // pred_region
      %192 = dma.done [#allocation17], 3072
    $region137: #{mae_forward.1} parent=1 // pred_fallthru
      _
    %194 = vst [vmem:[#allocation2] sm:$0xff] 0.0
    %195 = vst [vmem:[#allocation2 + $0x8] sm:$0xff] 0.0
    %196 = vst [vmem:[#allocation2 + $0x10] sm:$0xff] 0.0
    %197 = vst [vmem:[#allocation2 + $0x18] sm:$0xff] 0.0
    %v198 = vld [vmem:[%s0] sm:$0xff]
    %v199 = vld [vmem:[%s0 + $0x8] sm:$0xff]
    %v200 = vld [vmem:[%s0 + $0x10] sm:$0xff]
    %v201 = vld [vmem:[%s0 + $0x18] sm:$0xff]
    %vm202 = vcmask 23552
    %203 = vst.msk [vmem:[#allocation2] sm:$0xff] %vm202, %v198
    %204 = vst.msk [vmem:[#allocation2 + $0x8] sm:$0xff] %vm202, %v199
    %205 = vst.msk [vmem:[#allocation2 + $0x10] sm:$0xff] %vm202, %v200
    %206 = vst.msk [vmem:[#allocation2 + $0x18] sm:$0xff] %vm202, %v201
    %207 = vst [vmem:[#allocation3] sm:$0xff] 0.0
    %208 = vst [vmem:[#allocation3 + $0x8] sm:$0xff] 0.0
    %209 = vst [vmem:[#allocation3 + $0x10] sm:$0xff] 0.0
    %210 = vst [vmem:[#allocation3 + $0x18] sm:$0xff] 0.0
    %211 = vst [vmem:[#allocation3 + $0x20] sm:$0xff] 0.0
    %212 = vst [vmem:[#allocation3 + $0x28] sm:$0xff] 0.0
    %v213 = vld [vmem:[#allocation2] sm:$0xff]
    %v214 = vld [vmem:[#allocation2 + $0x8] sm:$0xff]
    %v215 = vld [vmem:[#allocation2 + $0x10] sm:$0xff]
    %v216 = vld [vmem:[#allocation2 + $0x18] sm:$0xff]
    %v221 = vcombine.high %v213, %v213
    %v223 = vunpack.c.l.s4 1983009808
    %v224 = vunpack.c.0.s8 %v223
    %v225 = vlaneseq
    %v226 = vshrl.u32 %v225, 7
    %v227 = vsub.s32 %v224, %v226
    %v228 = vrot.slane %v213, %v227
    %v230 = vunpack.c.l.s4 1983009808
    %v231 = vunpack.c.0.s8 %v230
    %v232 = vlaneseq
    %v233 = vshrl.u32 %v232, 7
    %v234 = vsub.s32 %v231, %v233
    %v235 = vrot.slane %v221, %v234
    %v236 = vcombine.high %v228, %v228
    %v237 = vcombine.high %v235, %v235
    %v238 = vcombine.high %v214, %v214
    %v240 = vunpack.c.l.s4 1983009808
    %v241 = vunpack.c.0.s8 %v240
    %v242 = vlaneseq
    %v243 = vshrl.u32 %v242, 7
    %v244 = vsub.s32 %v241, %v243
    %v245 = vrot.slane %v214, %v244
    %v247 = vunpack.c.l.s4 1983009808
    %v248 = vunpack.c.0.s8 %v247
    %v249 = vlaneseq
    %v250 = vshrl.u32 %v249, 7
    %v251 = vsub.s32 %v248, %v250
    %v252 = vrot.slane %v238, %v251
    %v253 = vcombine.high %v245, %v245
    %v254 = vcombine.high %v215, %v215
    %v256 = vunpack.c.l.s4 1983009808
    %v257 = vunpack.c.0.s8 %v256
    %v258 = vlaneseq
    %v259 = vshrl.u32 %v258, 7
    %v260 = vsub.s32 %v257, %v259
    %v261 = vrot.slane %v215, %v260
    %v263 = vunpack.c.l.s4 1983009808
    %v264 = vunpack.c.0.s8 %v263
    %v265 = vlaneseq
    %v266 = vshrl.u32 %v265, 7
    %v267 = vsub.s32 %v264, %v266
    %v268 = vrot.slane %v254, %v267
    %v269 = vcombine.high %v261, %v261
    %v270 = vcombine.high %v268, %v268
    %v271 = vcombine.high %v216, %v216
    %v273 = vunpack.c.l.s4 1983009808
    %v274 = vunpack.c.0.s8 %v273
    %v275 = vlaneseq
    %v276 = vshrl.u32 %v275, 7
    %v277 = vsub.s32 %v274, %v276
    %v278 = vrot.slane %v216, %v277
    %v280 = vunpack.c.l.s4 1983009808
    %v281 = vunpack.c.0.s8 %v280
    %v282 = vlaneseq
    %v283 = vshrl.u32 %v282, 7
    %v284 = vsub.s32 %v281, %v283
    %v285 = vrot.slane %v271, %v284
    %v286 = vcombine.high %v278, %v278
    %v287 = vcombine.low %v228, %v236
    %v288 = vcombine.low %v235, %v237
    %v290 = vunpack.c.l.s4 1983009808
    %v291 = vunpack.c.0.s8 %v290
    %v292 = vlaneseq
    %v293 = vshrl.u32 %v292, 7
    %v294 = vsub.s32 %v291, %v293
    %v295 = vrot.slane %v287, %v294
    %v297 = vunpack.c.l.s4 1983009808
    %v298 = vunpack.c.0.s8 %v297
    %v299 = vlaneseq
    %v300 = vshrl.u32 %v299, 7
    %v301 = vsub.s32 %v298, %v300
    %v302 = vrot.slane %v288, %v301
    %v303 = vcombine.low %v295, %v302
    %v304 = vcombine.low %v245, %v253
    %v305 = vcombine.low %v252, %v261
    %v307 = vunpack.c.l.s4 1983009808
    %v308 = vunpack.c.0.s8 %v307
    %v309 = vlaneseq
    %v310 = vshrl.u32 %v309, 7
    %v311 = vsub.s32 %v308, %v310
    %v312 = vrot.slane %v304, %v311
    %v314 = vunpack.c.l.s4 1983009808
    %v315 = vunpack.c.0.s8 %v314
    %v316 = vlaneseq
    %v317 = vshrl.u32 %v316, 7
    %v318 = vsub.s32 %v315, %v317
    %v319 = vrot.slane %v305, %v318
    %v320 = vcombine.low %v312, %v319
    %v321 = vcombine.low %v269, %v268
    %v322 = vcombine.low %v270, %v278
    %v324 = vunpack.c.l.s4 1983009808
    %v325 = vunpack.c.0.s8 %v324
    %v326 = vlaneseq
    %v327 = vshrl.u32 %v326, 7
    %v328 = vsub.s32 %v325, %v327
    %v329 = vrot.slane %v321, %v328
    %v331 = vunpack.c.l.s4 1983009808
    %v332 = vunpack.c.0.s8 %v331
    %v333 = vlaneseq
    %v334 = vshrl.u32 %v333, 7
    %v335 = vsub.s32 %v332, %v334
    %v336 = vrot.slane %v322, %v335
    %v337 = vcombine.low %v329, %v336
    %v338 = vcombine.low %v286, %v285
    %v340 = vunpack.c.l.s4 1983009808
    %v341 = vunpack.c.0.s8 %v340
    %v342 = vlaneseq
    %v343 = vshrl.u32 %v342, 7
    %v344 = vsub.s32 %v341, %v343
    %v345 = vrot.slane %v338, %v344
    %v350 = vpack.c.bf16 %v320, %v303
    %v351 = vpack.c.bf16 %v345, %v337
    %v352 = vld [vmem:[#allocation4] sm:$0xf]
    %v353 = vld [vmem:[#allocation4 + $0x4] sm:$0xf]
    %v354 = vld [vmem:[#allocation4 + $0x8] sm:$0xf]
    %v355 = vld [vmem:[#allocation4 + $0xc] sm:$0xf]
    %v356 = vld [vmem:[#allocation4 + $0x10] sm:$0xf]
    %v357 = vld [vmem:[#allocation4 + $0x14] sm:$0xf]
    %v358 = vld [vmem:[#allocation4 + $0x18] sm:$0xf]
    %v359 = vld [vmem:[#allocation4 + $0x1c] sm:$0xf]
    %v360 = vld [vmem:[#allocation4 + $0x20] sm:$0xf]
    %v361 = vld [vmem:[#allocation4 + $0x24] sm:$0xf]
    %v362 = vld [vmem:[#allocation4 + $0x28] sm:$0xf]
    %v363 = vld [vmem:[#allocation4 + $0x2c] sm:$0xf]
    %v364 = vld [vmem:[#allocation4 + $0x30] sm:$0xf]
    %v365 = vld [vmem:[#allocation4 + $0x34] sm:$0xf]
    %v366 = vld [vmem:[#allocation4 + $0x38] sm:$0xf]
    %v367 = vld [vmem:[#allocation4 + $0x3c] sm:$0xf]
    %v368 = vcombine.high %v252, %v252
    %v369 = vcombine.high %v285, %v285
    %vm370 = vcmask 1040384
    %vm371 = vcmask 1042434
    %vm372 = vmor %vm370, %vm371
    %vm373 = vcmask 1044484
    %vm374 = vmor %vm372, %vm373
    %vm375 = vcmask 1046534
    %vm376 = vmor %vm374, %vm375
    %v377 = vrot.slane %v228, 7
    %v378 = vrot.slane %v377, 2
    %v379 = vrot.slane %v236, 7
    %v380 = vsel %vm376, %v378, %v379
    %v381 = vrot.slane %v379, 2
    %v382 = vrot.slane %v235, 7
    %v383 = vsel %vm376, %v381, %v382
    %v384 = vrot.slane %v382, 2
    %v385 = vrot.slane %v237, 7
    %v386 = vsel %vm376, %v384, %v385
    %v387 = vrot.slane %v385, 2
    %v388 = vrot.slane %v245, 7
    %v389 = vsel %vm376, %v387, %v388
    %v390 = vrot.slane %v388, 2
    %v391 = vrot.slane %v253, 7
    %v392 = vsel %vm376, %v390, %v391
    %v393 = vrot.slane %v391, 2
    %v394 = vrot.slane %v252, 7
    %v395 = vsel %vm376, %v393, %v394
    %v396 = vrot.slane %v394, 2
    %v397 = vrot.slane %v368, 7
    %v398 = vsel %vm376, %v396, %v397
    %v399 = vrot.slane %v261, 7
    %v400 = vrot.slane %v399, 2
    %v401 = vrot.slane %v269, 7
    %v402 = vsel %vm376, %v400, %v401
    %v403 = vrot.slane %v401, 2
    %v404 = vrot.slane %v268, 7
    %v405 = vsel %vm376, %v403, %v404
    %v406 = vrot.slane %v404, 2
    %v407 = vrot.slane %v270, 7
    %v408 = vsel %vm376, %v406, %v407
    %v409 = vrot.slane %v407, 2
    %v410 = vrot.slane %v278, 7
    %v411 = vsel %vm376, %v409, %v410
    %v412 = vrot.slane %v410, 2
    %v413 = vrot.slane %v286, 7
    %v414 = vsel %vm376, %v412, %v413
    %v415 = vrot.slane %v413, 2
    %v416 = vrot.slane %v285, 7
    %v417 = vsel %vm376, %v415, %v416
    %v418 = vrot.slane %v416, 2
    %v419 = vrot.slane %v369, 7
    %v420 = vsel %vm376, %v418, %v419
    %v421 = vcombine.low %v380, %v383
    %v422 = vcombine.low %v386, %v389
    %v424 = vunpack.c.l.s4 1983009808
    %v425 = vunpack.c.0.s8 %v424
    %v426 = vlaneseq
    %v427 = vshrl.u32 %v426, 7
    %v428 = vsub.s32 %v425, %v427
    %v429 = vrot.slane %v421, %v428
    %v431 = vunpack.c.l.s4 1983009808
    %v432 = vunpack.c.0.s8 %v431
    %v433 = vlaneseq
    %v434 = vshrl.u32 %v433, 7
    %v435 = vsub.s32 %v432, %v434
    %v436 = vrot.slane %v422, %v435
    %v437 = vcombine.low %v429, %v436
    %v438 = vcombine.low %v392, %v395
    %v439 = vcombine.low %v398, %v402
    %v441 = vunpack.c.l.s4 1983009808
    %v442 = vunpack.c.0.s8 %v441
    %v443 = vlaneseq
    %v444 = vshrl.u32 %v443, 7
    %v445 = vsub.s32 %v442, %v444
    %v446 = vrot.slane %v438, %v445
    %v448 = vunpack.c.l.s4 1983009808
    %v449 = vunpack.c.0.s8 %v448
    %v450 = vlaneseq
    %v451 = vshrl.u32 %v450, 7
    %v452 = vsub.s32 %v449, %v451
    %v453 = vrot.slane %v439, %v452
    %v454 = vcombine.low %v446, %v453
    %v455 = vcombine.low %v405, %v408
    %v456 = vcombine.low %v411, %v414
    %v458 = vunpack.c.l.s4 1983009808
    %v459 = vunpack.c.0.s8 %v458
    %v460 = vlaneseq
    %v461 = vshrl.u32 %v460, 7
    %v462 = vsub.s32 %v459, %v461
    %v463 = vrot.slane %v455, %v462
    %v465 = vunpack.c.l.s4 1983009808
    %v466 = vunpack.c.0.s8 %v465
    %v467 = vlaneseq
    %v468 = vshrl.u32 %v467, 7
    %v469 = vsub.s32 %v466, %v468
    %v470 = vrot.slane %v456, %v469
    %v471 = vcombine.low %v463, %v470
    %v472 = vcombine.low %v417, %v420
    %v474 = vunpack.c.l.s4 1983009808
    %v475 = vunpack.c.0.s8 %v474
    %v476 = vlaneseq
    %v477 = vshrl.u32 %v476, 7
    %v478 = vsub.s32 %v475, %v477
    %v479 = vrot.slane %v472, %v478
    %v484 = vpack.c.bf16 %v454, %v437
    %v485 = vpack.c.bf16 %v479, %v471
    %s486 = scalar_lea.vmem [#allocation4], 64
    %v487 = vld [vmem:[%s486] sm:$0xf]
    %v488 = vld [vmem:[%s486 + $0x4] sm:$0xf]
    %v489 = vld [vmem:[%s486 + $0x8] sm:$0xf]
    %v490 = vld [vmem:[%s486 + $0xc] sm:$0xf]
    %v491 = vld [vmem:[%s486 + $0x10] sm:$0xf]
    %v492 = vld [vmem:[%s486 + $0x14] sm:$0xf]
    %v493 = vld [vmem:[%s486 + $0x18] sm:$0xf]
    %v494 = vld [vmem:[%s486 + $0x1c] sm:$0xf]
    %v495 = vld [vmem:[%s486 + $0x20] sm:$0xf]
    %v496 = vld [vmem:[%s486 + $0x24] sm:$0xf]
    %v497 = vld [vmem:[%s486 + $0x28] sm:$0xf]
    %v498 = vld [vmem:[%s486 + $0x2c] sm:$0xf]
    %v499 = vld [vmem:[%s486 + $0x30] sm:$0xf]
    %v500 = vld [vmem:[%s486 + $0x34] sm:$0xf]
    %v501 = vld [vmem:[%s486 + $0x38] sm:$0xf]
    %v502 = vld [vmem:[%s486 + $0x3c] sm:$0xf]
    %v519 = vunpack.c.l.b16 %v487
    %v520 = vunpack.c.l.b16 %v488
    %v521 = vunpack.c.l.b16 %v489
    %v522 = vunpack.c.l.b16 %v490
    %v523 = vunpack.c.l.b16 %v491
    %v524 = vunpack.c.l.b16 %v492
    %v525 = vunpack.c.l.b16 %v493
    %v526 = vunpack.c.l.b16 %v494
    %v527 = vunpack.c.l.b16 %v495
    %v528 = vunpack.c.l.b16 %v496
    %v529 = vunpack.c.l.b16 %v497
    %v530 = vunpack.c.l.b16 %v498
    %v531 = vunpack.c.l.b16 %v499
    %v532 = vunpack.c.l.b16 %v500
    %v533 = vunpack.c.l.b16 %v501
    %v534 = vunpack.c.l.b16 %v502
    %v535 = vpack.c.b16 %v520, %v519
    %v536 = vpack.c.b16 %v522, %v521
    %v537 = vpack.c.b16 %v524, %v523
    %v538 = vpack.c.b16 %v526, %v525
    %v539 = vpack.c.b16 %v528, %v527
    %v540 = vpack.c.b16 %v530, %v529
    %v541 = vpack.c.b16 %v532, %v531
    %v542 = vpack.c.b16 %v534, %v533
    %551 = vmatprep.subr.bf16.mxu0 0
    %552 = vmatpush1.bf16.msra.mxu0 %v535
    %553 = vmatprep.subr.bf16.mxu0 0
    %554 = vmatpush1.bf16.msra.mxu0 %v536
    %555 = vmatprep.subr.bf16.mxu0 0
    %556 = vmatpush1.bf16.msra.mxu0 %v537
    %557 = vmatprep.subr.bf16.mxu0 0
    %558 = vmatpush1.bf16.msra.mxu0 %v538
    %559 = vmatprep.subr.bf16.mxu0 0
    %560 = vmatpush1.bf16.msra.mxu0 %v539
    %561 = vmatprep.subr.bf16.mxu0 0
    %562 = vmatpush1.bf16.msra.mxu0 %v540
    %563 = vmatprep.subr.bf16.mxu0 0
    %564 = vmatpush1.bf16.msra.mxu0 %v541
    %565 = vmatprep.subr.bf16.mxu0 0
    %566 = vmatpush1.bf16.msra.mxu0 %v542
    %567 = vmatprep.subr.bf16.mxu0 0
    %568 = vmatpush1.bf16.msra.mxu0 0
    %569 = vmatprep.subr.bf16.mxu0 0
    %570 = vmatpush1.bf16.msra.mxu0 0
    %571 = vmatprep.subr.bf16.mxu0 0
    %572 = vmatpush1.bf16.msra.mxu0 0
    %573 = vmatprep.subr.bf16.mxu0 0
    %574 = vmatpush1.bf16.msra.mxu0 0
    %575 = vmatprep.subr.bf16.mxu0 0
    %576 = vmatpush1.bf16.msra.mxu0 0
    %577 = vmatprep.subr.bf16.mxu0 0
    %578 = vmatpush1.bf16.msra.mxu0 0
    %579 = vmatprep.subr.bf16.mxu0 0
    %580 = vmatpush1.bf16.msra.mxu0 0
    %581 = vmatprep.subr.bf16.mxu0 0
    %582 = vmatpush1.bf16.msra.mxu0 0
    %583 = vmatprep.mubr.bf16.mxu0 0
    %584 = vmatmul.mubr.bf16.gmra.mrb[0].mxu0 %v484
    %v585 = vpop.f32.mrb[0].mxu0
    %v586 = vadd.f32 0.0, %v585
    %v587 = vpop.f32.mrb[0].mxu0
    %v588 = vpop.f32.mrb[0].mxu0
    %v589 = vadd.f32 0.0, %v588
    %v590 = vpop.f32.mrb[0].mxu0
    %591 = vmatprep.mubr.bf16.mxu0 0
    %592 = vmatmul.mubr.bf16.gmra.mrb[0].mxu0 %v485
    %v593 = vpop.f32.mrb[0].mxu0
    %v594 = vadd.f32 0.0, %v593
    %v595 = vpop.f32.mrb[0].mxu0
    %v596 = vpop.f32.mrb[0].mxu0
    %v597 = vadd.f32 0.0, %v596
    %v598 = vpop.f32.mrb[0].mxu0
    %599 = vdwg.mxu0
    %v616 = vunpack.c.l.b16 %v352
    %v617 = vunpack.c.l.b16 %v353
    %v618 = vunpack.c.l.b16 %v354
    %v619 = vunpack.c.l.b16 %v355
    %v620 = vunpack.c.l.b16 %v356
    %v621 = vunpack.c.l.b16 %v357
    %v622 = vunpack.c.l.b16 %v358
    %v623 = vunpack.c.l.b16 %v359
    %v624 = vunpack.c.l.b16 %v360
    %v625 = vunpack.c.l.b16 %v361
    %v626 = vunpack.c.l.b16 %v362
    %v627 = vunpack.c.l.b16 %v363
    %v628 = vunpack.c.l.b16 %v364
    %v629 = vunpack.c.l.b16 %v365
    %v630 = vunpack.c.l.b16 %v366
    %v631 = vunpack.c.l.b16 %v367
    %v632 = vpack.c.b16 %v617, %v616
    %v633 = vpack.c.b16 %v619, %v618
    %v634 = vpack.c.b16 %v621, %v620
    %v635 = vpack.c.b16 %v623, %v622
    %v636 = vpack.c.b16 %v625, %v624
    %v637 = vpack.c.b16 %v627, %v626
    %v638 = vpack.c.b16 %v629, %v628
    %v639 = vpack.c.b16 %v631, %v630
    %648 = vmatprep.subr.bf16.mxu0 0
    %649 = vmatpush1.bf16.msra.mxu0 %v632
    %650 = vmatprep.subr.bf16.mxu0 0
    %651 = vmatpush1.bf16.msra.mxu0 %v633
    %652 = vmatprep.subr.bf16.mxu0 0
    %653 = vmatpush1.bf16.msra.mxu0 %v634
    %654 = vmatprep.subr.bf16.mxu0 0
    %655 = vmatpush1.bf16.msra.mxu0 %v635
    %656 = vmatprep.subr.bf16.mxu0 0
    %657 = vmatpush1.bf16.msra.mxu0 %v636
    %658 = vmatprep.subr.bf16.mxu0 0
    %659 = vmatpush1.bf16.msra.mxu0 %v637
    %660 = vmatprep.subr.bf16.mxu0 0
    %661 = vmatpush1.bf16.msra.mxu0 %v638
    %662 = vmatprep.subr.bf16.mxu0 0
    %663 = vmatpush1.bf16.msra.mxu0 %v639
    %664 = vmatprep.subr.bf16.mxu0 0
    %665 = vmatpush1.bf16.msra.mxu0 0
    %666 = vmatprep.subr.bf16.mxu0 0
    %667 = vmatpush1.bf16.msra.mxu0 0
    %668 = vmatprep.subr.bf16.mxu0 0
    %669 = vmatpush1.bf16.msra.mxu0 0
    %670 = vmatprep.subr.bf16.mxu0 0
    %671 = vmatpush1.bf16.msra.mxu0 0
    %672 = vmatprep.subr.bf16.mxu0 0
    %673 = vmatpush1.bf16.msra.mxu0 0
    %674 = vmatprep.subr.bf16.mxu0 0
    %675 = vmatpush1.bf16.msra.mxu0 0
    %676 = vmatprep.subr.bf16.mxu0 0
    %677 = vmatpush1.bf16.msra.mxu0 0
    %678 = vmatprep.subr.bf16.mxu0 0
    %679 = vmatpush1.bf16.msra.mxu0 0
    %680 = vmatprep.mubr.bf16.mxu0 0
    %681 = vmatmul.mubr.bf16.gmra.mrb[0].mxu0 %v350
    %v682 = vpop.f32.mrb[0].mxu0
    %v683 = vadd.f32 %v586, %v682
    %v684 = vpop.f32.mrb[0].mxu0
    %v685 = vpop.f32.mrb[0].mxu0
    %v686 = vadd.f32 %v589, %v685
    %v687 = vpop.f32.mrb[0].mxu0
    %688 = vmatprep.mubr.bf16.mxu0 0
    %689 = vmatmul.mubr.bf16.gmra.mrb[0].mxu0 %v351
    %v690 = vpop.f32.mrb[0].mxu0
    %v691 = vadd.f32 %v594, %v690
    %v692 = vpop.f32.mrb[0].mxu0
    %v693 = vpop.f32.mrb[0].mxu0
    %v694 = vadd.f32 %v597, %v693
    %v695 = vpop.f32.mrb[0].mxu0
    %696 = vdwg.mxu0
    %v697 = vcombine.low %v236, %v235
    %v698 = vcombine.low %v237, %v245
    %v700 = vunpack.c.l.s4 1983009808
    %v701 = vunpack.c.0.s8 %v700
    %v702 = vlaneseq
    %v703 = vshrl.u32 %v702, 7
    %v704 = vsub.s32 %v701, %v703
    %v705 = vrot.slane %v697, %v704
    %v707 = vunpack.c.l.s4 1983009808
    %v708 = vunpack.c.0.s8 %v707
    %v709 = vlaneseq
    %v710 = vshrl.u32 %v709, 7
    %v711 = vsub.s32 %v708, %v710
    %v712 = vrot.slane %v698, %v711
    %v713 = vcombine.low %v705, %v712
    %v714 = vcombine.low %v253, %v252
    %v715 = vcombine.low %v368, %v269
    %v717 = vunpack.c.l.s4 1983009808
    %v718 = vunpack.c.0.s8 %v717
    %v719 = vlaneseq
    %v720 = vshrl.u32 %v719, 7
    %v721 = vsub.s32 %v718, %v720
    %v722 = vrot.slane %v714, %v721
    %v724 = vunpack.c.l.s4 1983009808
    %v725 = vunpack.c.0.s8 %v724
    %v726 = vlaneseq
    %v727 = vshrl.u32 %v726, 7
    %v728 = vsub.s32 %v725, %v727
    %v729 = vrot.slane %v715, %v728
    %v730 = vcombine.low %v722, %v729
    %v731 = vcombine.low %v268, %v270
    %v732 = vcombine.low %v278, %v286
    %v734 = vunpack.c.l.s4 1983009808
    %v735 = vunpack.c.0.s8 %v734
    %v736 = vlaneseq
    %v737 = vshrl.u32 %v736, 7
    %v738 = vsub.s32 %v735, %v737
    %v739 = vrot.slane %v731, %v738
    %v741 = vunpack.c.l.s4 1983009808
    %v742 = vunpack.c.0.s8 %v741
    %v743 = vlaneseq
    %v744 = vshrl.u32 %v743, 7
    %v745 = vsub.s32 %v742, %v744
    %v746 = vrot.slane %v732, %v745
    %v747 = vcombine.low %v739, %v746
    %v748 = vcombine.low %v285, %v369
    %v750 = vunpack.c.l.s4 1983009808
    %v751 = vunpack.c.0.s8 %v750
    %v752 = vlaneseq
    %v753 = vshrl.u32 %v752, 7
    %v754 = vsub.s32 %v751, %v753
    %v755 = vrot.slane %v748, %v754
    %v760 = vpack.c.bf16 %v730, %v713
    %v761 = vpack.c.bf16 %v755, %v747
    %s762 = scalar_lea.vmem [#allocation4], 128
    %v763 = vld [vmem:[%s762] sm:$0xf]
    %v764 = vld [vmem:[%s762 + $0x4] sm:$0xf]
    %v765 = vld [vmem:[%s762 + $0x8] sm:$0xf]
    %v766 = vld [vmem:[%s762 + $0xc] sm:$0xf]
    %v767 = vld [vmem:[%s762 + $0x10] sm:$0xf]
    %v768 = vld [vmem:[%s762 + $0x14] sm:$0xf]
    %v769 = vld [vmem:[%s762 + $0x18] sm:$0xf]
    %v770 = vld [vmem:[%s762 + $0x1c] sm:$0xf]
    %v771 = vld [vmem:[%s762 + $0x20] sm:$0xf]
    %v772 = vld [vmem:[%s762 + $0x24] sm:$0xf]
    %v773 = vld [vmem:[%s762 + $0x28] sm:$0xf]
    %v774 = vld [vmem:[%s762 + $0x2c] sm:$0xf]
    %v775 = vld [vmem:[%s762 + $0x30] sm:$0xf]
    %v776 = vld [vmem:[%s762 + $0x34] sm:$0xf]
    %v777 = vld [vmem:[%s762 + $0x38] sm:$0xf]
    %v778 = vld [vmem:[%s762 + $0x3c] sm:$0xf]
    %v795 = vunpack.c.l.b16 %v763
    %v796 = vunpack.c.l.b16 %v764
    %v797 = vunpack.c.l.b16 %v765
    %v798 = vunpack.c.l.b16 %v766
    %v799 = vunpack.c.l.b16 %v767
    %v800 = vunpack.c.l.b16 %v768
    %v801 = vunpack.c.l.b16 %v769
    %v802 = vunpack.c.l.b16 %v770
    %v803 = vunpack.c.l.b16 %v771
    %v804 = vunpack.c.l.b16 %v772
    %v805 = vunpack.c.l.b16 %v773
    %v806 = vunpack.c.l.b16 %v774
    %v807 = vunpack.c.l.b16 %v775
    %v808 = vunpack.c.l.b16 %v776
    %v809 = vunpack.c.l.b16 %v777
    %v810 = vunpack.c.l.b16 %v778
    %v811 = vpack.c.b16 %v796, %v795
    %v812 = vpack.c.b16 %v798, %v797
    %v813 = vpack.c.b16 %v800, %v799
    %v814 = vpack.c.b16 %v802, %v801
    %v815 = vpack.c.b16 %v804, %v803
    %v816 = vpack.c.b16 %v806, %v805
    %v817 = vpack.c.b16 %v808, %v807
    %v818 = vpack.c.b16 %v810, %v809
    %827 = vmatprep.subr.bf16.mxu0 0
    %828 = vmatpush1.bf16.msra.mxu0 %v811
    %829 = vmatprep.subr.bf16.mxu0 0
    %830 = vmatpush1.bf16.msra.mxu0 %v812
    %831 = vmatprep.subr.bf16.mxu0 0
    %832 = vmatpush1.bf16.msra.mxu0 %v813
    %833 = vmatprep.subr.bf16.mxu0 0
    %834 = vmatpush1.bf16.msra.mxu0 %v814
    %835 = vmatprep.subr.bf16.mxu0 0
    %836 = vmatpush1.bf16.msra.mxu0 %v815
    %837 = vmatprep.subr.bf16.mxu0 0
    %838 = vmatpush1.bf16.msra.mxu0 %v816
    %839 = vmatprep.subr.bf16.mxu0 0
    %840 = vmatpush1.bf16.msra.mxu0 %v817
    %841 = vmatprep.subr.bf16.mxu0 0
    %842 = vmatpush1.bf16.msra.mxu0 %v818
    %843 = vmatprep.subr.bf16.mxu0 0
    %844 = vmatpush1.bf16.msra.mxu0 0
    %845 = vmatprep.subr.bf16.mxu0 0
    %846 = vmatpush1.bf16.msra.mxu0 0
    %847 = vmatprep.subr.bf16.mxu0 0
    %848 = vmatpush1.bf16.msra.mxu0 0
    %849 = vmatprep.subr.bf16.mxu0 0
    %850 = vmatpush1.bf16.msra.mxu0 0
    %851 = vmatprep.subr.bf16.mxu0 0
    %852 = vmatpush1.bf16.msra.mxu0 0
    %853 = vmatprep.subr.bf16.mxu0 0
    %854 = vmatpush1.bf16.msra.mxu0 0
    %855 = vmatprep.subr.bf16.mxu0 0
    %856 = vmatpush1.bf16.msra.mxu0 0
    %857 = vmatprep.subr.bf16.mxu0 0
    %858 = vmatpush1.bf16.msra.mxu0 0
    %859 = vmatprep.mubr.bf16.mxu0 0
    %860 = vmatmul.mubr.bf16.gmra.mrb[0].mxu0 %v760
    %v861 = vpop.f32.mrb[0].mxu0
    %v862 = vadd.f32 0.0, %v861
    %v863 = vpop.f32.mrb[0].mxu0
    %v864 = vpop.f32.mrb[0].mxu0
    %v865 = vadd.f32 0.0, %v864
    %v866 = vpop.f32.mrb[0].mxu0
    %867 = vmatprep.mubr.bf16.mxu0 0
    %868 = vmatmul.mubr.bf16.gmra.mrb[0].mxu0 %v761
    %v869 = vpop.f32.mrb[0].mxu0
    %v870 = vadd.f32 0.0, %v869
    %v871 = vpop.f32.mrb[0].mxu0
    %v872 = vpop.f32.mrb[0].mxu0
    %v873 = vadd.f32 0.0, %v872
    %v874 = vpop.f32.mrb[0].mxu0
    %875 = vdwg.mxu0
    %v876 = vadd.f32 %v683, %v862
    %v877 = vadd.f32 %v686, %v865
    %v878 = vadd.f32 %v691, %v870
    %v879 = vadd.f32 %v694, %v873
    %v880 = vld [vmem:[%s2] sm:$0x1]
    %v882 = vlaneseq
    %v883 = vshrl.u32 %v882, 7
    %v884 = vsub.s32 0, %v883
    %v885 = vrot.slane %v880, %v884
    %v887 = vadd.f32 %v876, %v885
    %v888 = vadd.f32 %v877, %v885
    %v889 = vadd.f32 %v878, %v885
    %v890 = vadd.f32 %v879, %v885
    %v891 = vadd.f32 %v887, %v888
    %v892 = vadd.f32 %v891, %v889
    %vm893 = vcmask 1043456
    %v894 = vsel %vm893, %v890, 0.0
    %v895 = vadd.f32 %v892, %v894
    %v896 = vrot.slane %v895, 4
    %v897 = vadd.f32 %v895, %v896
    %v898 = vrot.slane %v897, 2
    %v899 = vadd.f32 %v897, %v898
    %v900 = vrot.slane %v899, 1
    %v901 = vadd.f32 %v899, %v900
    %v902 = vrcp.pop 28.0
    %v903 = vmul.f32 %v901, %v902
    %v904 = vsub.f32 %v887, %v903
    %v905 = vsub.f32 %v888, %v903
    %v906 = vsub.f32 %v889, %v903
    %v907 = vsub.f32 %v890, %v903
    %v908 = vmul.f32 %v904, %v904
    %v909 = vmul.f32 %v905, %v905
    %v910 = vmul.f32 %v906, %v906
    %v911 = vmul.f32 %v907, %v907
    %v912 = vadd.f32 %v908, %v909
    %v913 = vadd.f32 %v912, %v910
    %v914 = vsel %vm893, %v911, 0.0
    %v915 = vadd.f32 %v913, %v914
    %v916 = vrot.slane %v915, 4
    %v917 = vadd.f32 %v915, %v916
    %v918 = vrot.slane %v917, 2
    %v919 = vadd.f32 %v917, %v918
    %v920 = vrot.slane %v919, 1
    %v921 = vadd.f32 %v919, %v920
    %v922 = vmul.f32 %v921, %v902
    %v923 = vadd.f32 %v922, 1e-05
    %v924 = vrsqrt.pop %v923
    %v925 = vmul.f32 %v904, %v924
    %v926 = vmul.f32 %v905, %v924
    %v927 = vmul.f32 %v906, %v924
    %v928 = vmul.f32 %v907, %v924
    %v929 = vld [vmem:[%s3] sm:$0x1]
    %v931 = vlaneseq
    %v932 = vshrl.u32 %v931, 7
    %v933 = vsub.s32 0, %v932
    %v934 = vrot.slane %v929, %v933
    %v936 = vmul.f32 %v925, %v934
    %v937 = vmul.f32 %v926, %v934
    %v938 = vmul.f32 %v927, %v934
    %v939 = vmul.f32 %v928, %v934
    %v940 = vld [vmem:[%s4] sm:$0x1]
    %v942 = vlaneseq
    %v943 = vshrl.u32 %v942, 7
    %v944 = vsub.s32 0, %v943
    %v945 = vrot.slane %v940, %v944
    %v947 = vadd.f32 %v936, %v945
    %v948 = vadd.f32 %v937, %v945
    %v949 = vadd.f32 %v938, %v945
    %v950 = vadd.f32 %v939, %v945
    %vm951 = vcmp.ge.f32.partialorder %v947, 0.0
    %vm952 = vcmp.ge.f32.partialorder %v948, 0.0
    %vm953 = vcmp.ge.f32.partialorder %v949, 0.0
    %vm954 = vcmp.ge.f32.partialorder %v950, 0.0
    %v955 = vmul.f32 %v947, 0.2
    %v956 = vmul.f32 %v948, 0.2
    %v957 = vmul.f32 %v949, 0.2
    %v958 = vmul.f32 %v950, 0.2
    %v959 = vsel %vm951, %v947, %v955
    %v960 = vsel %vm952, %v948, %v956
    %v961 = vsel %vm953, %v949, %v957
    %v962 = vsel %vm954, %v950, %v958
    %v967 = vcombine.high %v959, %v959
    %v969 = vunpack.c.l.s4 1983009808
    %v970 = vunpack.c.0.s8 %v969
    %v971 = vlaneseq
    %v972 = vshrl.u32 %v971, 7
    %v973 = vsub.s32 %v970, %v972
    %v974 = vrot.slane %v959, %v973
    %v976 = vunpack.c.l.s4 1983009808
    %v977 = vunpack.c.0.s8 %v976
    %v978 = vlaneseq
    %v979 = vshrl.u32 %v978, 7
    %v980 = vsub.s32 %v977, %v979
    %v981 = vrot.slane %v967, %v980
    %v982 = vcombine.high %v974, %v974
    %v983 = vcombine.high %v981, %v981
    %v984 = vcombine.high %v960, %v960
    %v986 = vunpack.c.l.s4 1983009808
    %v987 = vunpack.c.0.s8 %v986
    %v988 = vlaneseq
    %v989 = vshrl.u32 %v988, 7
    %v990 = vsub.s32 %v987, %v989
    %v991 = vrot.slane %v960, %v990
    %v993 = vunpack.c.l.s4 1983009808
    %v994 = vunpack.c.0.s8 %v993
    %v995 = vlaneseq
    %v996 = vshrl.u32 %v995, 7
    %v997 = vsub.s32 %v994, %v996
    %v998 = vrot.slane %v984, %v997
    %v999 = vcombine.high %v991, %v991
    %v1000 = vcombine.high %v998, %v998
    %v1001 = vcombine.high %v961, %v961
    %v1003 = vunpack.c.l.s4 1983009808
    %v1004 = vunpack.c.0.s8 %v1003
    %v1005 = vlaneseq
    %v1006 = vshrl.u32 %v1005, 7
    %v1007 = vsub.s32 %v1004, %v1006
    %v1008 = vrot.slane %v961, %v1007
    %v1010 = vunpack.c.l.s4 1983009808
    %v1011 = vunpack.c.0.s8 %v1010
    %v1012 = vlaneseq
    %v1013 = vshrl.u32 %v1012, 7
    %v1014 = vsub.s32 %v1011, %v1013
    %v1015 = vrot.slane %v1001, %v1014
    %v1016 = vcombine.high %v1008, %v1008
    %v1017 = vcombine.high %v1015, %v1015
    %v1019 = vunpack.c.l.s4 1983009808
    %v1020 = vunpack.c.0.s8 %v1019
    %v1021 = vlaneseq
    %v1022 = vshrl.u32 %v1021, 7
    %v1023 = vsub.s32 %v1020, %v1022
    %v1024 = vrot.slane %v962, %v1023
    %v1025 = vcombine.high %v1024, %v1024
    %v1026 = vcombine.low %v974, %v982
    %v1027 = vcombine.low %v981, %v983
    %v1029 = vunpack.c.l.s4 1983009808
    %v1030 = vunpack.c.0.s8 %v1029
    %v1031 = vlaneseq
    %v1032 = vshrl.u32 %v1031, 7
    %v1033 = vsub.s32 %v1030, %v1032
    %v1034 = vrot.slane %v1026, %v1033
    %v1036 = vunpack.c.l.s4 1983009808
    %v1037 = vunpack.c.0.s8 %v1036
    %v1038 = vlaneseq
    %v1039 = vshrl.u32 %v1038, 7
    %v1040 = vsub.s32 %v1037, %v1039
    %v1041 = vrot.slane %v1027, %v1040
    %v1042 = vcombine.low %v1034, %v1041
    %v1043 = vcombine.low %v991, %v999
    %v1044 = vcombine.low %v1000, %v1008
    %v1046 = vunpack.c.l.s4 1983009808
    %v1047 = vunpack.c.0.s8 %v1046
    %v1048 = vlaneseq
    %v1049 = vshrl.u32 %v1048, 7
    %v1050 = vsub.s32 %v1047, %v1049
    %v1051 = vrot.slane %v1043, %v1050
    %v1053 = vunpack.c.l.s4 1983009808
    %v1054 = vunpack.c.0.s8 %v1053
    %v1055 = vlaneseq
    %v1056 = vshrl.u32 %v1055, 7
    %v1057 = vsub.s32 %v1054, %v1056
    %v1058 = vrot.slane %v1044, %v1057
    %v1059 = vcombine.low %v1051, %v1058
    %v1060 = vcombine.low %v1016, %v1015
    %v1061 = vcombine.low %v1017, %v1024
    %v1063 = vunpack.c.l.s4 1983009808
    %v1064 = vunpack.c.0.s8 %v1063
    %v1065 = vlaneseq
    %v1066 = vshrl.u32 %v1065, 7
    %v1067 = vsub.s32 %v1064, %v1066
    %v1068 = vrot.slane %v1060, %v1067
    %v1070 = vunpack.c.l.s4 1983009808
    %v1071 = vunpack.c.0.s8 %v1070
    %v1072 = vlaneseq
    %v1073 = vshrl.u32 %v1072, 7
    %v1074 = vsub.s32 %v1071, %v1073
    %v1075 = vrot.slane %v1061, %v1074
    %v1076 = vcombine.low %v1068, %v1075
    %v1080 = vpack.c.bf16 %v1059, %v1042
    %v1081 = vpack.c.bf16 %v1076, %v1076
    %v1082 = vld [vmem:[#allocation7] sm:$0xf]
    %v1083 = vld [vmem:[#allocation7 + $0x4] sm:$0xf]
    %v1084 = vld [vmem:[#allocation7 + $0x8] sm:$0xf]
    %v1085 = vld [vmem:[#allocation7 + $0xc] sm:$0xf]
    %v1086 = vld [vmem:[#allocation7 + $0x10] sm:$0xf]
    %v1087 = vld [vmem:[#allocation7 + $0x14] sm:$0xf]
    %v1088 = vld [vmem:[#allocation7 + $0x18] sm:$0xf]
    %v1089 = vld [vmem:[#allocation7 + $0x1c] sm:$0xf]
    %v1090 = vld [vmem:[#allocation7 + $0x20] sm:$0xf]
    %v1091 = vld [vmem:[#allocation7 + $0x24] sm:$0xf]
    %v1092 = vld [vmem:[#allocation7 + $0x28] sm:$0xf]
    %v1093 = vld [vmem:[#allocation7 + $0x2c] sm:$0xf]
    %v1094 = vld [vmem:[#allocation7 + $0x30] sm:$0xf]
    %v1095 = vld [vmem:[#allocation7 + $0x34] sm:$0xf]
    %v1096 = vld [vmem:[#allocation7 + $0x38] sm:$0xf]
    %v1097 = vld [vmem:[#allocation7 + $0x3c] sm:$0xf]
    %v1098 = vrot.slane %v974, 7
    %v1099 = vrot.slane %v1098, 2
    %v1100 = vrot.slane %v982, 7
    %v1101 = vsel %vm376, %v1099, %v1100
    %v1102 = vrot.slane %v1100, 2
    %v1103 = vrot.slane %v981, 7
    %v1104 = vsel %vm376, %v1102, %v1103
    %v1105 = vrot.slane %v1103, 2
    %v1106 = vrot.slane %v983, 7
    %v1107 = vsel %vm376, %v1105, %v1106
    %v1108 = vrot.slane %v1106, 2
    %v1109 = vrot.slane %v991, 7
    %v1110 = vsel %vm376, %v1108, %v1109
    %v1111 = vrot.slane %v1109, 2
    %v1112 = vrot.slane %v999, 7
    %v1113 = vsel %vm376, %v1111, %v1112
    %v1114 = vrot.slane %v1112, 2
    %v1115 = vrot.slane %v998, 7
    %v1116 = vsel %vm376, %v1114, %v1115
    %v1117 = vrot.slane %v1000, 7
    %v1118 = vrot.slane %v1117, 2
    %v1119 = vrot.slane %v1008, 7
    %v1120 = vsel %vm376, %v1118, %v1119
    %v1121 = vrot.slane %v1119, 2
    %v1122 = vrot.slane %v1016, 7
    %v1123 = vsel %vm376, %v1121, %v1122
    %v1124 = vrot.slane %v1122, 2
    %v1125 = vrot.slane %v1015, 7
    %v1126 = vsel %vm376, %v1124, %v1125
    %v1127 = vrot.slane %v1125, 2
    %v1128 = vrot.slane %v1017, 7
    %v1129 = vsel %vm376, %v1127, %v1128
    %v1130 = vrot.slane %v1128, 2
    %v1131 = vrot.slane %v1024, 7
    %v1132 = vsel %vm376, %v1130, %v1131
    %v1133 = vrot.slane %v1131, 2
    %v1134 = vrot.slane %v1025, 7
    %v1135 = vsel %vm376, %v1133, %v1134
    %v1136 = vcombine.low %v1101, %v1104
    %v1137 = vcombine.low %v1107, %v1110
    %v1139 = vunpack.c.l.s4 1983009808
    %v1140 = vunpack.c.0.s8 %v1139
    %v1141 = vlaneseq
    %v1142 = vshrl.u32 %v1141, 7
    %v1143 = vsub.s32 %v1140, %v1142
    %v1144 = vrot.slane %v1136, %v1143
    %v1146 = vunpack.c.l.s4 1983009808
    %v1147 = vunpack.c.0.s8 %v1146
    %v1148 = vlaneseq
    %v1149 = vshrl.u32 %v1148, 7
    %v1150 = vsub.s32 %v1147, %v1149
    %v1151 = vrot.slane %v1137, %v1150
    %v1152 = vcombine.low %v1144, %v1151
    %v1153 = vcombine.low %v1113, %v1116
    %v1154 = vcombine.low %v1120, %v1123
    %v1156 = vunpack.c.l.s4 1983009808
    %v1157 = vunpack.c.0.s8 %v1156
    %v1158 = vlaneseq
    %v1159 = vshrl.u32 %v1158, 7
    %v1160 = vsub.s32 %v1157, %v1159
    %v1161 = vrot.slane %v1153, %v1160
    %v1163 = vunpack.c.l.s4 1983009808
    %v1164 = vunpack.c.0.s8 %v1163
    %v1165 = vlaneseq
    %v1166 = vshrl.u32 %v1165, 7
    %v1167 = vsub.s32 %v1164, %v1166
    %v1168 = vrot.slane %v1154, %v1167
    %v1169 = vcombine.low %v1161, %v1168
    %v1170 = vcombine.low %v1126, %v1129
    %v1171 = vcombine.low %v1132, %v1135
    %v1173 = vunpack.c.l.s4 1983009808
    %v1174 = vunpack.c.0.s8 %v1173
    %v1175 = vlaneseq
    %v1176 = vshrl.u32 %v1175, 7
    %v1177 = vsub.s32 %v1174, %v1176
    %v1178 = vrot.slane %v1170, %v1177
    %v1180 = vunpack.c.l.s4 1983009808
    %v1181 = vunpack.c.0.s8 %v1180
    %v1182 = vlaneseq
    %v1183 = vshrl.u32 %v1182, 7
    %v1184 = vsub.s32 %v1181, %v1183
    %v1185 = vrot.slane %v1171, %v1184
    %v1186 = vcombine.low %v1178, %v1185
    %v1190 = vpack.c.bf16 %v1169, %v1152
    %v1191 = vpack.c.bf16 %v1186, %v1186
    %s1192 = scalar_lea.vmem [#allocation7], 64
    %v1193 = vld [vmem:[%s1192] sm:$0xf]
    %v1194 = vld [vmem:[%s1192 + $0x4] sm:$0xf]
    %v1195 = vld [vmem:[%s1192 + $0x8] sm:$0xf]
    %v1196 = vld [vmem:[%s1192 + $0xc] sm:$0xf]
    %v1197 = vld [vmem:[%s1192 + $0x10] sm:$0xf]
    %v1198 = vld [vmem:[%s1192 + $0x14] sm:$0xf]
    %v1199 = vld [vmem:[%s1192 + $0x18] sm:$0xf]
    %v1200 = vld [vmem:[%s1192 + $0x1c] sm:$0xf]
    %v1201 = vld [vmem:[%s1192 + $0x20] sm:$0xf]
    %v1202 = vld [vmem:[%s1192 + $0x24] sm:$0xf]
    %v1203 = vld [vmem:[%s1192 + $0x28] sm:$0xf]
    %v1204 = vld [vmem:[%s1192 + $0x2c] sm:$0xf]
    %v1205 = vld [vmem:[%s1192 + $0x30] sm:$0xf]
    %v1206 = vld [vmem:[%s1192 + $0x34] sm:$0xf]
    %v1207 = vld [vmem:[%s1192 + $0x38] sm:$0xf]
    %v1208 = vld [vmem:[%s1192 + $0x3c] sm:$0xf]
    %v1225 = vunpack.c.l.b16 %v1193
    %v1226 = vunpack.c.l.b16 %v1194
    %v1227 = vunpack.c.l.b16 %v1195
    %v1228 = vunpack.c.l.b16 %v1196
    %v1229 = vunpack.c.l.b16 %v1197
    %v1230 = vunpack.c.l.b16 %v1198
    %v1231 = vunpack.c.l.b16 %v1199
    %v1232 = vunpack.c.l.b16 %v1200
    %v1233 = vunpack.c.l.b16 %v1201
    %v1234 = vunpack.c.l.b16 %v1202
    %v1235 = vunpack.c.l.b16 %v1203
    %v1236 = vunpack.c.l.b16 %v1204
    %v1237 = vunpack.c.l.b16 %v1205
    %v1238 = vunpack.c.l.b16 %v1206
    %v1239 = vunpack.c.l.b16 %v1207
    %v1240 = vunpack.c.l.b16 %v1208
    %v1241 = vpack.c.b16 %v1226, %v1225
    %v1242 = vpack.c.b16 %v1228, %v1227
    %v1243 = vpack.c.b16 %v1230, %v1229
    %v1244 = vpack.c.b16 %v1232, %v1231
    %v1245 = vpack.c.b16 %v1234, %v1233
    %v1246 = vpack.c.b16 %v1236, %v1235
    %v1247 = vpack.c.b16 %v1238, %v1237
    %v1248 = vpack.c.b16 %v1240, %v1239
    %1257 = vmatprep.subr.bf16.mxu0 0
    %1258 = vmatpush1.bf16.msra.mxu0 %v1241
    %1259 = vmatprep.subr.bf16.mxu0 0
    %1260 = vmatpush1.bf16.msra.mxu0 %v1242
    %1261 = vmatprep.subr.bf16.mxu0 0
    %1262 = vmatpush1.bf16.msra.mxu0 %v1243
    %1263 = vmatprep.subr.bf16.mxu0 0
    %1264 = vmatpush1.bf16.msra.mxu0 %v1244
    %1265 = vmatprep.subr.bf16.mxu0 0
    %1266 = vmatpush1.bf16.msra.mxu0 %v1245
    %1267 = vmatprep.subr.bf16.mxu0 0
    %1268 = vmatpush1.bf16.msra.mxu0 %v1246
    %1269 = vmatprep.subr.bf16.mxu0 0
    %1270 = vmatpush1.bf16.msra.mxu0 %v1247
    %1271 = vmatprep.subr.bf16.mxu0 0
    %1272 = vmatpush1.bf16.msra.mxu0 %v1248
    %1273 = vmatprep.subr.bf16.mxu0 0
    %1274 = vmatpush1.bf16.msra.mxu0 0
    %1275 = vmatprep.subr.bf16.mxu0 0
    %1276 = vmatpush1.bf16.msra.mxu0 0
    %1277 = vmatprep.subr.bf16.mxu0 0
    %1278 = vmatpush1.bf16.msra.mxu0 0
    %1279 = vmatprep.subr.bf16.mxu0 0
    %1280 = vmatpush1.bf16.msra.mxu0 0
    %1281 = vmatprep.subr.bf16.mxu0 0
    %1282 = vmatpush1.bf16.msra.mxu0 0
    %1283 = vmatprep.subr.bf16.mxu0 0
    %1284 = vmatpush1.bf16.msra.mxu0 0
    %1285 = vmatprep.subr.bf16.mxu0 0
    %1286 = vmatpush1.bf16.msra.mxu0 0
    %1287 = vmatprep.subr.bf16.mxu0 0
    %1288 = vmatpush1.bf16.msra.mxu0 0
    %1289 = vmatprep.mubr.bf16.mxu0 0
    %1290 = vmatmul.mubr.bf16.gmra.mrb[0].mxu0 %v1190
    %v1291 = vpop.f32.mrb[0].mxu0
    %v1292 = vadd.f32 0.0, %v1291
    %v1293 = vpop.f32.mrb[0].mxu0
    %v1294 = vpop.f32.mrb[0].mxu0
    %v1295 = vadd.f32 0.0, %v1294
    %v1296 = vpop.f32.mrb[0].mxu0
    %1297 = vmatprep.mubr.bf16.mxu0 0
    %1298 = vmatmul.mubr.bf16.gmra.mrb[0].mxu0 %v1191
    %v1299 = vpop.f32.mrb[0].mxu0
    %v1300 = vadd.f32 0.0, %v1299
    %v1301 = vpop.f32.mrb[0].mxu0
    %v1302 = vpop.f32.mrb[0].mxu0
    %v1303 = vpop.f32.mrb[0].mxu0
    %1304 = vdwg.mxu0
    %v1321 = vunpack.c.l.b16 %v1082
    %v1322 = vunpack.c.l.b16 %v1083
    %v1323 = vunpack.c.l.b16 %v1084
    %v1324 = vunpack.c.l.b16 %v1085
    %v1325 = vunpack.c.l.b16 %v1086
    %v1326 = vunpack.c.l.b16 %v1087
    %v1327 = vunpack.c.l.b16 %v1088
    %v1328 = vunpack.c.l.b16 %v1089
    %v1329 = vunpack.c.l.b16 %v1090
    %v1330 = vunpack.c.l.b16 %v1091
    %v1331 = vunpack.c.l.b16 %v1092
    %v1332 = vunpack.c.l.b16 %v1093
    %v1333 = vunpack.c.l.b16 %v1094
    %v1334 = vunpack.c.l.b16 %v1095
    %v1335 = vunpack.c.l.b16 %v1096
    %v1336 = vunpack.c.l.b16 %v1097
    %v1337 = vpack.c.b16 %v1322, %v1321
    %v1338 = vpack.c.b16 %v1324, %v1323
    %v1339 = vpack.c.b16 %v1326, %v1325
    %v1340 = vpack.c.b16 %v1328, %v1327
    %v1341 = vpack.c.b16 %v1330, %v1329
    %v1342 = vpack.c.b16 %v1332, %v1331
    %v1343 = vpack.c.b16 %v1334, %v1333
    %v1344 = vpack.c.b16 %v1336, %v1335
    %1353 = vmatprep.subr.bf16.mxu0 0
    %1354 = vmatpush1.bf16.msra.mxu0 %v1337
    %1355 = vmatprep.subr.bf16.mxu0 0
    %1356 = vmatpush1.bf16.msra.mxu0 %v1338
    %1357 = vmatprep.subr.bf16.mxu0 0
    %1358 = vmatpush1.bf16.msra.mxu0 %v1339
    %1359 = vmatprep.subr.bf16.mxu0 0
    %1360 = vmatpush1.bf16.msra.mxu0 %v1340
    %1361 = vmatprep.subr.bf16.mxu0 0
    %1362 = vmatpush1.bf16.msra.mxu0 %v1341
    %1363 = vmatprep.subr.bf16.mxu0 0
    %1364 = vmatpush1.bf16.msra.mxu0 %v1342
    %1365 = vmatprep.subr.bf16.mxu0 0
    %1366 = vmatpush1.bf16.msra.mxu0 %v1343
    %1367 = vmatprep.subr.bf16.mxu0 0
    %1368 = vmatpush1.bf16.msra.mxu0 %v1344
    %1369 = vmatprep.subr.bf16.mxu0 0
    %1370 = vmatpush1.bf16.msra.mxu0 0
    %1371 = vmatprep.subr.bf16.mxu0 0
    %1372 = vmatpush1.bf16.msra.mxu0 0
    %1373 = vmatprep.subr.bf16.mxu0 0
    %1374 = vmatpush1.bf16.msra.mxu0 0
    %1375 = vmatprep.subr.bf16.mxu0 0
    %1376 = vmatpush1.bf16.msra.mxu0 0
    %1377 = vmatprep.subr.bf16.mxu0 0
    %1378 = vmatpush1.bf16.msra.mxu0 0
    %1379 = vmatprep.subr.bf16.mxu0 0
    %1380 = vmatpush1.bf16.msra.mxu0 0
    %1381 = vmatprep.subr.bf16.mxu0 0
    %1382 = vmatpush1.bf16.msra.mxu0 0
    %1383 = vmatprep.subr.bf16.mxu0 0
    %1384 = vmatpush1.bf16.msra.mxu0 0
    %1385 = vmatprep.mubr.bf16.mxu0 0
    %1386 = vmatmul.mubr.bf16.gmra.mrb[0].mxu0 %v1080
    %v1387 = vpop.f32.mrb[0].mxu0
    %v1388 = vadd.f32 %v1292, %v1387
    %v1389 = vpop.f32.mrb[0].mxu0
    %v1390 = vpop.f32.mrb[0].mxu0
    %v1391 = vadd.f32 %v1295, %v1390
    %v1392 = vpop.f32.mrb[0].mxu0
    %1393 = vmatprep.mubr.bf16.mxu0 0
    %1394 = vmatmul.mubr.bf16.gmra.mrb[0].mxu0 %v1081
    %v1395 = vpop.f32.mrb[0].mxu0
    %v1396 = vadd.f32 %v1300, %v1395
    %v1397 = vpop.f32.mrb[0].mxu0
    %v1398 = vpop.f32.mrb[0].mxu0
    %v1399 = vpop.f32.mrb[0].mxu0
    %1400 = vdwg.mxu0
    %v1401 = vcombine.low %v982, %v981
    %v1402 = vcombine.low %v983, %v991
    %v1404 = vunpack.c.l.s4 1983009808
    %v1405 = vunpack.c.0.s8 %v1404
    %v1406 = vlaneseq
    %v1407 = vshrl.u32 %v1406, 7
    %v1408 = vsub.s32 %v1405, %v1407
    %v1409 = vrot.slane %v1401, %v1408
    %v1411 = vunpack.c.l.s4 1983009808
    %v1412 = vunpack.c.0.s8 %v1411
    %v1413 = vlaneseq
    %v1414 = vshrl.u32 %v1413, 7
    %v1415 = vsub.s32 %v1412, %v1414
    %v1416 = vrot.slane %v1402, %v1415
    %v1417 = vcombine.low %v1409, %v1416
    %v1418 = vcombine.low %v999, %v998
    %v1419 = vcombine.low %v1008, %v1016
    %v1421 = vunpack.c.l.s4 1983009808
    %v1422 = vunpack.c.0.s8 %v1421
    %v1423 = vlaneseq
    %v1424 = vshrl.u32 %v1423, 7
    %v1425 = vsub.s32 %v1422, %v1424
    %v1426 = vrot.slane %v1418, %v1425
    %v1428 = vunpack.c.l.s4 1983009808
    %v1429 = vunpack.c.0.s8 %v1428
    %v1430 = vlaneseq
    %v1431 = vshrl.u32 %v1430, 7
    %v1432 = vsub.s32 %v1429, %v1431
    %v1433 = vrot.slane %v1419, %v1432
    %v1434 = vcombine.low %v1426, %v1433
    %v1435 = vcombine.low %v1015, %v1017
    %v1436 = vcombine.low %v1024, %v1025
    %v1438 = vunpack.c.l.s4 1983009808
    %v1439 = vunpack.c.0.s8 %v1438
    %v1440 = vlaneseq
    %v1441 = vshrl.u32 %v1440, 7
    %v1442 = vsub.s32 %v1439, %v1441
    %v1443 = vrot.slane %v1435, %v1442
    %v1445 = vunpack.c.l.s4 1983009808
    %v1446 = vunpack.c.0.s8 %v1445
    %v1447 = vlaneseq
    %v1448 = vshrl.u32 %v1447, 7
    %v1449 = vsub.s32 %v1446, %v1448
    %v1450 = vrot.slane %v1436, %v1449
    %v1451 = vcombine.low %v1443, %v1450
    %v1455 = vpack.c.bf16 %v1434, %v1417
    %v1456 = vpack.c.bf16 %v1451, %v1451
    %s1457 = scalar_lea.vmem [#allocation7], 128
    %v1458 = vld [vmem:[%s1457] sm:$0xf]
    %v1459 = vld [vmem:[%s1457 + $0x4] sm:$0xf]
    %v1460 = vld [vmem:[%s1457 + $0x8] sm:$0xf]
    %v1461 = vld [vmem:[%s1457 + $0xc] sm:$0xf]
    %v1462 = vld [vmem:[%s1457 + $0x10] sm:$0xf]
    %v1463 = vld [vmem:[%s1457 + $0x14] sm:$0xf]
    %v1464 = vld [vmem:[%s1457 + $0x18] sm:$0xf]
    %v1465 = vld [vmem:[%s1457 + $0x1c] sm:$0xf]
    %v1466 = vld [vmem:[%s1457 + $0x20] sm:$0xf]
    %v1467 = vld [vmem:[%s1457 + $0x24] sm:$0xf]
    %v1468 = vld [vmem:[%s1457 + $0x28] sm:$0xf]
    %v1469 = vld [vmem:[%s1457 + $0x2c] sm:$0xf]
    %v1470 = vld [vmem:[%s1457 + $0x30] sm:$0xf]
    %v1471 = vld [vmem:[%s1457 + $0x34] sm:$0xf]
    %v1472 = vld [vmem:[%s1457 + $0x38] sm:$0xf]
    %v1473 = vld [vmem:[%s1457 + $0x3c] sm:$0xf]
    %v1490 = vunpack.c.l.b16 %v1458
    %v1491 = vunpack.c.l.b16 %v1459
    %v1492 = vunpack.c.l.b16 %v1460
    %v1493 = vunpack.c.l.b16 %v1461
    %v1494 = vunpack.c.l.b16 %v1462
    %v1495 = vunpack.c.l.b16 %v1463
    %v1496 = vunpack.c.l.b16 %v1464
    %v1497 = vunpack.c.l.b16 %v1465
    %v1498 = vunpack.c.l.b16 %v1466
    %v1499 = vunpack.c.l.b16 %v1467
    %v1500 = vunpack.c.l.b16 %v1468
    %v1501 = vunpack.c.l.b16 %v1469
    %v1502 = vunpack.c.l.b16 %v1470
    %v1503 = vunpack.c.l.b16 %v1471
    %v1504 = vunpack.c.l.b16 %v1472
    %v1505 = vunpack.c.l.b16 %v1473
    %v1506 = vpack.c.b16 %v1491, %v1490
    %v1507 = vpack.c.b16 %v1493, %v1492
    %v1508 = vpack.c.b16 %v1495, %v1494
    %v1509 = vpack.c.b16 %v1497, %v1496
    %v1510 = vpack.c.b16 %v1499, %v1498
    %v1511 = vpack.c.b16 %v1501, %v1500
    %v1512 = vpack.c.b16 %v1503, %v1502
    %v1513 = vpack.c.b16 %v1505, %v1504
    %1522 = vmatprep.subr.bf16.mxu0 0
    %1523 = vmatpush1.bf16.msra.mxu0 %v1506
    %1524 = vmatprep.subr.bf16.mxu0 0
    %1525 = vmatpush1.bf16.msra.mxu0 %v1507
    %1526 = vmatprep.subr.bf16.mxu0 0
    %1527 = vmatpush1.bf16.msra.mxu0 %v1508
    %1528 = vmatprep.subr.bf16.mxu0 0
    %1529 = vmatpush1.bf16.msra.mxu0 %v1509
    %1530 = vmatprep.subr.bf16.mxu0 0
    %1531 = vmatpush1.bf16.msra.mxu0 %v1510
    %1532 = vmatprep.subr.bf16.mxu0 0
    %1533 = vmatpush1.bf16.msra.mxu0 %v1511
    %1534 = vmatprep.subr.bf16.mxu0 0
    %1535 = vmatpush1.bf16.msra.mxu0 %v1512
    %1536 = vmatprep.subr.bf16.mxu0 0
    %1537 = vmatpush1.bf16.msra.mxu0 %v1513
    %1538 = vmatprep.subr.bf16.mxu0 0
    %1539 = vmatpush1.bf16.msra.mxu0 0
    %1540 = vmatprep.subr.bf16.mxu0 0
    %1541 = vmatpush1.bf16.msra.mxu0 0
    %1542 = vmatprep.subr.bf16.mxu0 0
    %1543 = vmatpush1.bf16.msra.mxu0 0
    %1544 = vmatprep.subr.bf16.mxu0 0
    %1545 = vmatpush1.bf16.msra.mxu0 0
    %1546 = vmatprep.subr.bf16.mxu0 0
    %1547 = vmatpush1.bf16.msra.mxu0 0
    %1548 = vmatprep.subr.bf16.mxu0 0
    %1549 = vmatpush1.bf16.msra.mxu0 0
    %1550 = vmatprep.subr.bf16.mxu0 0
    %1551 = vmatpush1.bf16.msra.mxu0 0
    %1552 = vmatprep.subr.bf16.mxu0 0
    %1553 = vmatpush1.bf16.msra.mxu0 0
    %1554 = vmatprep.mubr.bf16.mxu0 0
    %1555 = vmatmul.mubr.bf16.gmra.mrb[0].mxu0 %v1455
    %v1556 = vpop.f32.mrb[0].mxu0
    %v1557 = vadd.f32 0.0, %v1556
    %v1558 = vpop.f32.mrb[0].mxu0
    %v1559 = vpop.f32.mrb[0].mxu0
    %v1560 = vadd.f32 0.0, %v1559
    %v1561 = vpop.f32.mrb[0].mxu0
    %1562 = vmatprep.mubr.bf16.mxu0 0
    %1563 = vmatmul.mubr.bf16.gmra.mrb[0].mxu0 %v1456
    %v1564 = vpop.f32.mrb[0].mxu0
    %v1565 = vadd.f32 0.0, %v1564
    %v1566 = vpop.f32.mrb[0].mxu0
    %v1567 = vpop.f32.mrb[0].mxu0
    %v1568 = vpop.f32.mrb[0].mxu0
    %1569 = vdwg.mxu0
    %v1570 = vadd.f32 %v1388, %v1557
    %v1571 = vadd.f32 %v1391, %v1560
    %v1572 = vadd.f32 %v1396, %v1565
    %v1573 = vld [vmem:[%s6] sm:$0x1]
    %v1575 = vlaneseq
    %v1576 = vshrl.u32 %v1575, 7
    %v1577 = vsub.s32 0, %v1576
    %v1578 = vrot.slane %v1573, %v1577
    %v1580 = vadd.f32 %v1570, %v1578
    %v1581 = vadd.f32 %v1571, %v1578
    %v1582 = vadd.f32 %v1572, %v1578
    %v1583 = vadd.f32 %v1580, %v1581
    %v1584 = vadd.f32 %v1583, %v1582
    %v1585 = vrot.slane %v1584, 4
    %v1586 = vadd.f32 %v1584, %v1585
    %v1587 = vrot.slane %v1586, 2
    %v1588 = vadd.f32 %v1586, %v1587
    %v1589 = vrot.slane %v1588, 1
    %v1590 = vadd.f32 %v1588, %v1589
    %v1591 = vrcp.pop 24.0
    %v1592 = vmul.f32 %v1590, %v1591
    %v1593 = vsub.f32 %v1580, %v1592
    %v1594 = vsub.f32 %v1581, %v1592
    %v1595 = vsub.f32 %v1582, %v1592
    %v1596 = vmul.f32 %v1593, %v1593
    %v1597 = vmul.f32 %v1594, %v1594
    %v1598 = vmul.f32 %v1595, %v1595
    %v1599 = vadd.f32 %v1596, %v1597
    %v1600 = vadd.f32 %v1599, %v1598
    %v1601 = vrot.slane %v1600, 4
    %v1602 = vadd.f32 %v1600, %v1601
    %v1603 = vrot.slane %v1602, 2
    %v1604 = vadd.f32 %v1602, %v1603
    %v1605 = vrot.slane %v1604, 1
    %v1606 = vadd.f32 %v1604, %v1605
    %v1607 = vmul.f32 %v1606, %v1591
    %v1608 = vadd.f32 %v1607, 1e-05
    %v1609 = vrsqrt.pop %v1608
    %v1610 = vmul.f32 %v1593, %v1609
    %v1611 = vmul.f32 %v1594, %v1609
    %v1612 = vmul.f32 %v1595, %v1609
    %v1613 = vld [vmem:[%s7] sm:$0x1]
    %v1615 = vlaneseq
    %v1616 = vshrl.u32 %v1615, 7
    %v1617 = vsub.s32 0, %v1616
    %v1618 = vrot.slane %v1613, %v1617
    %v1620 = vmul.f32 %v1610, %v1618
    %v1621 = vmul.f32 %v1611, %v1618
    %v1622 = vmul.f32 %v1612, %v1618
    %v1623 = vld [vmem:[%s8] sm:$0x1]
    %v1625 = vlaneseq
    %v1626 = vshrl.u32 %v1625, 7
    %v1627 = vsub.s32 0, %v1626
    %v1628 = vrot.slane %v1623, %v1627
    %v1630 = vadd.f32 %v1620, %v1628
    %v1631 = vadd.f32 %v1621, %v1628
    %v1632 = vadd.f32 %v1622, %v1628
    %vm1633 = vcmp.ge.f32.partialorder %v1630, 0.0
    %vm1634 = vcmp.ge.f32.partialorder %v1631, 0.0
    %vm1635 = vcmp.ge.f32.partialorder %v1632, 0.0
    %v1636 = vmul.f32 %v1630, 0.2
    %v1637 = vmul.f32 %v1631, 0.2
    %v1638 = vmul.f32 %v1632, 0.2
    %v1639 = vsel %vm1633, %v1630, %v1636
    %v1640 = vsel %vm1634, %v1631, %v1637
    %v1641 = vsel %vm1635, %v1632, %v1638
    %v1645 = vcombine.high %v1639, %v1639
    %v1646 = vcombine.high %v1640, %v1640
    %v1647 = vcombine.high %v1641, %v1641
    %v1649 = vunpack.c.l.s4 1983009808
    %v1650 = vunpack.c.0.s8 %v1649
    %v1651 = vlaneseq
    %v1652 = vshrl.u32 %v1651, 7
    %v1653 = vsub.s32 %v1650, %v1652
    %v1654 = vrot.slane %v1639, %v1653
    %v1655 = vcombine.high %v1654, %v1654
    %v1657 = vunpack.c.l.s4 1983009808
    %v1658 = vunpack.c.0.s8 %v1657
    %v1659 = vlaneseq
    %v1660 = vshrl.u32 %v1659, 7
    %v1661 = vsub.s32 %v1658, %v1660
    %v1662 = vrot.slane %v1645, %v1661
    %v1663 = vcombine.high %v1662, %v1662
    %v1665 = vunpack.c.l.s4 1983009808
    %v1666 = vunpack.c.0.s8 %v1665
    %v1667 = vlaneseq
    %v1668 = vshrl.u32 %v1667, 7
    %v1669 = vsub.s32 %v1666, %v1668
    %v1670 = vrot.slane %v1640, %v1669
    %v1672 = vunpack.c.l.s4 1983009808
    %v1673 = vunpack.c.0.s8 %v1672
    %v1674 = vlaneseq
    %v1675 = vshrl.u32 %v1674, 7
    %v1676 = vsub.s32 %v1673, %v1675
    %v1677 = vrot.slane %v1646, %v1676
    %v1678 = vcombine.high %v1677, %v1677
    %v1680 = vunpack.c.l.s4 1983009808
    %v1681 = vunpack.c.0.s8 %v1680
    %v1682 = vlaneseq
    %v1683 = vshrl.u32 %v1682, 7
    %v1684 = vsub.s32 %v1681, %v1683
    %v1685 = vrot.slane %v1641, %v1684
    %v1686 = vcombine.high %v1685, %v1685
    %v1688 = vunpack.c.l.s4 1983009808
    %v1689 = vunpack.c.0.s8 %v1688
    %v1690 = vlaneseq
    %v1691 = vshrl.u32 %v1690, 7
    %v1692 = vsub.s32 %v1689, %v1691
    %v1693 = vrot.slane %v1647, %v1692
    %v1694 = vcombine.low %v1654, %v1655
    %v1695 = vcombine.low %v1662, %v1663
    %v1697 = vunpack.c.l.s4 1983009808
    %v1698 = vunpack.c.0.s8 %v1697
    %v1699 = vlaneseq
    %v1700 = vshrl.u32 %v1699, 7
    %v1701 = vsub.s32 %v1698, %v1700
    %v1702 = vrot.slane %v1694, %v1701
    %v1704 = vunpack.c.l.s4 1983009808
    %v1705 = vunpack.c.0.s8 %v1704
    %v1706 = vlaneseq
    %v1707 = vshrl.u32 %v1706, 7
    %v1708 = vsub.s32 %v1705, %v1707
    %v1709 = vrot.slane %v1695, %v1708
    %v1710 = vcombine.low %v1702, %v1709
    %v1711 = vcombine.low %v1670, %v1677
    %v1712 = vcombine.low %v1678, %v1685
    %v1714 = vunpack.c.l.s4 1983009808
    %v1715 = vunpack.c.0.s8 %v1714
    %v1716 = vlaneseq
    %v1717 = vshrl.u32 %v1716, 7
    %v1718 = vsub.s32 %v1715, %v1717
    %v1719 = vrot.slane %v1711, %v1718
    %v1721 = vunpack.c.l.s4 1983009808
    %v1722 = vunpack.c.0.s8 %v1721
    %v1723 = vlaneseq
    %v1724 = vshrl.u32 %v1723, 7
    %v1725 = vsub.s32 %v1722, %v1724
    %v1726 = vrot.slane %v1712, %v1725
    %v1727 = vcombine.low %v1719, %v1726
    %v1728 = vcombine.low %v1686, %v1693
    %v1730 = vunpack.c.l.s4 1983009808
    %v1731 = vunpack.c.0.s8 %v1730
    %v1732 = vlaneseq
    %v1733 = vshrl.u32 %v1732, 7
    %v1734 = vsub.s32 %v1731, %v1733
    %v1735 = vrot.slane %v1728, %v1734
    %v1739 = vpack.c.bf16 %v1727, %v1710
    %v1740 = vpack.c.bf16 %v1735, %v1735
    %v1741 = vld [vmem:[#allocation9] sm:$0xf]
    %v1742 = vld [vmem:[#allocation9 + $0x4] sm:$0xf]
    %v1743 = vld [vmem:[#allocation9 + $0x8] sm:$0xf]
    %v1744 = vld [vmem:[#allocation9 + $0xc] sm:$0xf]
    %v1745 = vld [vmem:[#allocation9 + $0x10] sm:$0xf]
    %v1746 = vld [vmem:[#allocation9 + $0x14] sm:$0xf]
    %v1747 = vld [vmem:[#allocation9 + $0x18] sm:$0xf]
    %v1748 = vld [vmem:[#allocation9 + $0x1c] sm:$0xf]
    %v1749 = vld [vmem:[#allocation9 + $0x20] sm:$0xf]
    %v1750 = vld [vmem:[#allocation9 + $0x24] sm:$0xf]
    %v1751 = vld [vmem:[#allocation9 + $0x28] sm:$0xf]
    %v1752 = vld [vmem:[#allocation9 + $0x2c] sm:$0xf]
    %v1753 = vld [vmem:[#allocation9 + $0x30] sm:$0xf]
    %v1754 = vld [vmem:[#allocation9 + $0x34] sm:$0xf]
    %v1755 = vld [vmem:[#allocation9 + $0x38] sm:$0xf]
    %v1756 = vld [vmem:[#allocation9 + $0x3c] sm:$0xf]
    %v1757 = vcombine.high %v1670, %v1670
    %v1758 = vcombine.high %v1693, %v1693
    %v1759 = vrot.slane %v1654, 7
    %v1760 = vrot.slane %v1759, 2
    %v1761 = vrot.slane %v1655, 7
    %v1762 = vsel %vm376, %v1760, %v1761
    %v1763 = vrot.slane %v1761, 2
    %v1764 = vrot.slane %v1662, 7
    %v1765 = vsel %vm376, %v1763, %v1764
    %v1766 = vrot.slane %v1764, 2
    %v1767 = vrot.slane %v1663, 7
    %v1768 = vsel %vm376, %v1766, %v1767
    %v1769 = vrot.slane %v1767, 2
    %v1770 = vrot.slane %v1670, 7
    %v1771 = vsel %vm376, %v1769, %v1770
    %v1772 = vrot.slane %v1770, 2
    %v1773 = vrot.slane %v1757, 7
    %v1774 = vsel %vm376, %v1772, %v1773
    %v1775 = vrot.slane %v1677, 7
    %v1776 = vrot.slane %v1775, 2
    %v1777 = vrot.slane %v1678, 7
    %v1778 = vsel %vm376, %v1776, %v1777
    %v1779 = vrot.slane %v1777, 2
    %v1780 = vrot.slane %v1685, 7
    %v1781 = vsel %vm376, %v1779, %v1780
    %v1782 = vrot.slane %v1780, 2
    %v1783 = vrot.slane %v1686, 7
    %v1784 = vsel %vm376, %v1782, %v1783
    %v1785 = vrot.slane %v1783, 2
    %v1786 = vrot.slane %v1693, 7
    %v1787 = vsel %vm376, %v1785, %v1786
    %v1788 = vrot.slane %v1786, 2
    %v1789 = vrot.slane %v1758, 7
    %v1790 = vsel %vm376, %v1788, %v1789
    %v1791 = vcombine.low %v1762, %v1765
    %v1792 = vcombine.low %v1768, %v1771
    %v1794 = vunpack.c.l.s4 1983009808
    %v1795 = vunpack.c.0.s8 %v1794
    %v1796 = vlaneseq
    %v1797 = vshrl.u32 %v1796, 7
    %v1798 = vsub.s32 %v1795, %v1797
    %v1799 = vrot.slane %v1791, %v1798
    %v1801 = vunpack.c.l.s4 1983009808
    %v1802 = vunpack.c.0.s8 %v1801
    %v1803 = vlaneseq
    %v1804 = vshrl.u32 %v1803, 7
    %v1805 = vsub.s32 %v1802, %v1804
    %v1806 = vrot.slane %v1792, %v1805
    %v1807 = vcombine.low %v1799, %v1806
    %v1808 = vcombine.low %v1774, %v1778
    %v1809 = vcombine.low %v1781, %v1784
    %v1811 = vunpack.c.l.s4 1983009808
    %v1812 = vunpack.c.0.s8 %v1811
    %v1813 = vlaneseq
    %v1814 = vshrl.u32 %v1813, 7
    %v1815 = vsub.s32 %v1812, %v1814
    %v1816 = vrot.slane %v1808, %v1815
    %v1818 = vunpack.c.l.s4 1983009808
    %v1819 = vunpack.c.0.s8 %v1818
    %v1820 = vlaneseq
    %v1821 = vshrl.u32 %v1820, 7
    %v1822 = vsub.s32 %v1819, %v1821
    %v1823 = vrot.slane %v1809, %v1822
    %v1824 = vcombine.low %v1816, %v1823
    %v1825 = vcombine.low %v1787, %v1790
    %v1827 = vunpack.c.l.s4 1983009808
    %v1828 = vunpack.c.0.s8 %v1827
    %v1829 = vlaneseq
    %v1830 = vshrl.u32 %v1829, 7
    %v1831 = vsub.s32 %v1828, %v1830
    %v1832 = vrot.slane %v1825, %v1831
    %v1836 = vpack.c.bf16 %v1824, %v1807
    %v1837 = vpack.c.bf16 %v1832, %v1832
    %s1838 = scalar_lea.vmem [#allocation9], 64
    %v1839 = vld [vmem:[%s1838] sm:$0xf]
    %v1840 = vld [vmem:[%s1838 + $0x4] sm:$0xf]
    %v1841 = vld [vmem:[%s1838 + $0x8] sm:$0xf]
    %v1842 = vld [vmem:[%s1838 + $0xc] sm:$0xf]
    %v1843 = vld [vmem:[%s1838 + $0x10] sm:$0xf]
    %v1844 = vld [vmem:[%s1838 + $0x14] sm:$0xf]
    %v1845 = vld [vmem:[%s1838 + $0x18] sm:$0xf]
    %v1846 = vld [vmem:[%s1838 + $0x1c] sm:$0xf]
    %v1847 = vld [vmem:[%s1838 + $0x20] sm:$0xf]
    %v1848 = vld [vmem:[%s1838 + $0x24] sm:$0xf]
    %v1849 = vld [vmem:[%s1838 + $0x28] sm:$0xf]
    %v1850 = vld [vmem:[%s1838 + $0x2c] sm:$0xf]
    %v1851 = vld [vmem:[%s1838 + $0x30] sm:$0xf]
    %v1852 = vld [vmem:[%s1838 + $0x34] sm:$0xf]
    %v1853 = vld [vmem:[%s1838 + $0x38] sm:$0xf]
    %v1854 = vld [vmem:[%s1838 + $0x3c] sm:$0xf]
    %v1871 = vunpack.c.l.b16 %v1839
    %v1872 = vunpack.c.l.b16 %v1840
    %v1873 = vunpack.c.l.b16 %v1841
    %v1874 = vunpack.c.l.b16 %v1842
    %v1875 = vunpack.c.l.b16 %v1843
    %v1876 = vunpack.c.l.b16 %v1844
    %v1877 = vunpack.c.l.b16 %v1845
    %v1878 = vunpack.c.l.b16 %v1846
    %v1879 = vunpack.c.l.b16 %v1847
    %v1880 = vunpack.c.l.b16 %v1848
    %v1881 = vunpack.c.l.b16 %v1849
    %v1882 = vunpack.c.l.b16 %v1850
    %v1883 = vunpack.c.l.b16 %v1851
    %v1884 = vunpack.c.l.b16 %v1852
    %v1885 = vunpack.c.l.b16 %v1853
    %v1886 = vunpack.c.l.b16 %v1854
    %v1887 = vpack.c.b16 %v1872, %v1871
    %v1888 = vpack.c.b16 %v1874, %v1873
    %v1889 = vpack.c.b16 %v1876, %v1875
    %v1890 = vpack.c.b16 %v1878, %v1877
    %v1891 = vpack.c.b16 %v1880, %v1879
    %v1892 = vpack.c.b16 %v1882, %v1881
    %v1893 = vpack.c.b16 %v1884, %v1883
    %v1894 = vpack.c.b16 %v1886, %v1885
    %1903 = vmatprep.subr.bf16.mxu0 0
    %1904 = vmatpush1.bf16.msra.mxu0 %v1887
    %1905 = vmatprep.subr.bf16.mxu0 0
    %1906 = vmatpush1.bf16.msra.mxu0 %v1888
    %1907 = vmatprep.subr.bf16.mxu0 0
    %1908 = vmatpush1.bf16.msra.mxu0 %v1889
    %1909 = vmatprep.subr.bf16.mxu0 0
    %1910 = vmatpush1.bf16.msra.mxu0 %v1890
    %1911 = vmatprep.subr.bf16.mxu0 0
    %1912 = vmatpush1.bf16.msra.mxu0 %v1891
    %1913 = vmatprep.subr.bf16.mxu0 0
    %1914 = vmatpush1.bf16.msra.mxu0 %v1892
    %1915 = vmatprep.subr.bf16.mxu0 0
    %1916 = vmatpush1.bf16.msra.mxu0 %v1893
    %1917 = vmatprep.subr.bf16.mxu0 0
    %1918 = vmatpush1.bf16.msra.mxu0 %v1894
    %1919 = vmatprep.subr.bf16.mxu0 0
    %1920 = vmatpush1.bf16.msra.mxu0 0
    %1921 = vmatprep.subr.bf16.mxu0 0
    %1922 = vmatpush1.bf16.msra.mxu0 0
    %1923 = vmatprep.subr.bf16.mxu0 0
    %1924 = vmatpush1.bf16.msra.mxu0 0
    %1925 = vmatprep.subr.bf16.mxu0 0
    %1926 = vmatpush1.bf16.msra.mxu0 0
    %1927 = vmatprep.subr.bf16.mxu0 0
    %1928 = vmatpush1.bf16.msra.mxu0 0
    %1929 = vmatprep.subr.bf16.mxu0 0
    %1930 = vmatpush1.bf16.msra.mxu0 0
    %1931 = vmatprep.subr.bf16.mxu0 0
    %1932 = vmatpush1.bf16.msra.mxu0 0
    %1933 = vmatprep.subr.bf16.mxu0 0
    %1934 = vmatpush1.bf16.msra.mxu0 0
    %1935 = vmatprep.mubr.bf16.mxu0 0
    %1936 = vmatmul.mubr.bf16.gmra.mrb[0].mxu0 %v1836
    %v1937 = vpop.f32.mrb[0].mxu0
    %v1938 = vadd.f32 0.0, %v1937
    %v1939 = vpop.f32.mrb[0].mxu0
    %v1940 = vpop.f32.mrb[0].mxu0
    %v1941 = vadd.f32 0.0, %v1940
    %v1942 = vpop.f32.mrb[0].mxu0
    %1943 = vmatprep.mubr.bf16.mxu0 0
    %1944 = vmatmul.mubr.bf16.gmra.mrb[0].mxu0 %v1837
    %v1945 = vpop.f32.mrb[0].mxu0
    %v1946 = vadd.f32 0.0, %v1945
    %v1947 = vpop.f32.mrb[0].mxu0
    %v1948 = vpop.f32.mrb[0].mxu0
    %v1949 = vpop.f32.mrb[0].mxu0
    %1950 = vdwg.mxu0
    %v1967 = vunpack.c.l.b16 %v1741
    %v1968 = vunpack.c.l.b16 %v1742
    %v1969 = vunpack.c.l.b16 %v1743
    %v1970 = vunpack.c.l.b16 %v1744
    %v1971 = vunpack.c.l.b16 %v1745
    %v1972 = vunpack.c.l.b16 %v1746
    %v1973 = vunpack.c.l.b16 %v1747
    %v1974 = vunpack.c.l.b16 %v1748
    %v1975 = vunpack.c.l.b16 %v1749
    %v1976 = vunpack.c.l.b16 %v1750
    %v1977 = vunpack.c.l.b16 %v1751
    %v1978 = vunpack.c.l.b16 %v1752
    %v1979 = vunpack.c.l.b16 %v1753
    %v1980 = vunpack.c.l.b16 %v1754
    %v1981 = vunpack.c.l.b16 %v1755
    %v1982 = vunpack.c.l.b16 %v1756
    %v1983 = vpack.c.b16 %v1968, %v1967
    %v1984 = vpack.c.b16 %v1970, %v1969
    %v1985 = vpack.c.b16 %v1972, %v1971
    %v1986 = vpack.c.b16 %v1974, %v1973
    %v1987 = vpack.c.b16 %v1976, %v1975
    %v1988 = vpack.c.b16 %v1978, %v1977
    %v1989 = vpack.c.b16 %v1980, %v1979
    %v1990 = vpack.c.b16 %v1982, %v1981
    %1999 = vmatprep.subr.bf16.mxu0 0
    %2000 = vmatpush1.bf16.msra.mxu0 %v1983
    %2001 = vmatprep.subr.bf16.mxu0 0
    %2002 = vmatpush1.bf16.msra.mxu0 %v1984
    %2003 = vmatprep.subr.bf16.mxu0 0
    %2004 = vmatpush1.bf16.msra.mxu0 %v1985
    %2005 = vmatprep.subr.bf16.mxu0 0
    %2006 = vmatpush1.bf16.msra.mxu0 %v1986
    %2007 = vmatprep.subr.bf16.mxu0 0
    %2008 = vmatpush1.bf16.msra.mxu0 %v1987
    %2009 = vmatprep.subr.bf16.mxu0 0
    %2010 = vmatpush1.bf16.msra.mxu0 %v1988
    %2011 = vmatprep.subr.bf16.mxu0 0
    %2012 = vmatpush1.bf16.msra.mxu0 %v1989
    %2013 = vmatprep.subr.bf16.mxu0 0
    %2014 = vmatpush1.bf16.msra.mxu0 %v1990
    %2015 = vmatprep.subr.bf16.mxu0 0
    %2016 = vmatpush1.bf16.msra.mxu0 0
    %2017 = vmatprep.subr.bf16.mxu0 0
    %2018 = vmatpush1.bf16.msra.mxu0 0
    %2019 = vmatprep.subr.bf16.mxu0 0
    %2020 = vmatpush1.bf16.msra.mxu0 0
    %2021 = vmatprep.subr.bf16.mxu0 0
    %2022 = vmatpush1.bf16.msra.mxu0 0
    %2023 = vmatprep.subr.bf16.mxu0 0
    %2024 = vmatpush1.bf16.msra.mxu0 0
    %2025 = vmatprep.subr.bf16.mxu0 0
    %2026 = vmatpush1.bf16.msra.mxu0 0
    %2027 = vmatprep.subr.bf16.mxu0 0
    %2028 = vmatpush1.bf16.msra.mxu0 0
    %2029 = vmatprep.subr.bf16.mxu0 0
    %2030 = vmatpush1.bf16.msra.mxu0 0
    %2031 = vmatprep.mubr.bf16.mxu0 0
    %2032 = vmatmul.mubr.bf16.gmra.mrb[0].mxu0 %v1739
    %v2033 = vpop.f32.mrb[0].mxu0
    %v2034 = vadd.f32 %v1938, %v2033
    %v2035 = vpop.f32.mrb[0].mxu0
    %v2036 = vpop.f32.mrb[0].mxu0
    %v2037 = vadd.f32 %v1941, %v2036
    %v2038 = vpop.f32.mrb[0].mxu0
    %2039 = vmatprep.mubr.bf16.mxu0 0
    %2040 = vmatmul.mubr.bf16.gmra.mrb[0].mxu0 %v1740
    %v2041 = vpop.f32.mrb[0].mxu0
    %v2042 = vadd.f32 %v1946, %v2041
    %v2043 = vpop.f32.mrb[0].mxu0
    %v2044 = vpop.f32.mrb[0].mxu0
    %v2045 = vpop.f32.mrb[0].mxu0
    %2046 = vdwg.mxu0
    %v2047 = vcombine.low %v1655, %v1662
    %v2048 = vcombine.low %v1663, %v1670
    %v2050 = vunpack.c.l.s4 1983009808
    %v2051 = vunpack.c.0.s8 %v2050
    %v2052 = vlaneseq
    %v2053 = vshrl.u32 %v2052, 7
    %v2054 = vsub.s32 %v2051, %v2053
    %v2055 = vrot.slane %v2047, %v2054
    %v2057 = vunpack.c.l.s4 1983009808
    %v2058 = vunpack.c.0.s8 %v2057
    %v2059 = vlaneseq
    %v2060 = vshrl.u32 %v2059, 7
    %v2061 = vsub.s32 %v2058, %v2060
    %v2062 = vrot.slane %v2048, %v2061
    %v2063 = vcombine.low %v2055, %v2062
    %v2064 = vcombine.low %v1757, %v1678
    %v2065 = vcombine.low %v1685, %v1686
    %v2067 = vunpack.c.l.s4 1983009808
    %v2068 = vunpack.c.0.s8 %v2067
    %v2069 = vlaneseq
    %v2070 = vshrl.u32 %v2069, 7
    %v2071 = vsub.s32 %v2068, %v2070
    %v2072 = vrot.slane %v2064, %v2071
    %v2074 = vunpack.c.l.s4 1983009808
    %v2075 = vunpack.c.0.s8 %v2074
    %v2076 = vlaneseq
    %v2077 = vshrl.u32 %v2076, 7
    %v2078 = vsub.s32 %v2075, %v2077
    %v2079 = vrot.slane %v2065, %v2078
    %v2080 = vcombine.low %v2072, %v2079
    %v2081 = vcombine.low %v1693, %v1758
    %v2083 = vunpack.c.l.s4 1983009808
    %v2084 = vunpack.c.0.s8 %v2083
    %v2085 = vlaneseq
    %v2086 = vshrl.u32 %v2085, 7
    %v2087 = vsub.s32 %v2084, %v2086
    %v2088 = vrot.slane %v2081, %v2087
    %v2092 = vpack.c.bf16 %v2080, %v2063
    %v2093 = vpack.c.bf16 %v2088, %v2088
    %s2094 = scalar_lea.vmem [#allocation9], 128
    %v2095 = vld [vmem:[%s2094] sm:$0xf]
    %v2096 = vld [vmem:[%s2094 + $0x4] sm:$0xf]
    %v2097 = vld [vmem:[%s2094 + $0x8] sm:$0xf]
    %v2098 = vld [vmem:[%s2094 + $0xc] sm:$0xf]
    %v2099 = vld [vmem:[%s2094 + $0x10] sm:$0xf]
    %v2100 = vld [vmem:[%s2094 + $0x14] sm:$0xf]
    %v2101 = vld [vmem:[%s2094 + $0x18] sm:$0xf]
    %v2102 = vld [vmem:[%s2094 + $0x1c] sm:$0xf]
    %v2103 = vld [vmem:[%s2094 + $0x20] sm:$0xf]
    %v2104 = vld [vmem:[%s2094 + $0x24] sm:$0xf]
    %v2105 = vld [vmem:[%s2094 + $0x28] sm:$0xf]
    %v2106 = vld [vmem:[%s2094 + $0x2c] sm:$0xf]
    %v2107 = vld [vmem:[%s2094 + $0x30] sm:$0xf]
    %v2108 = vld [vmem:[%s2094 + $0x34] sm:$0xf]
    %v2109 = vld [vmem:[%s2094 + $0x38] sm:$0xf]
    %v2110 = vld [vmem:[%s2094 + $0x3c] sm:$0xf]
    %v2127 = vunpack.c.l.b16 %v2095
    %v2128 = vunpack.c.l.b16 %v2096
    %v2129 = vunpack.c.l.b16 %v2097
    %v2130 = vunpack.c.l.b16 %v2098
    %v2131 = vunpack.c.l.b16 %v2099
    %v2132 = vunpack.c.l.b16 %v2100
    %v2133 = vunpack.c.l.b16 %v2101
    %v2134 = vunpack.c.l.b16 %v2102
    %v2135 = vunpack.c.l.b16 %v2103
    %v2136 = vunpack.c.l.b16 %v2104
    %v2137 = vunpack.c.l.b16 %v2105
    %v2138 = vunpack.c.l.b16 %v2106
    %v2139 = vunpack.c.l.b16 %v2107
    %v2140 = vunpack.c.l.b16 %v2108
    %v2141 = vunpack.c.l.b16 %v2109
    %v2142 = vunpack.c.l.b16 %v2110
    %v2143 = vpack.c.b16 %v2128, %v2127
    %v2144 = vpack.c.b16 %v2130, %v2129
    %v2145 = vpack.c.b16 %v2132, %v2131
    %v2146 = vpack.c.b16 %v2134, %v2133
    %v2147 = vpack.c.b16 %v2136, %v2135
    %v2148 = vpack.c.b16 %v2138, %v2137
    %v2149 = vpack.c.b16 %v2140, %v2139
    %v2150 = vpack.c.b16 %v2142, %v2141
    %2159 = vmatprep.subr.bf16.mxu0 0
    %2160 = vmatpush1.bf16.msra.mxu0 %v2143
    %2161 = vmatprep.subr.bf16.mxu0 0
    %2162 = vmatpush1.bf16.msra.mxu0 %v2144
    %2163 = vmatprep.subr.bf16.mxu0 0
    %2164 = vmatpush1.bf16.msra.mxu0 %v2145
    %2165 = vmatprep.subr.bf16.mxu0 0
    %2166 = vmatpush1.bf16.msra.mxu0 %v2146
    %2167 = vmatprep.subr.bf16.mxu0 0
    %2168 = vmatpush1.bf16.msra.mxu0 %v2147
    %2169 = vmatprep.subr.bf16.mxu0 0
    %2170 = vmatpush1.bf16.msra.mxu0 %v2148
    %2171 = vmatprep.subr.bf16.mxu0 0
    %2172 = vmatpush1.bf16.msra.mxu0 %v2149
    %2173 = vmatprep.subr.bf16.mxu0 0
    %2174 = vmatpush1.bf16.msra.mxu0 %v2150
    %2175 = vmatprep.subr.bf16.mxu0 0
    %2176 = vmatpush1.bf16.msra.mxu0 0
    %2177 = vmatprep.subr.bf16.mxu0 0
    %2178 = vmatpush1.bf16.msra.mxu0 0
    %2179 = vmatprep.subr.bf16.mxu0 0
    %2180 = vmatpush1.bf16.msra.mxu0 0
    %2181 = vmatprep.subr.bf16.mxu0 0
    %2182 = vmatpush1.bf16.msra.mxu0 0
    %2183 = vmatprep.subr.bf16.mxu0 0
    %2184 = vmatpush1.bf16.msra.mxu0 0
    %2185 = vmatprep.subr.bf16.mxu0 0
    %2186 = vmatpush1.bf16.msra.mxu0 0
    %2187 = vmatprep.subr.bf16.mxu0 0
    %2188 = vmatpush1.bf16.msra.mxu0 0
    %2189 = vmatprep.subr.bf16.mxu0 0
    %2190 = vmatpush1.bf16.msra.mxu0 0
    %2191 = vmatprep.mubr.bf16.mxu0 0
    %2192 = vmatmul.mubr.bf16.gmra.mrb[0].mxu0 %v2092
    %v2193 = vpop.f32.mrb[0].mxu0
    %v2194 = vadd.f32 0.0, %v2193
    %v2195 = vpop.f32.mrb[0].mxu0
    %v2196 = vpop.f32.mrb[0].mxu0
    %v2197 = vadd.f32 0.0, %v2196
    %v2198 = vpop.f32.mrb[0].mxu0
    %2199 = vmatprep.mubr.bf16.mxu0 0
    %2200 = vmatmul.mubr.bf16.gmra.mrb[0].mxu0 %v2093
    %v2201 = vpop.f32.mrb[0].mxu0
    %v2202 = vadd.f32 0.0, %v2201
    %v2203 = vpop.f32.mrb[0].mxu0
    %v2204 = vpop.f32.mrb[0].mxu0
    %v2205 = vpop.f32.mrb[0].mxu0
    %2206 = vdwg.mxu0
    %v2207 = vadd.f32 %v2034, %v2194
    %v2208 = vadd.f32 %v2037, %v2197
    %v2209 = vadd.f32 %v2042, %v2202
    %v2210 = vld [vmem:[%s10] sm:$0x1]
    %v2212 = vlaneseq
    %v2213 = vshrl.u32 %v2212, 7
    %v2214 = vsub.s32 0, %v2213
    %v2215 = vrot.slane %v2210, %v2214
    %v2217 = vadd.f32 %v2207, %v2215
    %v2218 = vadd.f32 %v2208, %v2215
    %v2219 = vadd.f32 %v2209, %v2215
    %v2220 = vadd.f32 %v2217, %v2218
    %v2221 = vsel %vm893, %v2219, 0.0
    %v2222 = vadd.f32 %v2220, %v2221
    %v2223 = vrot.slane %v2222, 4
    %v2224 = vadd.f32 %v2222, %v2223
    %v2225 = vrot.slane %v2224, 2
    %v2226 = vadd.f32 %v2224, %v2225
    %v2227 = vrot.slane %v2226, 1
    %v2228 = vadd.f32 %v2226, %v2227
    %v2229 = vrcp.pop 20.0
    %v2230 = vmul.f32 %v2228, %v2229
    %v2231 = vsub.f32 %v2217, %v2230
    %v2232 = vsub.f32 %v2218, %v2230
    %v2233 = vsub.f32 %v2219, %v2230
    %v2234 = vmul.f32 %v2231, %v2231
    %v2235 = vmul.f32 %v2232, %v2232
    %v2236 = vmul.f32 %v2233, %v2233
    %v2237 = vadd.f32 %v2234, %v2235
    %v2238 = vsel %vm893, %v2236, 0.0
    %v2239 = vadd.f32 %v2237, %v2238
    %v2240 = vrot.slane %v2239, 4
    %v2241 = vadd.f32 %v2239, %v2240
    %v2242 = vrot.slane %v2241, 2
    %v2243 = vadd.f32 %v2241, %v2242
    %v2244 = vrot.slane %v2243, 1
    %v2245 = vadd.f32 %v2243, %v2244
    %v2246 = vmul.f32 %v2245, %v2229
    %v2247 = vadd.f32 %v2246, 1e-05
    %v2248 = vrsqrt.pop %v2247
    %v2249 = vmul.f32 %v2231, %v2248
    %v2250 = vmul.f32 %v2232, %v2248
    %v2251 = vmul.f32 %v2233, %v2248
    %v2252 = vld [vmem:[%s11] sm:$0x1]
    %v2254 = vlaneseq
    %v2255 = vshrl.u32 %v2254, 7
    %v2256 = vsub.s32 0, %v2255
    %v2257 = vrot.slane %v2252, %v2256
    %v2259 = vmul.f32 %v2249, %v2257
    %v2260 = vmul.f32 %v2250, %v2257
    %v2261 = vmul.f32 %v2251, %v2257
    %v2262 = vld [vmem:[%s12] sm:$0x1]
    %v2264 = vlaneseq
    %v2265 = vshrl.u32 %v2264, 7
    %v2266 = vsub.s32 0, %v2265
    %v2267 = vrot.slane %v2262, %v2266
    %v2269 = vadd.f32 %v2259, %v2267
    %v2270 = vadd.f32 %v2260, %v2267
    %v2271 = vadd.f32 %v2261, %v2267
    %vm2272 = vcmp.ge.f32.partialorder %v2269, 0.0
    %vm2273 = vcmp.ge.f32.partialorder %v2270, 0.0
    %vm2274 = vcmp.ge.f32.partialorder %v2271, 0.0
    %v2275 = vmul.f32 %v2269, 0.2
    %v2276 = vmul.f32 %v2270, 0.2
    %v2277 = vmul.f32 %v2271, 0.2
    %v2278 = vsel %vm2272, %v2269, %v2275
    %v2279 = vsel %vm2273, %v2270, %v2276
    %v2280 = vsel %vm2274, %v2271, %v2277
    %v2281 = vpack.c.bf16 %v2279, %v2278
    %v2282 = vpack.c.bf16 %v2280, %v2280
    %v2283 = vld [vmem:[#allocation10] sm:$0xff]
    %v2284 = vld [vmem:[#allocation10 + $0x8] sm:$0xff]
    %v2285 = vld [vmem:[#allocation10 + $0x10] sm:$0xff]
    %v2286 = vld [vmem:[#allocation10 + $0x18] sm:$0xff]
    %v2287 = vld [vmem:[#allocation10 + $0x20] sm:$0xff]
    %v2288 = vld [vmem:[#allocation10 + $0x28] sm:$0xff]
    %v2289 = vld [vmem:[#allocation10 + $0x30] sm:$0xff]
    %v2290 = vld [vmem:[#allocation10 + $0x38] sm:$0xff]
    %v2291 = vld [vmem:[#allocation10 + $0x40] sm:$0xff]
    %v2292 = vld [vmem:[#allocation10 + $0x48] sm:$0xff]
    %v2293 = vld [vmem:[#allocation10 + $0x50] sm:$0xff]
    %v2294 = vld [vmem:[#allocation10 + $0x58] sm:$0xff]
    %v2295 = vld [vmem:[#allocation10 + $0x60] sm:$0xff]
    %v2296 = vld [vmem:[#allocation10 + $0x68] sm:$0xff]
    %v2297 = vld [vmem:[#allocation10 + $0x70] sm:$0xff]
    %v2298 = vld [vmem:[#allocation10 + $0x78] sm:$0xff]
    %v2299 = vld [vmem:[#allocation10 + $0x80] sm:$0xff]
    %v2300 = vld [vmem:[#allocation10 + $0x88] sm:$0xff]
    %v2301 = vld [vmem:[#allocation10 + $0x90] sm:$0xff]
    %v2302 = vld [vmem:[#allocation10 + $0x98] sm:$0xff]
    %v2303 = vld [vmem:[#allocation10 + $0xa0] sm:$0xff]
    %v2304 = vld [vmem:[#allocation10 + $0xa8] sm:$0xff]
    %v2305 = vld [vmem:[#allocation10 + $0xb0] sm:$0xff]
    %v2306 = vld [vmem:[#allocation10 + $0xb8] sm:$0xff]
    %v2307 = vld [vmem:[#allocation10 + $0xc0] sm:$0xff]
    %v2308 = vld [vmem:[#allocation10 + $0xc8] sm:$0xff]
    %v2309 = vld [vmem:[#allocation10 + $0xd0] sm:$0xff]
    %v2310 = vld [vmem:[#allocation10 + $0xd8] sm:$0xff]
    %v2311 = vld [vmem:[#allocation10 + $0xe0] sm:$0xff]
    %v2312 = vld [vmem:[#allocation10 + $0xe8] sm:$0xff]
    %v2313 = vld [vmem:[#allocation10 + $0xf0] sm:$0xff]
    %v2314 = vld [vmem:[#allocation10 + $0xf8] sm:$0xff]
    %v2315 = vld [vmem:[#allocation10 + $0x100] sm:$0xff]
    %v2316 = vld [vmem:[#allocation10 + $0x108] sm:$0xff]
    %v2317 = vld [vmem:[#allocation10 + $0x110] sm:$0xff]
    %v2318 = vld [vmem:[#allocation10 + $0x118] sm:$0xff]
    %v2319 = vld [vmem:[#allocation10 + $0x120] sm:$0xff]
    %v2320 = vld [vmem:[#allocation10 + $0x128] sm:$0xff]
    %v2321 = vld [vmem:[#allocation10 + $0x130] sm:$0xff]
    %v2322 = vld [vmem:[#allocation10 + $0x138] sm:$0xff]
    %v2323 = vld [vmem:[#allocation10 + $0x140] sm:$0xff]
    %v2324 = vld [vmem:[#allocation10 + $0x148] sm:$0xff]
    %v2325 = vld [vmem:[#allocation10 + $0x150] sm:$0xff]
    %v2326 = vld [vmem:[#allocation10 + $0x158] sm:$0xff]
    %v2327 = vld [vmem:[#allocation10 + $0x160] sm:$0xff]
    %v2328 = vld [vmem:[#allocation10 + $0x168] sm:$0xff]
    %v2329 = vld [vmem:[#allocation10 + $0x170] sm:$0xff]
    %v2330 = vld [vmem:[#allocation10 + $0x178] sm:$0xff]
    %v2331 = vld [vmem:[#allocation10 + $0x180] sm:$0xff]
    %v2332 = vld [vmem:[#allocation10 + $0x188] sm:$0xff]
    %v2333 = vld [vmem:[#allocation10 + $0x190] sm:$0xff]
    %v2334 = vld [vmem:[#allocation10 + $0x198] sm:$0xff]
    %v2335 = vld [vmem:[#allocation10 + $0x1a0] sm:$0xff]
    %v2336 = vld [vmem:[#allocation10 + $0x1a8] sm:$0xff]
    %v2337 = vld [vmem:[#allocation10 + $0x1b0] sm:$0xff]
    %v2338 = vld [vmem:[#allocation10 + $0x1b8] sm:$0xff]
    %v2339 = vld [vmem:[#allocation10 + $0x1c0] sm:$0xff]
    %v2340 = vld [vmem:[#allocation10 + $0x1c8] sm:$0xff]
    %v2341 = vld [vmem:[#allocation10 + $0x1d0] sm:$0xff]
    %v2342 = vld [vmem:[#allocation10 + $0x1d8] sm:$0xff]
    %v2343 = vld [vmem:[#allocation10 + $0x1e0] sm:$0xff]
    %v2344 = vld [vmem:[#allocation10 + $0x1e8] sm:$0xff]
    %v2345 = vld [vmem:[#allocation10 + $0x1f0] sm:$0xff]
    %v2346 = vld [vmem:[#allocation10 + $0x1f8] sm:$0xff]
    %v2347 = vld [vmem:[%s15] sm:$0xff]
    %v2349 = vlaneseq
    %v2350 = vshrl.u32 %v2349, 7
    %v2351 = vsub.s32 0, %v2350
    %v2352 = vrot.slane %v2347, %v2351
    %v2353 = vlaneseq
    %v2354 = vshrl.u32 %v2353, 7
    %v2355 = vsub.s32 1, %v2354
    %v2356 = vrot.slane %v2347, %v2355
    %v2357 = vlaneseq
    %v2358 = vshrl.u32 %v2357, 7
    %v2359 = vsub.s32 2, %v2358
    %v2360 = vrot.slane %v2347, %v2359
    %v2361 = vlaneseq
    %v2362 = vshrl.u32 %v2361, 7
    %v2363 = vsub.s32 3, %v2362
    %v2364 = vrot.slane %v2347, %v2363
    %v2365 = vlaneseq
    %v2366 = vshrl.u32 %v2365, 7
    %v2367 = vsub.s32 4, %v2366
    %v2368 = vrot.slane %v2347, %v2367
    %v2369 = vlaneseq
    %v2370 = vshrl.u32 %v2369, 7
    %v2371 = vsub.s32 5, %v2370
    %v2372 = vrot.slane %v2347, %v2371
    %v2373 = vlaneseq
    %v2374 = vshrl.u32 %v2373, 7
    %v2375 = vsub.s32 6, %v2374
    %v2376 = vrot.slane %v2347, %v2375
    %v2377 = vlaneseq
    %v2378 = vshrl.u32 %v2377, 7
    %v2379 = vsub.s32 7, %v2378
    %v2380 = vrot.slane %v2347, %v2379
    %v2453 = vunpack.c.l.b16 %v2283
    %v2454 = vunpack.c.h.b16 %v2283
    %v2455 = vunpack.c.l.b16 %v2284
    %v2456 = vunpack.c.h.b16 %v2284
    %v2457 = vunpack.c.l.b16 %v2285
    %v2458 = vunpack.c.h.b16 %v2285
    %v2459 = vunpack.c.l.b16 %v2286
    %v2460 = vunpack.c.h.b16 %v2286
    %v2461 = vunpack.c.l.b16 %v2287
    %v2462 = vunpack.c.h.b16 %v2287
    %v2463 = vunpack.c.l.b16 %v2288
    %v2464 = vunpack.c.h.b16 %v2288
    %v2465 = vunpack.c.l.b16 %v2289
    %v2466 = vunpack.c.h.b16 %v2289
    %v2467 = vunpack.c.l.b16 %v2290
    %v2468 = vunpack.c.h.b16 %v2290
    %v2469 = vunpack.c.l.b16 %v2291
    %v2470 = vunpack.c.h.b16 %v2291
    %v2471 = vunpack.c.l.b16 %v2292
    %v2472 = vunpack.c.h.b16 %v2292
    %v2473 = vunpack.c.l.b16 %v2293
    %v2474 = vunpack.c.h.b16 %v2293
    %v2475 = vunpack.c.l.b16 %v2294
    %v2476 = vunpack.c.h.b16 %v2294
    %v2477 = vunpack.c.l.b16 %v2295
    %v2478 = vunpack.c.h.b16 %v2295
    %v2479 = vunpack.c.l.b16 %v2296
    %v2480 = vunpack.c.h.b16 %v2296
    %v2481 = vunpack.c.l.b16 %v2297
    %v2482 = vunpack.c.h.b16 %v2297
    %v2483 = vunpack.c.l.b16 %v2298
    %v2484 = vunpack.c.h.b16 %v2298
    %v2485 = vunpack.c.l.b16 %v2299
    %v2486 = vunpack.c.h.b16 %v2299
    %v2487 = vunpack.c.l.b16 %v2300
    %v2488 = vunpack.c.h.b16 %v2300
    %v2489 = vunpack.c.l.b16 %v2301
    %v2490 = vunpack.c.h.b16 %v2301
    %v2491 = vunpack.c.l.b16 %v2302
    %v2492 = vunpack.c.h.b16 %v2302
    %v2493 = vunpack.c.l.b16 %v2303
    %v2494 = vunpack.c.h.b16 %v2303
    %v2495 = vunpack.c.l.b16 %v2304
    %v2496 = vunpack.c.h.b16 %v2304
    %v2497 = vunpack.c.l.b16 %v2305
    %v2498 = vunpack.c.h.b16 %v2305
    %v2499 = vunpack.c.l.b16 %v2306
    %v2500 = vunpack.c.h.b16 %v2306
    %v2501 = vunpack.c.l.b16 %v2307
    %v2502 = vunpack.c.h.b16 %v2307
    %v2503 = vunpack.c.l.b16 %v2308
    %v2504 = vunpack.c.h.b16 %v2308
    %v2505 = vunpack.c.l.b16 %v2309
    %v2506 = vunpack.c.h.b16 %v2309
    %v2507 = vunpack.c.l.b16 %v2310
    %v2508 = vunpack.c.h.b16 %v2310
    %v2509 = vunpack.c.l.b16 %v2311
    %v2510 = vunpack.c.h.b16 %v2311
    %v2511 = vunpack.c.l.b16 %v2312
    %v2512 = vunpack.c.h.b16 %v2312
    %v2513 = vunpack.c.l.b16 %v2313
    %v2514 = vunpack.c.h.b16 %v2313
    %v2515 = vunpack.c.l.b16 %v2314
    %v2516 = vunpack.c.h.b16 %v2314
    %v2517 = vunpack.c.l.b16 %v2315
    %v2518 = vunpack.c.h.b16 %v2315
    %v2519 = vunpack.c.l.b16 %v2316
    %v2520 = vunpack.c.h.b16 %v2316
    %v2521 = vunpack.c.l.b16 %v2317
    %v2522 = vunpack.c.h.b16 %v2317
    %v2523 = vunpack.c.l.b16 %v2318
    %v2524 = vunpack.c.h.b16 %v2318
    %v2525 = vunpack.c.l.b16 %v2319
    %v2526 = vunpack.c.h.b16 %v2319
    %v2527 = vunpack.c.l.b16 %v2320
    %v2528 = vunpack.c.h.b16 %v2320
    %v2529 = vunpack.c.l.b16 %v2321
    %v2530 = vunpack.c.h.b16 %v2321
    %v2531 = vunpack.c.l.b16 %v2322
    %v2532 = vunpack.c.h.b16 %v2322
    %v2533 = vunpack.c.l.b16 %v2323
    %v2534 = vunpack.c.h.b16 %v2323
    %v2535 = vunpack.c.l.b16 %v2324
    %v2536 = vunpack.c.h.b16 %v2324
    %v2537 = vunpack.c.l.b16 %v2325
    %v2538 = vunpack.c.h.b16 %v2325
    %v2539 = vunpack.c.l.b16 %v2326
    %v2540 = vunpack.c.h.b16 %v2326
    %v2541 = vunpack.c.l.b16 %v2327
    %v2542 = vunpack.c.h.b16 %v2327
    %v2543 = vunpack.c.l.b16 %v2328
    %v2544 = vunpack.c.h.b16 %v2328
    %v2545 = vunpack.c.l.b16 %v2329
    %v2546 = vunpack.c.h.b16 %v2329
    %v2547 = vunpack.c.l.b16 %v2330
    %v2548 = vunpack.c.h.b16 %v2330
    %v2549 = vunpack.c.l.b16 %v2331
    %v2550 = vunpack.c.h.b16 %v2331
    %v2551 = vunpack.c.l.b16 %v2332
    %v2552 = vunpack.c.h.b16 %v2332
    %v2553 = vunpack.c.l.b16 %v2333
    %v2554 = vunpack.c.h.b16 %v2333
    %v2555 = vunpack.c.l.b16 %v2334
    %v2556 = vunpack.c.h.b16 %v2334
    %v2557 = vunpack.c.l.b16 %v2335
    %v2558 = vunpack.c.h.b16 %v2335
    %v2559 = vunpack.c.l.b16 %v2336
    %v2560 = vunpack.c.h.b16 %v2336
    %v2561 = vunpack.c.l.b16 %v2337
    %v2562 = vunpack.c.h.b16 %v2337
    %v2563 = vunpack.c.l.b16 %v2338
    %v2564 = vunpack.c.h.b16 %v2338
    %v2565 = vunpack.c.l.b16 %v2339
    %v2566 = vunpack.c.h.b16 %v2339
    %v2567 = vunpack.c.l.b16 %v2340
    %v2568 = vunpack.c.h.b16 %v2340
    %v2569 = vunpack.c.l.b16 %v2341
    %v2570 = vunpack.c.h.b16 %v2341
    %v2571 = vunpack.c.l.b16 %v2342
    %v2572 = vunpack.c.h.b16 %v2342
    %v2573 = vunpack.c.l.b16 %v2343
    %v2574 = vunpack.c.h.b16 %v2343
    %v2575 = vunpack.c.l.b16 %v2344
    %v2576 = vunpack.c.h.b16 %v2344
    %v2577 = vunpack.c.l.b16 %v2345
    %v2578 = vunpack.c.h.b16 %v2345
    %v2579 = vunpack.c.l.b16 %v2346
    %v2580 = vunpack.c.h.b16 %v2346
    %v2581 = vpack.c.b16 %v2461, %v2453
    %v2582 = vpack.c.b16 %v2462, %v2454
    %v2583 = vpack.c.b16 %v2463, %v2455
    %v2584 = vpack.c.b16 %v2464, %v2456
    %v2585 = vpack.c.b16 %v2465, %v2457
    %v2586 = vpack.c.b16 %v2466, %v2458
    %v2587 = vpack.c.b16 %v2467, %v2459
    %v2588 = vpack.c.b16 %v2468, %v2460
    %v2589 = vpack.c.b16 %v2477, %v2469
    %v2590 = vpack.c.b16 %v2478, %v2470
    %v2591 = vpack.c.b16 %v2479, %v2471
    %v2592 = vpack.c.b16 %v2480, %v2472
    %v2593 = vpack.c.b16 %v2481, %v2473
    %v2594 = vpack.c.b16 %v2482, %v2474
    %v2595 = vpack.c.b16 %v2483, %v2475
    %v2596 = vpack.c.b16 %v2484, %v2476
    %v2597 = vpack.c.b16 %v2493, %v2485
    %v2598 = vpack.c.b16 %v2494, %v2486
    %v2599 = vpack.c.b16 %v2495, %v2487
    %v2600 = vpack.c.b16 %v2496, %v2488
    %v2601 = vpack.c.b16 %v2497, %v2489
    %v2602 = vpack.c.b16 %v2498, %v2490
    %v2603 = vpack.c.b16 %v2499, %v2491
    %v2604 = vpack.c.b16 %v2500, %v2492
    %v2605 = vpack.c.b16 %v2509, %v2501
    %v2606 = vpack.c.b16 %v2510, %v2502
    %v2607 = vpack.c.b16 %v2511, %v2503
    %v2608 = vpack.c.b16 %v2512, %v2504
    %v2609 = vpack.c.b16 %v2513, %v2505
    %v2610 = vpack.c.b16 %v2514, %v2506
    %v2611 = vpack.c.b16 %v2515, %v2507
    %v2612 = vpack.c.b16 %v2516, %v2508
    %v2613 = vpack.c.b16 %v2525, %v2517
    %v2614 = vpack.c.b16 %v2526, %v2518
    %v2615 = vpack.c.b16 %v2527, %v2519
    %v2616 = vpack.c.b16 %v2528, %v2520
    %v2617 = vpack.c.b16 %v2529, %v2521
    %v2618 = vpack.c.b16 %v2530, %v2522
    %v2619 = vpack.c.b16 %v2531, %v2523
    %v2620 = vpack.c.b16 %v2532, %v2524
    %v2621 = vpack.c.b16 %v2541, %v2533
    %v2622 = vpack.c.b16 %v2542, %v2534
    %v2623 = vpack.c.b16 %v2543, %v2535
    %v2624 = vpack.c.b16 %v2544, %v2536
    %v2625 = vpack.c.b16 %v2545, %v2537
    %v2626 = vpack.c.b16 %v2546, %v2538
    %v2627 = vpack.c.b16 %v2547, %v2539
    %v2628 = vpack.c.b16 %v2548, %v2540
    %v2629 = vpack.c.b16 %v2557, %v2549
    %v2630 = vpack.c.b16 %v2558, %v2550
    %v2631 = vpack.c.b16 %v2559, %v2551
    %v2632 = vpack.c.b16 %v2560, %v2552
    %v2633 = vpack.c.b16 %v2561, %v2553
    %v2634 = vpack.c.b16 %v2562, %v2554
    %v2635 = vpack.c.b16 %v2563, %v2555
    %v2636 = vpack.c.b16 %v2564, %v2556
    %v2637 = vpack.c.b16 %v2573, %v2565
    %v2638 = vpack.c.b16 %v2574, %v2566
    %v2639 = vpack.c.b16 %v2575, %v2567
    %v2640 = vpack.c.b16 %v2576, %v2568
    %v2641 = vpack.c.b16 %v2577, %v2569
    %v2642 = vpack.c.b16 %v2578, %v2570
    %v2643 = vpack.c.b16 %v2579, %v2571
    %v2644 = vpack.c.b16 %v2580, %v2572
    %2709 = vmatprep.subr.bf16.mxu0 %v2582
    %2710 = vmatpush1.bf16.msra.mxu0 %v2581
    %2711 = vmatprep.subr.bf16.mxu0 %v2590
    %2712 = vmatpush1.bf16.msra.mxu0 %v2589
    %2713 = vmatprep.subr.bf16.mxu0 %v2598
    %2714 = vmatpush1.bf16.msra.mxu0 %v2597
    %2715 = vmatprep.subr.bf16.mxu0 %v2606
    %2716 = vmatpush1.bf16.msra.mxu0 %v2605
    %2717 = vmatprep.subr.bf16.mxu0 %v2614
    %2718 = vmatpush1.bf16.msra.mxu0 %v2613
    %2719 = vmatprep.subr.bf16.mxu0 %v2622
    %2720 = vmatpush1.bf16.msra.mxu0 %v2621
    %2721 = vmatprep.subr.bf16.mxu0 %v2630
    %2722 = vmatpush1.bf16.msra.mxu0 %v2629
    %2723 = vmatprep.subr.bf16.mxu0 %v2638
    %2724 = vmatpush1.bf16.msra.mxu0 %v2637
    %2725 = vmatprep.subr.bf16.mxu0 0
    %2726 = vmatpush1.bf16.msra.mxu0 0
    %2727 = vmatprep.subr.bf16.mxu0 0
    %2728 = vmatpush1.bf16.msra.mxu0 0
    %2729 = vmatprep.subr.bf16.mxu0 0
    %2730 = vmatpush1.bf16.msra.mxu0 0
    %2731 = vmatprep.subr.bf16.mxu0 0
    %2732 = vmatpush1.bf16.msra.mxu0 0
    %2733 = vmatprep.subr.bf16.mxu0 0
    %2734 = vmatpush1.bf16.msra.mxu0 0
    %2735 = vmatprep.subr.bf16.mxu0 0
    %2736 = vmatpush1.bf16.msra.mxu0 0
    %2737 = vmatprep.subr.bf16.mxu0 0
    %2738 = vmatpush1.bf16.msra.mxu0 0
    %2739 = vmatprep.subr.bf16.mxu0 0
    %2740 = vmatpush1.bf16.msra.mxu0 0
    %2741 = vmatprep.mubr.bf16.mxu0 0
    %2742 = vmatmul.mubr.bf16.gmra.mrb[0].mxu0 %v2281
    %v2743 = vpop.f32.mrb[0].mxu0
    %v2744 = vadd.f32 %v2352, %v2743
    %v2745 = vpop.f32.mrb[0].mxu0
    %v2746 = vadd.f32 %v2356, %v2745
    %v2747 = vpop.f32.mrb[0].mxu0
    %v2748 = vadd.f32 %v2352, %v2747
    %v2749 = vpop.f32.mrb[0].mxu0
    %v2750 = vadd.f32 %v2356, %v2749
    %2751 = vmatprep.mubr.bf16.mxu0 0
    %2752 = vmatmul.mubr.bf16.gmra.mrb[0].mxu0 %v2282
    %v2753 = vpop.f32.mrb[0].mxu0
    %v2754 = vadd.f32 %v2352, %v2753
    %v2755 = vpop.f32.mrb[0].mxu0
    %v2756 = vadd.f32 %v2356, %v2755
    %v2757 = vpop.f32.mrb[0].mxu0
    %v2758 = vpop.f32.mrb[0].mxu0
    %2759 = vdwg.mxu0
    %2760 = vmatprep.subr.bf16.mxu0 %v2584
    %2761 = vmatpush1.bf16.msra.mxu0 %v2583
    %2762 = vmatprep.subr.bf16.mxu0 %v2592
    %2763 = vmatpush1.bf16.msra.mxu0 %v2591
    %2764 = vmatprep.subr.bf16.mxu0 %v2600
    %2765 = vmatpush1.bf16.msra.mxu0 %v2599
    %2766 = vmatprep.subr.bf16.mxu0 %v2608
    %2767 = vmatpush1.bf16.msra.mxu0 %v2607
    %2768 = vmatprep.subr.bf16.mxu0 %v2616
    %2769 = vmatpush1.bf16.msra.mxu0 %v2615
    %2770 = vmatprep.subr.bf16.mxu0 %v2624
    %2771 = vmatpush1.bf16.msra.mxu0 %v2623
    %2772 = vmatprep.subr.bf16.mxu0 %v2632
    %2773 = vmatpush1.bf16.msra.mxu0 %v2631
    %2774 = vmatprep.subr.bf16.mxu0 %v2640
    %2775 = vmatpush1.bf16.msra.mxu0 %v2639
    %2776 = vmatprep.subr.bf16.mxu0 0
    %2777 = vmatpush1.bf16.msra.mxu0 0
    %2778 = vmatprep.subr.bf16.mxu0 0
    %2779 = vmatpush1.bf16.msra.mxu0 0
    %2780 = vmatprep.subr.bf16.mxu0 0
    %2781 = vmatpush1.bf16.msra.mxu0 0
    %2782 = vmatprep.subr.bf16.mxu0 0
    %2783 = vmatpush1.bf16.msra.mxu0 0
    %2784 = vmatprep.subr.bf16.mxu0 0
    %2785 = vmatpush1.bf16.msra.mxu0 0
    %2786 = vmatprep.subr.bf16.mxu0 0
    %2787 = vmatpush1.bf16.msra.mxu0 0
    %2788 = vmatprep.subr.bf16.mxu0 0
    %2789 = vmatpush1.bf16.msra.mxu0 0
    %2790 = vmatprep.subr.bf16.mxu0 0
    %2791 = vmatpush1.bf16.msra.mxu0 0
    %2792 = vmatprep.mubr.bf16.mxu0 0
    %2793 = vmatmul.mubr.bf16.gmra.mrb[0].mxu0 %v2281
    %v2794 = vpop.f32.mrb[0].mxu0
    %v2795 = vadd.f32 %v2360, %v2794
    %v2796 = vpop.f32.mrb[0].mxu0
    %v2797 = vadd.f32 %v2364, %v2796
    %v2798 = vpop.f32.mrb[0].mxu0
    %v2799 = vadd.f32 %v2360, %v2798
    %v2800 = vpop.f32.mrb[0].mxu0
    %v2801 = vadd.f32 %v2364, %v2800
    %2802 = vmatprep.mubr.bf16.mxu0 0
    %2803 = vmatmul.mubr.bf16.gmra.mrb[0].mxu0 %v2282
    %v2804 = vpop.f32.mrb[0].mxu0
    %v2805 = vadd.f32 %v2360, %v2804
    %v2806 = vpop.f32.mrb[0].mxu0
    %v2807 = vadd.f32 %v2364, %v2806
    %v2808 = vpop.f32.mrb[0].mxu0
    %v2809 = vpop.f32.mrb[0].mxu0
    %2810 = vdwg.mxu0
    %2811 = vmatprep.subr.bf16.mxu0 %v2586
    %2812 = vmatpush1.bf16.msra.mxu0 %v2585
    %2813 = vmatprep.subr.bf16.mxu0 %v2594
    %2814 = vmatpush1.bf16.msra.mxu0 %v2593
    %2815 = vmatprep.subr.bf16.mxu0 %v2602
    %2816 = vmatpush1.bf16.msra.mxu0 %v2601
    %2817 = vmatprep.subr.bf16.mxu0 %v2610
    %2818 = vmatpush1.bf16.msra.mxu0 %v2609
    %2819 = vmatprep.subr.bf16.mxu0 %v2618
    %2820 = vmatpush1.bf16.msra.mxu0 %v2617
    %2821 = vmatprep.subr.bf16.mxu0 %v2626
    %2822 = vmatpush1.bf16.msra.mxu0 %v2625
    %2823 = vmatprep.subr.bf16.mxu0 %v2634
    %2824 = vmatpush1.bf16.msra.mxu0 %v2633
    %2825 = vmatprep.subr.bf16.mxu0 %v2642
    %2826 = vmatpush1.bf16.msra.mxu0 %v2641
    %2827 = vmatprep.subr.bf16.mxu0 0
    %2828 = vmatpush1.bf16.msra.mxu0 0
    %2829 = vmatprep.subr.bf16.mxu0 0
    %2830 = vmatpush1.bf16.msra.mxu0 0
    %2831 = vmatprep.subr.bf16.mxu0 0
    %2832 = vmatpush1.bf16.msra.mxu0 0
    %2833 = vmatprep.subr.bf16.mxu0 0
    %2834 = vmatpush1.bf16.msra.mxu0 0
    %2835 = vmatprep.subr.bf16.mxu0 0
    %2836 = vmatpush1.bf16.msra.mxu0 0
    %2837 = vmatprep.subr.bf16.mxu0 0
    %2838 = vmatpush1.bf16.msra.mxu0 0
    %2839 = vmatprep.subr.bf16.mxu0 0
    %2840 = vmatpush1.bf16.msra.mxu0 0
    %2841 = vmatprep.subr.bf16.mxu0 0
    %2842 = vmatpush1.bf16.msra.mxu0 0
    %2843 = vmatprep.mubr.bf16.mxu0 0
    %2844 = vmatmul.mubr.bf16.gmra.mrb[0].mxu0 %v2281
    %v2845 = vpop.f32.mrb[0].mxu0
    %v2846 = vadd.f32 %v2368, %v2845
    %v2847 = vpop.f32.mrb[0].mxu0
    %v2848 = vadd.f32 %v2372, %v2847
    %v2849 = vpop.f32.mrb[0].mxu0
    %v2850 = vadd.f32 %v2368, %v2849
    %v2851 = vpop.f32.mrb[0].mxu0
    %v2852 = vadd.f32 %v2372, %v2851
    %2853 = vmatprep.mubr.bf16.mxu0 0
    %2854 = vmatmul.mubr.bf16.gmra.mrb[0].mxu0 %v2282
    %v2855 = vpop.f32.mrb[0].mxu0
    %v2856 = vadd.f32 %v2368, %v2855
    %v2857 = vpop.f32.mrb[0].mxu0
    %v2858 = vadd.f32 %v2372, %v2857
    %v2859 = vpop.f32.mrb[0].mxu0
    %v2860 = vpop.f32.mrb[0].mxu0
    %2861 = vdwg.mxu0
    %2862 = vmatprep.subr.bf16.mxu0 %v2588
    %2863 = vmatpush1.bf16.msra.mxu0 %v2587
    %2864 = vmatprep.subr.bf16.mxu0 %v2596
    %2865 = vmatpush1.bf16.msra.mxu0 %v2595
    %2866 = vmatprep.subr.bf16.mxu0 %v2604
    %2867 = vmatpush1.bf16.msra.mxu0 %v2603
    %2868 = vmatprep.subr.bf16.mxu0 %v2612
    %2869 = vmatpush1.bf16.msra.mxu0 %v2611
    %2870 = vmatprep.subr.bf16.mxu0 %v2620
    %2871 = vmatpush1.bf16.msra.mxu0 %v2619
    %2872 = vmatprep.subr.bf16.mxu0 %v2628
    %2873 = vmatpush1.bf16.msra.mxu0 %v2627
    %2874 = vmatprep.subr.bf16.mxu0 %v2636
    %2875 = vmatpush1.bf16.msra.mxu0 %v2635
    %2876 = vmatprep.subr.bf16.mxu0 %v2644
    %2877 = vmatpush1.bf16.msra.mxu0 %v2643
    %2878 = vmatprep.subr.bf16.mxu0 0
    %2879 = vmatpush1.bf16.msra.mxu0 0
    %2880 = vmatprep.subr.bf16.mxu0 0
    %2881 = vmatpush1.bf16.msra.mxu0 0
    %2882 = vmatprep.subr.bf16.mxu0 0
    %2883 = vmatpush1.bf16.msra.mxu0 0
    %2884 = vmatprep.subr.bf16.mxu0 0
    %2885 = vmatpush1.bf16.msra.mxu0 0
    %2886 = vmatprep.subr.bf16.mxu0 0
    %2887 = vmatpush1.bf16.msra.mxu0 0
    %2888 = vmatprep.subr.bf16.mxu0 0
    %2889 = vmatpush1.bf16.msra.mxu0 0
    %2890 = vmatprep.subr.bf16.mxu0 0
    %2891 = vmatpush1.bf16.msra.mxu0 0
    %2892 = vmatprep.subr.bf16.mxu0 0
    %2893 = vmatpush1.bf16.msra.mxu0 0
    %2894 = vmatprep.mubr.bf16.mxu0 0
    %2895 = vmatmul.mubr.bf16.gmra.mrb[0].mxu0 %v2281
    %v2896 = vpop.f32.mrb[0].mxu0
    %v2897 = vadd.f32 %v2376, %v2896
    %v2898 = vpop.f32.mrb[0].mxu0
    %v2899 = vadd.f32 %v2380, %v2898
    %v2900 = vpop.f32.mrb[0].mxu0
    %v2901 = vadd.f32 %v2376, %v2900
    %v2902 = vpop.f32.mrb[0].mxu0
    %v2903 = vadd.f32 %v2380, %v2902
    %2904 = vmatprep.mubr.bf16.mxu0 0
    %2905 = vmatmul.mubr.bf16.gmra.mrb[0].mxu0 %v2282
    %v2906 = vpop.f32.mrb[0].mxu0
    %v2907 = vadd.f32 %v2376, %v2906
    %v2908 = vpop.f32.mrb[0].mxu0
    %v2909 = vadd.f32 %v2380, %v2908
    %v2910 = vpop.f32.mrb[0].mxu0
    %v2911 = vpop.f32.mrb[0].mxu0
    %2912 = vdwg.mxu0
    %v2913 = vmax.f32 %v2744, %v2795
    %v2914 = vmax.f32 %v2746, %v2797
    %v2915 = vmax.f32 %v2913, %v2846
    %v2916 = vmax.f32 %v2914, %v2848
    %v2917 = vmax.f32 %v2915, %v2897
    %v2918 = vmax.f32 %v2916, %v2899
    %v2919 = vmax.f32 %v2917, %v2918
    %2920 = vmax.xlane.f32.xlu0 %v2919
    %v2921 = vpop.xlane.xlu0 %2920
    %v2922 = vmax.f32 %v2748, %v2799
    %v2923 = vmax.f32 %v2750, %v2801
    %v2924 = vmax.f32 %v2922, %v2850
    %v2925 = vmax.f32 %v2923, %v2852
    %v2926 = vmax.f32 %v2924, %v2901
    %v2927 = vmax.f32 %v2925, %v2903
    %v2928 = vmax.f32 %v2926, %v2927
    %2929 = vmax.xlane.f32.xlu0 %v2928
    %v2930 = vpop.xlane.xlu0 %2929
    %v2931 = vsel %vm893, %v2754, -inf
    %v2932 = vsel %vm893, %v2756, -inf
    %v2933 = vsel %vm893, %v2805, -inf
    %v2934 = vmax.f32 %v2931, %v2933
    %v2935 = vsel %vm893, %v2807, -inf
    %v2936 = vmax.f32 %v2932, %v2935
    %v2937 = vsel %vm893, %v2856, -inf
    %v2938 = vmax.f32 %v2934, %v2937
    %v2939 = vsel %vm893, %v2858, -inf
    %v2940 = vmax.f32 %v2936, %v2939
    %v2941 = vsel %vm893, %v2907, -inf
    %v2942 = vmax.f32 %v2938, %v2941
    %v2943 = vsel %vm893, %v2909, -inf
    %v2944 = vmax.f32 %v2940, %v2943
    %v2945 = vmax.f32 %v2942, %v2944
    %2946 = vmax.xlane.f32.xlu0 %v2945
    %v2947 = vpop.xlane.xlu0 %2946
    %v2948 = vsub.f32 %v2744, %v2921
    %v2949 = vsub.f32 %v2746, %v2921
    %v2950 = vsub.f32 %v2795, %v2921
    %v2951 = vsub.f32 %v2797, %v2921
    %v2952 = vsub.f32 %v2846, %v2921
    %v2953 = vsub.f32 %v2848, %v2921
    %v2954 = vsub.f32 %v2897, %v2921
    %v2955 = vsub.f32 %v2899, %v2921
    %v2956 = vsub.f32 %v2748, %v2930
    %v2957 = vsub.f32 %v2750, %v2930
    %v2958 = vsub.f32 %v2799, %v2930
    %v2959 = vsub.f32 %v2801, %v2930
    %v2960 = vsub.f32 %v2850, %v2930
    %v2961 = vsub.f32 %v2852, %v2930
    %v2962 = vsub.f32 %v2901, %v2930
    %v2963 = vsub.f32 %v2903, %v2930
    %v2964 = vsub.f32 %v2754, %v2947
    %v2965 = vsub.f32 %v2756, %v2947
    %v2966 = vsub.f32 %v2805, %v2947
    %v2967 = vsub.f32 %v2807, %v2947
    %v2968 = vsub.f32 %v2856, %v2947
    %v2969 = vsub.f32 %v2858, %v2947
    %v2970 = vsub.f32 %v2907, %v2947
    %v2971 = vsub.f32 %v2909, %v2947
    %v2972 = vmul.f32 %v2948, 1.442695
    %v2973 = vpow.pop %v2972
    %v2974 = vmul.f32 %v2949, 1.442695
    %v2975 = vpow.pop %v2974
    %v2976 = vmul.f32 %v2950, 1.442695
    %v2977 = vpow.pop %v2976
    %v2978 = vmul.f32 %v2951, 1.442695
    %v2979 = vpow.pop %v2978
    %v2980 = vmul.f32 %v2952, 1.442695
    %v2981 = vpow.pop %v2980
    %v2982 = vmul.f32 %v2953, 1.442695
    %v2983 = vpow.pop %v2982
    %v2984 = vmul.f32 %v2954, 1.442695
    %v2985 = vpow.pop %v2984
    %v2986 = vmul.f32 %v2955, 1.442695
    %v2987 = vpow.pop %v2986
    %v2988 = vmul.f32 %v2956, 1.442695
    %v2989 = vpow.pop %v2988
    %v2990 = vmul.f32 %v2957, 1.442695
    %v2991 = vpow.pop %v2990
    %v2992 = vmul.f32 %v2958, 1.442695
    %v2993 = vpow.pop %v2992
    %v2994 = vmul.f32 %v2959, 1.442695
    %v2995 = vpow.pop %v2994
    %v2996 = vmul.f32 %v2960, 1.442695
    %v2997 = vpow.pop %v2996
    %v2998 = vmul.f32 %v2961, 1.442695
    %v2999 = vpow.pop %v2998
    %v3000 = vmul.f32 %v2962, 1.442695
    %v3001 = vpow.pop %v3000
    %v3002 = vmul.f32 %v2963, 1.442695
    %v3003 = vpow.pop %v3002
    %v3004 = vmul.f32 %v2964, 1.442695
    %v3005 = vpow.pop %v3004
    %v3006 = vmul.f32 %v2965, 1.442695
    %v3007 = vpow.pop %v3006
    %v3008 = vmul.f32 %v2966, 1.442695
    %v3009 = vpow.pop %v3008
    %v3010 = vmul.f32 %v2967, 1.442695
    %v3011 = vpow.pop %v3010
    %v3012 = vmul.f32 %v2968, 1.442695
    %v3013 = vpow.pop %v3012
    %v3014 = vmul.f32 %v2969, 1.442695
    %v3015 = vpow.pop %v3014
    %v3016 = vmul.f32 %v2970, 1.442695
    %v3017 = vpow.pop %v3016
    %v3018 = vmul.f32 %v2971, 1.442695
    %v3019 = vpow.pop %v3018
    %v3020 = vadd.f32 %v2973, %v2975
    %v3021 = vadd.f32 %v3020, %v2977
    %v3022 = vadd.f32 %v3021, %v2979
    %v3023 = vadd.f32 %v3022, %v2981
    %v3024 = vadd.f32 %v3023, %v2983
    %v3025 = vadd.f32 %v3024, %v2985
    %v3026 = vadd.f32 %v3025, %v2987
    %3027 = vadd.xlane.f32.xlu0 %v3026
    %v3028 = vpop.xlane.xlu0 %3027
    %v3029 = vadd.f32 %v2989, %v2991
    %v3030 = vadd.f32 %v3029, %v2993
    %v3031 = vadd.f32 %v3030, %v2995
    %v3032 = vadd.f32 %v3031, %v2997
    %v3033 = vadd.f32 %v3032, %v2999
    %v3034 = vadd.f32 %v3033, %v3001
    %v3035 = vadd.f32 %v3034, %v3003
    %3036 = vadd.xlane.f32.xlu0 %v3035
    %v3037 = vpop.xlane.xlu0 %3036
    %v3038 = vsel %vm893, %v3005, 0.0
    %v3039 = vsel %vm893, %v3007, 0.0
    %v3040 = vadd.f32 %v3038, %v3039
    %v3041 = vsel %vm893, %v3009, 0.0
    %v3042 = vadd.f32 %v3040, %v3041
    %v3043 = vsel %vm893, %v3011, 0.0
    %v3044 = vadd.f32 %v3042, %v3043
    %v3045 = vsel %vm893, %v3013, 0.0
    %v3046 = vadd.f32 %v3044, %v3045
    %v3047 = vsel %vm893, %v3015, 0.0
    %v3048 = vadd.f32 %v3046, %v3047
    %v3049 = vsel %vm893, %v3017, 0.0
    %v3050 = vadd.f32 %v3048, %v3049
    %v3051 = vsel %vm893, %v3019, 0.0
    %v3052 = vadd.f32 %v3050, %v3051
    %3053 = vadd.xlane.f32.xlu0 %v3052
    %v3054 = vpop.xlane.xlu0 %3053
    %v3055 = vrcp.pop %v3028
    %v3056 = vrcp.pop %v3037
    %v3057 = vrcp.pop %v3054
    %v3058 = vpack.c.bf16 %v2989, %v2973
    %v3059 = vpack.c.bf16 %v2991, %v2975
    %v3060 = vpack.c.bf16 %v2993, %v2977
    %v3061 = vpack.c.bf16 %v2995, %v2979
    %v3062 = vpack.c.bf16 %v2997, %v2981
    %v3063 = vpack.c.bf16 %v2999, %v2983
    %v3064 = vpack.c.bf16 %v3001, %v2985
    %v3065 = vpack.c.bf16 %v3003, %v2987
    %v3066 = vpack.c.bf16 %v3005, %v3005
    %v3067 = vpack.c.bf16 %v3007, %v3007
    %v3068 = vpack.c.bf16 %v3009, %v3009
    %v3069 = vpack.c.bf16 %v3011, %v3011
    %v3070 = vpack.c.bf16 %v3013, %v3013
    %v3071 = vpack.c.bf16 %v3015, %v3015
    %v3072 = vpack.c.bf16 %v3017, %v3017
    %v3073 = vpack.c.bf16 %v3019, %v3019
    %v3074 = vld [vmem:[#allocation12] sm:$0xf]
    %v3075 = vld [vmem:[#allocation12 + $0x4] sm:$0xf]
    %v3076 = vld [vmem:[#allocation12 + $0x8] sm:$0xf]
    %v3077 = vld [vmem:[#allocation12 + $0xc] sm:$0xf]
    %v3078 = vld [vmem:[#allocation12 + $0x10] sm:$0xf]
    %v3079 = vld [vmem:[#allocation12 + $0x14] sm:$0xf]
    %v3080 = vld [vmem:[#allocation12 + $0x18] sm:$0xf]
    %v3081 = vld [vmem:[#allocation12 + $0x1c] sm:$0xf]
    %v3082 = vld [vmem:[#allocation12 + $0x20] sm:$0xf]
    %v3083 = vld [vmem:[#allocation12 + $0x24] sm:$0xf]
    %v3084 = vld [vmem:[#allocation12 + $0x28] sm:$0xf]
    %v3085 = vld [vmem:[#allocation12 + $0x2c] sm:$0xf]
    %v3086 = vld [vmem:[#allocation12 + $0x30] sm:$0xf]
    %v3087 = vld [vmem:[#allocation12 + $0x34] sm:$0xf]
    %v3088 = vld [vmem:[#allocation12 + $0x38] sm:$0xf]
    %v3089 = vld [vmem:[#allocation12 + $0x3c] sm:$0xf]
    %v3090 = vld [vmem:[#allocation12 + $0x40] sm:$0xf]
    %v3091 = vld [vmem:[#allocation12 + $0x44] sm:$0xf]
    %v3092 = vld [vmem:[#allocation12 + $0x48] sm:$0xf]
    %v3093 = vld [vmem:[#allocation12 + $0x4c] sm:$0xf]
    %v3094 = vld [vmem:[#allocation12 + $0x50] sm:$0xf]
    %v3095 = vld [vmem:[#allocation12 + $0x54] sm:$0xf]
    %v3096 = vld [vmem:[#allocation12 + $0x58] sm:$0xf]
    %v3097 = vld [vmem:[#allocation12 + $0x5c] sm:$0xf]
    %v3098 = vld [vmem:[#allocation12 + $0x60] sm:$0xf]
    %v3099 = vld [vmem:[#allocation12 + $0x64] sm:$0xf]
    %v3100 = vld [vmem:[#allocation12 + $0x68] sm:$0xf]
    %v3101 = vld [vmem:[#allocation12 + $0x6c] sm:$0xf]
    %v3102 = vld [vmem:[#allocation12 + $0x70] sm:$0xf]
    %v3103 = vld [vmem:[#allocation12 + $0x74] sm:$0xf]
    %v3104 = vld [vmem:[#allocation12 + $0x78] sm:$0xf]
    %v3105 = vld [vmem:[#allocation12 + $0x7c] sm:$0xf]
    %v3106 = vld [vmem:[#allocation12 + $0x80] sm:$0xf]
    %v3107 = vld [vmem:[#allocation12 + $0x84] sm:$0xf]
    %v3108 = vld [vmem:[#allocation12 + $0x88] sm:$0xf]
    %v3109 = vld [vmem:[#allocation12 + $0x8c] sm:$0xf]
    %v3110 = vld [vmem:[#allocation12 + $0x90] sm:$0xf]
    %v3111 = vld [vmem:[#allocation12 + $0x94] sm:$0xf]
    %v3112 = vld [vmem:[#allocation12 + $0x98] sm:$0xf]
    %v3113 = vld [vmem:[#allocation12 + $0x9c] sm:$0xf]
    %v3114 = vld [vmem:[#allocation12 + $0xa0] sm:$0xf]
    %v3115 = vld [vmem:[#allocation12 + $0xa4] sm:$0xf]
    %v3116 = vld [vmem:[#allocation12 + $0xa8] sm:$0xf]
    %v3117 = vld [vmem:[#allocation12 + $0xac] sm:$0xf]
    %v3118 = vld [vmem:[#allocation12 + $0xb0] sm:$0xf]
    %v3119 = vld [vmem:[#allocation12 + $0xb4] sm:$0xf]
    %v3120 = vld [vmem:[#allocation12 + $0xb8] sm:$0xf]
    %v3121 = vld [vmem:[#allocation12 + $0xbc] sm:$0xf]
    %v3122 = vld [vmem:[#allocation12 + $0xc0] sm:$0xf]
    %v3123 = vld [vmem:[#allocation12 + $0xc4] sm:$0xf]
    %v3124 = vld [vmem:[#allocation12 + $0xc8] sm:$0xf]
    %v3125 = vld [vmem:[#allocation12 + $0xcc] sm:$0xf]
    %v3126 = vld [vmem:[#allocation12 + $0xd0] sm:$0xf]
    %v3127 = vld [vmem:[#allocation12 + $0xd4] sm:$0xf]
    %v3128 = vld [vmem:[#allocation12 + $0xd8] sm:$0xf]
    %v3129 = vld [vmem:[#allocation12 + $0xdc] sm:$0xf]
    %v3130 = vld [vmem:[#allocation12 + $0xe0] sm:$0xf]
    %v3131 = vld [vmem:[#allocation12 + $0xe4] sm:$0xf]
    %v3132 = vld [vmem:[#allocation12 + $0xe8] sm:$0xf]
    %v3133 = vld [vmem:[#allocation12 + $0xec] sm:$0xf]
    %v3134 = vld [vmem:[#allocation12 + $0xf0] sm:$0xf]
    %v3135 = vld [vmem:[#allocation12 + $0xf4] sm:$0xf]
    %v3136 = vld [vmem:[#allocation12 + $0xf8] sm:$0xf]
    %v3137 = vld [vmem:[#allocation12 + $0xfc] sm:$0xf]
    %v3138 = vld [vmem:[#allocation12 + $0x100] sm:$0xf]
    %v3139 = vld [vmem:[#allocation12 + $0x104] sm:$0xf]
    %v3140 = vld [vmem:[#allocation12 + $0x108] sm:$0xf]
    %v3141 = vld [vmem:[#allocation12 + $0x10c] sm:$0xf]
    %v3142 = vld [vmem:[#allocation12 + $0x110] sm:$0xf]
    %v3143 = vld [vmem:[#allocation12 + $0x114] sm:$0xf]
    %v3144 = vld [vmem:[#allocation12 + $0x118] sm:$0xf]
    %v3145 = vld [vmem:[#allocation12 + $0x11c] sm:$0xf]
    %v3146 = vld [vmem:[#allocation12 + $0x120] sm:$0xf]
    %v3147 = vld [vmem:[#allocation12 + $0x124] sm:$0xf]
    %v3148 = vld [vmem:[#allocation12 + $0x128] sm:$0xf]
    %v3149 = vld [vmem:[#allocation12 + $0x12c] sm:$0xf]
    %v3150 = vld [vmem:[#allocation12 + $0x130] sm:$0xf]
    %v3151 = vld [vmem:[#allocation12 + $0x134] sm:$0xf]
    %v3152 = vld [vmem:[#allocation12 + $0x138] sm:$0xf]
    %v3153 = vld [vmem:[#allocation12 + $0x13c] sm:$0xf]
    %v3154 = vld [vmem:[#allocation12 + $0x140] sm:$0xf]
    %v3155 = vld [vmem:[#allocation12 + $0x144] sm:$0xf]
    %v3156 = vld [vmem:[#allocation12 + $0x148] sm:$0xf]
    %v3157 = vld [vmem:[#allocation12 + $0x14c] sm:$0xf]
    %v3158 = vld [vmem:[#allocation12 + $0x150] sm:$0xf]
    %v3159 = vld [vmem:[#allocation12 + $0x154] sm:$0xf]
    %v3160 = vld [vmem:[#allocation12 + $0x158] sm:$0xf]
    %v3161 = vld [vmem:[#allocation12 + $0x15c] sm:$0xf]
    %v3162 = vld [vmem:[#allocation12 + $0x160] sm:$0xf]
    %v3163 = vld [vmem:[#allocation12 + $0x164] sm:$0xf]
    %v3164 = vld [vmem:[#allocation12 + $0x168] sm:$0xf]
    %v3165 = vld [vmem:[#allocation12 + $0x16c] sm:$0xf]
    %v3166 = vld [vmem:[#allocation12 + $0x170] sm:$0xf]
    %v3167 = vld [vmem:[#allocation12 + $0x174] sm:$0xf]
    %v3168 = vld [vmem:[#allocation12 + $0x178] sm:$0xf]
    %v3169 = vld [vmem:[#allocation12 + $0x17c] sm:$0xf]
    %v3170 = vld [vmem:[#allocation12 + $0x180] sm:$0xf]
    %v3171 = vld [vmem:[#allocation12 + $0x184] sm:$0xf]
    %v3172 = vld [vmem:[#allocation12 + $0x188] sm:$0xf]
    %v3173 = vld [vmem:[#allocation12 + $0x18c] sm:$0xf]
    %v3174 = vld [vmem:[#allocation12 + $0x190] sm:$0xf]
    %v3175 = vld [vmem:[#allocation12 + $0x194] sm:$0xf]
    %v3176 = vld [vmem:[#allocation12 + $0x198] sm:$0xf]
    %v3177 = vld [vmem:[#allocation12 + $0x19c] sm:$0xf]
    %v3178 = vld [vmem:[#allocation12 + $0x1a0] sm:$0xf]
    %v3179 = vld [vmem:[#allocation12 + $0x1a4] sm:$0xf]
    %v3180 = vld [vmem:[#allocation12 + $0x1a8] sm:$0xf]
    %v3181 = vld [vmem:[#allocation12 + $0x1ac] sm:$0xf]
    %v3182 = vld [vmem:[#allocation12 + $0x1b0] sm:$0xf]
    %v3183 = vld [vmem:[#allocation12 + $0x1b4] sm:$0xf]
    %v3184 = vld [vmem:[#allocation12 + $0x1b8] sm:$0xf]
    %v3185 = vld [vmem:[#allocation12 + $0x1bc] sm:$0xf]
    %v3186 = vld [vmem:[#allocation12 + $0x1c0] sm:$0xf]
    %v3187 = vld [vmem:[#allocation12 + $0x1c4] sm:$0xf]
    %v3188 = vld [vmem:[#allocation12 + $0x1c8] sm:$0xf]
    %v3189 = vld [vmem:[#allocation12 + $0x1cc] sm:$0xf]
    %v3190 = vld [vmem:[#allocation12 + $0x1d0] sm:$0xf]
    %v3191 = vld [vmem:[#allocation12 + $0x1d4] sm:$0xf]
    %v3192 = vld [vmem:[#allocation12 + $0x1d8] sm:$0xf]
    %v3193 = vld [vmem:[#allocation12 + $0x1dc] sm:$0xf]
    %v3194 = vld [vmem:[#allocation12 + $0x1e0] sm:$0xf]
    %v3195 = vld [vmem:[#allocation12 + $0x1e4] sm:$0xf]
    %v3196 = vld [vmem:[#allocation12 + $0x1e8] sm:$0xf]
    %v3197 = vld [vmem:[#allocation12 + $0x1ec] sm:$0xf]
    %v3198 = vld [vmem:[#allocation12 + $0x1f0] sm:$0xf]
    %v3199 = vld [vmem:[#allocation12 + $0x1f4] sm:$0xf]
    %v3200 = vld [vmem:[#allocation12 + $0x1f8] sm:$0xf]
    %v3201 = vld [vmem:[#allocation12 + $0x1fc] sm:$0xf]
    %v3330 = vunpack.c.l.b16 %v3074
    %v3331 = vunpack.c.l.b16 %v3075
    %v3332 = vunpack.c.l.b16 %v3076
    %v3333 = vunpack.c.l.b16 %v3077
    %v3334 = vunpack.c.l.b16 %v3078
    %v3335 = vunpack.c.l.b16 %v3079
    %v3336 = vunpack.c.l.b16 %v3080
    %v3337 = vunpack.c.l.b16 %v3081
    %v3338 = vunpack.c.l.b16 %v3082
    %v3339 = vunpack.c.l.b16 %v3083
    %v3340 = vunpack.c.l.b16 %v3084
    %v3341 = vunpack.c.l.b16 %v3085
    %v3342 = vunpack.c.l.b16 %v3086
    %v3343 = vunpack.c.l.b16 %v3087
    %v3344 = vunpack.c.l.b16 %v3088
    %v3345 = vunpack.c.l.b16 %v3089
    %v3346 = vunpack.c.l.b16 %v3090
    %v3347 = vunpack.c.l.b16 %v3091
    %v3348 = vunpack.c.l.b16 %v3092
    %v3349 = vunpack.c.l.b16 %v3093
    %v3350 = vunpack.c.l.b16 %v3094
    %v3351 = vunpack.c.l.b16 %v3095
    %v3352 = vunpack.c.l.b16 %v3096
    %v3353 = vunpack.c.l.b16 %v3097
    %v3354 = vunpack.c.l.b16 %v3098
    %v3355 = vunpack.c.l.b16 %v3099
    %v3356 = vunpack.c.l.b16 %v3100
    %v3357 = vunpack.c.l.b16 %v3101
    %v3358 = vunpack.c.l.b16 %v3102
    %v3359 = vunpack.c.l.b16 %v3103
    %v3360 = vunpack.c.l.b16 %v3104
    %v3361 = vunpack.c.l.b16 %v3105
    %v3362 = vunpack.c.l.b16 %v3106
    %v3363 = vunpack.c.l.b16 %v3107
    %v3364 = vunpack.c.l.b16 %v3108
    %v3365 = vunpack.c.l.b16 %v3109
    %v3366 = vunpack.c.l.b16 %v3110
    %v3367 = vunpack.c.l.b16 %v3111
    %v3368 = vunpack.c.l.b16 %v3112
    %v3369 = vunpack.c.l.b16 %v3113
    %v3370 = vunpack.c.l.b16 %v3114
    %v3371 = vunpack.c.l.b16 %v3115
    %v3372 = vunpack.c.l.b16 %v3116
    %v3373 = vunpack.c.l.b16 %v3117
    %v3374 = vunpack.c.l.b16 %v3118
    %v3375 = vunpack.c.l.b16 %v3119
    %v3376 = vunpack.c.l.b16 %v3120
    %v3377 = vunpack.c.l.b16 %v3121
    %v3378 = vunpack.c.l.b16 %v3122
    %v3379 = vunpack.c.l.b16 %v3123
    %v3380 = vunpack.c.l.b16 %v3124
    %v3381 = vunpack.c.l.b16 %v3125
    %v3382 = vunpack.c.l.b16 %v3126
    %v3383 = vunpack.c.l.b16 %v3127
    %v3384 = vunpack.c.l.b16 %v3128
    %v3385 = vunpack.c.l.b16 %v3129
    %v3386 = vunpack.c.l.b16 %v3130
    %v3387 = vunpack.c.l.b16 %v3131
    %v3388 = vunpack.c.l.b16 %v3132
    %v3389 = vunpack.c.l.b16 %v3133
    %v3390 = vunpack.c.l.b16 %v3134
    %v3391 = vunpack.c.l.b16 %v3135
    %v3392 = vunpack.c.l.b16 %v3136
    %v3393 = vunpack.c.l.b16 %v3137
    %v3394 = vunpack.c.l.b16 %v3138
    %v3395 = vunpack.c.l.b16 %v3139
    %v3396 = vunpack.c.l.b16 %v3140
    %v3397 = vunpack.c.l.b16 %v3141
    %v3398 = vunpack.c.l.b16 %v3142
    %v3399 = vunpack.c.l.b16 %v3143
    %v3400 = vunpack.c.l.b16 %v3144
    %v3401 = vunpack.c.l.b16 %v3145
    %v3402 = vunpack.c.l.b16 %v3146
    %v3403 = vunpack.c.l.b16 %v3147
    %v3404 = vunpack.c.l.b16 %v3148
    %v3405 = vunpack.c.l.b16 %v3149
    %v3406 = vunpack.c.l.b16 %v3150
    %v3407 = vunpack.c.l.b16 %v3151
    %v3408 = vunpack.c.l.b16 %v3152
    %v3409 = vunpack.c.l.b16 %v3153
    %v3410 = vunpack.c.l.b16 %v3154
    %v3411 = vunpack.c.l.b16 %v3155
    %v3412 = vunpack.c.l.b16 %v3156
    %v3413 = vunpack.c.l.b16 %v3157
    %v3414 = vunpack.c.l.b16 %v3158
    %v3415 = vunpack.c.l.b16 %v3159
    %v3416 = vunpack.c.l.b16 %v3160
    %v3417 = vunpack.c.l.b16 %v3161
    %v3418 = vunpack.c.l.b16 %v3162
    %v3419 = vunpack.c.l.b16 %v3163
    %v3420 = vunpack.c.l.b16 %v3164
    %v3421 = vunpack.c.l.b16 %v3165
    %v3422 = vunpack.c.l.b16 %v3166
    %v3423 = vunpack.c.l.b16 %v3167
    %v3424 = vunpack.c.l.b16 %v3168
    %v3425 = vunpack.c.l.b16 %v3169
    %v3426 = vunpack.c.l.b16 %v3170
    %v3427 = vunpack.c.l.b16 %v3171
    %v3428 = vunpack.c.l.b16 %v3172
    %v3429 = vunpack.c.l.b16 %v3173
    %v3430 = vunpack.c.l.b16 %v3174
    %v3431 = vunpack.c.l.b16 %v3175
    %v3432 = vunpack.c.l.b16 %v3176
    %v3433 = vunpack.c.l.b16 %v3177
    %v3434 = vunpack.c.l.b16 %v3178
    %v3435 = vunpack.c.l.b16 %v3179
    %v3436 = vunpack.c.l.b16 %v3180
    %v3437 = vunpack.c.l.b16 %v3181
    %v3438 = vunpack.c.l.b16 %v3182
    %v3439 = vunpack.c.l.b16 %v3183
    %v3440 = vunpack.c.l.b16 %v3184
    %v3441 = vunpack.c.l.b16 %v3185
    %v3442 = vunpack.c.l.b16 %v3186
    %v3443 = vunpack.c.l.b16 %v3187
    %v3444 = vunpack.c.l.b16 %v3188
    %v3445 = vunpack.c.l.b16 %v3189
    %v3446 = vunpack.c.l.b16 %v3190
    %v3447 = vunpack.c.l.b16 %v3191
    %v3448 = vunpack.c.l.b16 %v3192
    %v3449 = vunpack.c.l.b16 %v3193
    %v3450 = vunpack.c.l.b16 %v3194
    %v3451 = vunpack.c.l.b16 %v3195
    %v3452 = vunpack.c.l.b16 %v3196
    %v3453 = vunpack.c.l.b16 %v3197
    %v3454 = vunpack.c.l.b16 %v3198
    %v3455 = vunpack.c.l.b16 %v3199
    %v3456 = vunpack.c.l.b16 %v3200
    %v3457 = vunpack.c.l.b16 %v3201
    %v3458 = vpack.c.b16 %v3331, %v3330
    %v3459 = vpack.c.b16 %v3333, %v3332
    %v3460 = vpack.c.b16 %v3335, %v3334
    %v3461 = vpack.c.b16 %v3337, %v3336
    %v3462 = vpack.c.b16 %v3339, %v3338
    %v3463 = vpack.c.b16 %v3341, %v3340
    %v3464 = vpack.c.b16 %v3343, %v3342
    %v3465 = vpack.c.b16 %v3345, %v3344
    %v3466 = vpack.c.b16 %v3347, %v3346
    %v3467 = vpack.c.b16 %v3349, %v3348
    %v3468 = vpack.c.b16 %v3351, %v3350
    %v3469 = vpack.c.b16 %v3353, %v3352
    %v3470 = vpack.c.b16 %v3355, %v3354
    %v3471 = vpack.c.b16 %v3357, %v3356
    %v3472 = vpack.c.b16 %v3359, %v3358
    %v3473 = vpack.c.b16 %v3361, %v3360
    %v3474 = vpack.c.b16 %v3363, %v3362
    %v3475 = vpack.c.b16 %v3365, %v3364
    %v3476 = vpack.c.b16 %v3367, %v3366
    %v3477 = vpack.c.b16 %v3369, %v3368
    %v3478 = vpack.c.b16 %v3371, %v3370
    %v3479 = vpack.c.b16 %v3373, %v3372
    %v3480 = vpack.c.b16 %v3375, %v3374
    %v3481 = vpack.c.b16 %v3377, %v3376
    %v3482 = vpack.c.b16 %v3379, %v3378
    %v3483 = vpack.c.b16 %v3381, %v3380
    %v3484 = vpack.c.b16 %v3383, %v3382
    %v3485 = vpack.c.b16 %v3385, %v3384
    %v3486 = vpack.c.b16 %v3387, %v3386
    %v3487 = vpack.c.b16 %v3389, %v3388
    %v3488 = vpack.c.b16 %v3391, %v3390
    %v3489 = vpack.c.b16 %v3393, %v3392
    %v3490 = vpack.c.b16 %v3395, %v3394
    %v3491 = vpack.c.b16 %v3397, %v3396
    %v3492 = vpack.c.b16 %v3399, %v3398
    %v3493 = vpack.c.b16 %v3401, %v3400
    %v3494 = vpack.c.b16 %v3403, %v3402
    %v3495 = vpack.c.b16 %v3405, %v3404
    %v3496 = vpack.c.b16 %v3407, %v3406
    %v3497 = vpack.c.b16 %v3409, %v3408
    %v3498 = vpack.c.b16 %v3411, %v3410
    %v3499 = vpack.c.b16 %v3413, %v3412
    %v3500 = vpack.c.b16 %v3415, %v3414
    %v3501 = vpack.c.b16 %v3417, %v3416
    %v3502 = vpack.c.b16 %v3419, %v3418
    %v3503 = vpack.c.b16 %v3421, %v3420
    %v3504 = vpack.c.b16 %v3423, %v3422
    %v3505 = vpack.c.b16 %v3425, %v3424
    %v3506 = vpack.c.b16 %v3427, %v3426
    %v3507 = vpack.c.b16 %v3429, %v3428
    %v3508 = vpack.c.b16 %v3431, %v3430
    %v3509 = vpack.c.b16 %v3433, %v3432
    %v3510 = vpack.c.b16 %v3435, %v3434
    %v3511 = vpack.c.b16 %v3437, %v3436
    %v3512 = vpack.c.b16 %v3439, %v3438
    %v3513 = vpack.c.b16 %v3441, %v3440
    %v3514 = vpack.c.b16 %v3443, %v3442
    %v3515 = vpack.c.b16 %v3445, %v3444
    %v3516 = vpack.c.b16 %v3447, %v3446
    %v3517 = vpack.c.b16 %v3449, %v3448
    %v3518 = vpack.c.b16 %v3451, %v3450
    %v3519 = vpack.c.b16 %v3453, %v3452
    %v3520 = vpack.c.b16 %v3455, %v3454
    %v3521 = vpack.c.b16 %v3457, %v3456
    %3586 = vmatprep.subr.bf16.mxu0 0
    %3587 = vmatpush1.bf16.msra.mxu0 %v3458
    %3588 = vmatprep.subr.bf16.mxu0 0
    %3589 = vmatpush1.bf16.msra.mxu0 %v3459
    %3590 = vmatprep.subr.bf16.mxu0 0
    %3591 = vmatpush1.bf16.msra.mxu0 %v3460
    %3592 = vmatprep.subr.bf16.mxu0 0
    %3593 = vmatpush1.bf16.msra.mxu0 %v3461
    %3594 = vmatprep.subr.bf16.mxu0 0
    %3595 = vmatpush1.bf16.msra.mxu0 %v3462
    %3596 = vmatprep.subr.bf16.mxu0 0
    %3597 = vmatpush1.bf16.msra.mxu0 %v3463
    %3598 = vmatprep.subr.bf16.mxu0 0
    %3599 = vmatpush1.bf16.msra.mxu0 %v3464
    %3600 = vmatprep.subr.bf16.mxu0 0
    %3601 = vmatpush1.bf16.msra.mxu0 %v3465
    %3602 = vmatprep.subr.bf16.mxu0 0
    %3603 = vmatpush1.bf16.msra.mxu0 %v3466
    %3604 = vmatprep.subr.bf16.mxu0 0
    %3605 = vmatpush1.bf16.msra.mxu0 %v3467
    %3606 = vmatprep.subr.bf16.mxu0 0
    %3607 = vmatpush1.bf16.msra.mxu0 %v3468
    %3608 = vmatprep.subr.bf16.mxu0 0
    %3609 = vmatpush1.bf16.msra.mxu0 %v3469
    %3610 = vmatprep.subr.bf16.mxu0 0
    %3611 = vmatpush1.bf16.msra.mxu0 %v3470
    %3612 = vmatprep.subr.bf16.mxu0 0
    %3613 = vmatpush1.bf16.msra.mxu0 %v3471
    %3614 = vmatprep.subr.bf16.mxu0 0
    %3615 = vmatpush1.bf16.msra.mxu0 %v3472
    %3616 = vmatprep.subr.bf16.mxu0 0
    %3617 = vmatpush1.bf16.msra.mxu0 %v3473
    %3618 = vmatprep.mubr.bf16.mxu0 %v3059
    %3619 = vmatmul.mubr.bf16.gmra.mrb[0].mxu0 %v3058
    %v3620 = vpop.f32.mrb[0].mxu0
    %v3621 = vadd.f32 0.0, %v3620
    %v3622 = vpop.f32.mrb[0].mxu0
    %v3623 = vpop.f32.mrb[0].mxu0
    %v3624 = vadd.f32 0.0, %v3623
    %v3625 = vpop.f32.mrb[0].mxu0
    %3626 = vmatprep.mubr.bf16.mxu0 %v3067
    %3627 = vmatmul.mubr.bf16.gmra.mrb[0].mxu0 %v3066
    %v3628 = vpop.f32.mrb[0].mxu0
    %v3629 = vadd.f32 0.0, %v3628
    %v3630 = vpop.f32.mrb[0].mxu0
    %v3631 = vpop.f32.mrb[0].mxu0
    %v3632 = vpop.f32.mrb[0].mxu0
    %3633 = vdwg.mxu0
    %3634 = vmatprep.subr.bf16.mxu0 0
    %3635 = vmatpush1.bf16.msra.mxu0 %v3474
    %3636 = vmatprep.subr.bf16.mxu0 0
    %3637 = vmatpush1.bf16.msra.mxu0 %v3475
    %3638 = vmatprep.subr.bf16.mxu0 0
    %3639 = vmatpush1.bf16.msra.mxu0 %v3476
    %3640 = vmatprep.subr.bf16.mxu0 0
    %3641 = vmatpush1.bf16.msra.mxu0 %v3477
    %3642 = vmatprep.subr.bf16.mxu0 0
    %3643 = vmatpush1.bf16.msra.mxu0 %v3478
    %3644 = vmatprep.subr.bf16.mxu0 0
    %3645 = vmatpush1.bf16.msra.mxu0 %v3479
    %3646 = vmatprep.subr.bf16.mxu0 0
    %3647 = vmatpush1.bf16.msra.mxu0 %v3480
    %3648 = vmatprep.subr.bf16.mxu0 0
    %3649 = vmatpush1.bf16.msra.mxu0 %v3481
    %3650 = vmatprep.subr.bf16.mxu0 0
    %3651 = vmatpush1.bf16.msra.mxu0 %v3482
    %3652 = vmatprep.subr.bf16.mxu0 0
    %3653 = vmatpush1.bf16.msra.mxu0 %v3483
    %3654 = vmatprep.subr.bf16.mxu0 0
    %3655 = vmatpush1.bf16.msra.mxu0 %v3484
    %3656 = vmatprep.subr.bf16.mxu0 0
    %3657 = vmatpush1.bf16.msra.mxu0 %v3485
    %3658 = vmatprep.subr.bf16.mxu0 0
    %3659 = vmatpush1.bf16.msra.mxu0 %v3486
    %3660 = vmatprep.subr.bf16.mxu0 0
    %3661 = vmatpush1.bf16.msra.mxu0 %v3487
    %3662 = vmatprep.subr.bf16.mxu0 0
    %3663 = vmatpush1.bf16.msra.mxu0 %v3488
    %3664 = vmatprep.subr.bf16.mxu0 0
    %3665 = vmatpush1.bf16.msra.mxu0 %v3489
    %3666 = vmatprep.mubr.bf16.mxu0 %v3061
    %3667 = vmatmul.mubr.bf16.gmra.mrb[0].mxu0 %v3060
    %v3668 = vpop.f32.mrb[0].mxu0
    %v3669 = vadd.f32 %v3621, %v3668
    %v3670 = vpop.f32.mrb[0].mxu0
    %v3671 = vpop.f32.mrb[0].mxu0
    %v3672 = vadd.f32 %v3624, %v3671
    %v3673 = vpop.f32.mrb[0].mxu0
    %3674 = vmatprep.mubr.bf16.mxu0 %v3069
    %3675 = vmatmul.mubr.bf16.gmra.mrb[0].mxu0 %v3068
    %v3676 = vpop.f32.mrb[0].mxu0
    %v3677 = vadd.f32 %v3629, %v3676
    %v3678 = vpop.f32.mrb[0].mxu0
    %v3679 = vpop.f32.mrb[0].mxu0
    %v3680 = vpop.f32.mrb[0].mxu0
    %3681 = vdwg.mxu0
    %3682 = vmatprep.subr.bf16.mxu0 0
    %3683 = vmatpush1.bf16.msra.mxu0 %v3490
    %3684 = vmatprep.subr.bf16.mxu0 0
    %3685 = vmatpush1.bf16.msra.mxu0 %v3491
    %3686 = vmatprep.subr.bf16.mxu0 0
    %3687 = vmatpush1.bf16.msra.mxu0 %v3492
    %3688 = vmatprep.subr.bf16.mxu0 0
    %3689 = vmatpush1.bf16.msra.mxu0 %v3493
    %3690 = vmatprep.subr.bf16.mxu0 0
    %3691 = vmatpush1.bf16.msra.mxu0 %v3494
    %3692 = vmatprep.subr.bf16.mxu0 0
    %3693 = vmatpush1.bf16.msra.mxu0 %v3495
    %3694 = vmatprep.subr.bf16.mxu0 0
    %3695 = vmatpush1.bf16.msra.mxu0 %v3496
    %3696 = vmatprep.subr.bf16.mxu0 0
    %3697 = vmatpush1.bf16.msra.mxu0 %v3497
    %3698 = vmatprep.subr.bf16.mxu0 0
    %3699 = vmatpush1.bf16.msra.mxu0 %v3498
    %3700 = vmatprep.subr.bf16.mxu0 0
    %3701 = vmatpush1.bf16.msra.mxu0 %v3499
    %3702 = vmatprep.subr.bf16.mxu0 0
    %3703 = vmatpush1.bf16.msra.mxu0 %v3500
    %3704 = vmatprep.subr.bf16.mxu0 0
    %3705 = vmatpush1.bf16.msra.mxu0 %v3501
    %3706 = vmatprep.subr.bf16.mxu0 0
    %3707 = vmatpush1.bf16.msra.mxu0 %v3502
    %3708 = vmatprep.subr.bf16.mxu0 0
    %3709 = vmatpush1.bf16.msra.mxu0 %v3503
    %3710 = vmatprep.subr.bf16.mxu0 0
    %3711 = vmatpush1.bf16.msra.mxu0 %v3504
    %3712 = vmatprep.subr.bf16.mxu0 0
    %3713 = vmatpush1.bf16.msra.mxu0 %v3505
    %3714 = vmatprep.mubr.bf16.mxu0 %v3063
    %3715 = vmatmul.mubr.bf16.gmra.mrb[0].mxu0 %v3062
    %v3716 = vpop.f32.mrb[0].mxu0
    %v3717 = vadd.f32 %v3669, %v3716
    %v3718 = vpop.f32.mrb[0].mxu0
    %v3719 = vpop.f32.mrb[0].mxu0
    %v3720 = vadd.f32 %v3672, %v3719
    %v3721 = vpop.f32.mrb[0].mxu0
    %3722 = vmatprep.mubr.bf16.mxu0 %v3071
    %3723 = vmatmul.mubr.bf16.gmra.mrb[0].mxu0 %v3070
    %v3724 = vpop.f32.mrb[0].mxu0
    %v3725 = vadd.f32 %v3677, %v3724
    %v3726 = vpop.f32.mrb[0].mxu0
    %v3727 = vpop.f32.mrb[0].mxu0
    %v3728 = vpop.f32.mrb[0].mxu0
    %3729 = vdwg.mxu0
    %3730 = vmatprep.subr.bf16.mxu0 0
    %3731 = vmatpush1.bf16.msra.mxu0 %v3506
    %3732 = vmatprep.subr.bf16.mxu0 0
    %3733 = vmatpush1.bf16.msra.mxu0 %v3507
    %3734 = vmatprep.subr.bf16.mxu0 0
    %3735 = vmatpush1.bf16.msra.mxu0 %v3508
    %3736 = vmatprep.subr.bf16.mxu0 0
    %3737 = vmatpush1.bf16.msra.mxu0 %v3509
    %3738 = vmatprep.subr.bf16.mxu0 0
    %3739 = vmatpush1.bf16.msra.mxu0 %v3510
    %3740 = vmatprep.subr.bf16.mxu0 0
    %3741 = vmatpush1.bf16.msra.mxu0 %v3511
    %3742 = vmatprep.subr.bf16.mxu0 0
    %3743 = vmatpush1.bf16.msra.mxu0 %v3512
    %3744 = vmatprep.subr.bf16.mxu0 0
    %3745 = vmatpush1.bf16.msra.mxu0 %v3513
    %3746 = vmatprep.subr.bf16.mxu0 0
    %3747 = vmatpush1.bf16.msra.mxu0 %v3514
    %3748 = vmatprep.subr.bf16.mxu0 0
    %3749 = vmatpush1.bf16.msra.mxu0 %v3515
    %3750 = vmatprep.subr.bf16.mxu0 0
    %3751 = vmatpush1.bf16.msra.mxu0 %v3516
    %3752 = vmatprep.subr.bf16.mxu0 0
    %3753 = vmatpush1.bf16.msra.mxu0 %v3517
    %3754 = vmatprep.subr.bf16.mxu0 0
    %3755 = vmatpush1.bf16.msra.mxu0 %v3518
    %3756 = vmatprep.subr.bf16.mxu0 0
    %3757 = vmatpush1.bf16.msra.mxu0 %v3519
    %3758 = vmatprep.subr.bf16.mxu0 0
    %3759 = vmatpush1.bf16.msra.mxu0 %v3520
    %3760 = vmatprep.subr.bf16.mxu0 0
    %3761 = vmatpush1.bf16.msra.mxu0 %v3521
    %3762 = vmatprep.mubr.bf16.mxu0 %v3065
    %3763 = vmatmul.mubr.bf16.gmra.mrb[0].mxu0 %v3064
    %v3764 = vpop.f32.mrb[0].mxu0
    %v3765 = vadd.f32 %v3717, %v3764
    %v3766 = vpop.f32.mrb[0].mxu0
    %v3767 = vpop.f32.mrb[0].mxu0
    %v3768 = vadd.f32 %v3720, %v3767
    %v3769 = vpop.f32.mrb[0].mxu0
    %3770 = vmatprep.mubr.bf16.mxu0 %v3073
    %3771 = vmatmul.mubr.bf16.gmra.mrb[0].mxu0 %v3072
    %v3772 = vpop.f32.mrb[0].mxu0
    %v3773 = vadd.f32 %v3725, %v3772
    %v3774 = vpop.f32.mrb[0].mxu0
    %v3775 = vpop.f32.mrb[0].mxu0
    %v3776 = vpop.f32.mrb[0].mxu0
    %3777 = vdwg.mxu0
    %v3778 = vmul.f32 %v3765, %v3055
    %v3779 = vmul.f32 %v3768, %v3056
    %v3780 = vmul.f32 %v3773, %v3057
    %v3784 = vcombine.high %v3778, %v3778
    %v3786 = vunpack.c.l.s4 1983009808
    %v3787 = vunpack.c.0.s8 %v3786
    %v3788 = vlaneseq
    %v3789 = vshrl.u32 %v3788, 7
    %v3790 = vsub.s32 %v3787, %v3789
    %v3791 = vrot.slane %v3778, %v3790
    %v3793 = vunpack.c.l.s4 1983009808
    %v3794 = vunpack.c.0.s8 %v3793
    %v3795 = vlaneseq
    %v3796 = vshrl.u32 %v3795, 7
    %v3797 = vsub.s32 %v3794, %v3796
    %v3798 = vrot.slane %v3784, %v3797
    %v3799 = vcombine.high %v3791, %v3791
    %v3800 = vcombine.high %v3798, %v3798
    %v3801 = vcombine.high %v3779, %v3779
    %v3803 = vunpack.c.l.s4 1983009808
    %v3804 = vunpack.c.0.s8 %v3803
    %v3805 = vlaneseq
    %v3806 = vshrl.u32 %v3805, 7
    %v3807 = vsub.s32 %v3804, %v3806
    %v3808 = vrot.slane %v3779, %v3807
    %v3810 = vunpack.c.l.s4 1983009808
    %v3811 = vunpack.c.0.s8 %v3810
    %v3812 = vlaneseq
    %v3813 = vshrl.u32 %v3812, 7
    %v3814 = vsub.s32 %v3811, %v3813
    %v3815 = vrot.slane %v3801, %v3814
    %v3816 = vcombine.high %v3808, %v3808
    %v3817 = vcombine.high %v3815, %v3815
    %v3819 = vunpack.c.l.s4 1983009808
    %v3820 = vunpack.c.0.s8 %v3819
    %v3821 = vlaneseq
    %v3822 = vshrl.u32 %v3821, 7
    %v3823 = vsub.s32 %v3820, %v3822
    %v3824 = vrot.slane %v3780, %v3823
    %v3825 = vcombine.high %v3824, %v3824
    %v3826 = vcombine.low %v3791, %v3799
    %v3827 = vcombine.low %v3798, %v3800
    %v3829 = vunpack.c.l.s4 1983009808
    %v3830 = vunpack.c.0.s8 %v3829
    %v3831 = vlaneseq
    %v3832 = vshrl.u32 %v3831, 7
    %v3833 = vsub.s32 %v3830, %v3832
    %v3834 = vrot.slane %v3826, %v3833
    %v3836 = vunpack.c.l.s4 1983009808
    %v3837 = vunpack.c.0.s8 %v3836
    %v3838 = vlaneseq
    %v3839 = vshrl.u32 %v3838, 7
    %v3840 = vsub.s32 %v3837, %v3839
    %v3841 = vrot.slane %v3827, %v3840
    %v3842 = vcombine.low %v3834, %v3841
    %v3844 = vunpack.c.l.s4 1983009808
    %v3845 = vunpack.c.0.s8 %v3844
    %v3846 = vlaneseq
    %v3847 = vshrl.u32 %v3846, 7
    %v3848 = vsub.s32 %v3845, %v3847
    %v3849 = vrot.slane %v3808, %v3848
    %v3850 = vcombine.low %v3816, %v3815
    %v3851 = vcombine.low %v3817, %v3824
    %v3853 = vunpack.c.l.s4 1983009808
    %v3854 = vunpack.c.0.s8 %v3853
    %v3855 = vlaneseq
    %v3856 = vshrl.u32 %v3855, 7
    %v3857 = vsub.s32 %v3854, %v3856
    %v3858 = vrot.slane %v3850, %v3857
    %v3860 = vunpack.c.l.s4 1983009808
    %v3861 = vunpack.c.0.s8 %v3860
    %v3862 = vlaneseq
    %v3863 = vshrl.u32 %v3862, 7
    %v3864 = vsub.s32 %v3861, %v3863
    %v3865 = vrot.slane %v3851, %v3864
    %v3866 = vcombine.low %v3858, %v3865
    %v3868 = vunpack.c.l.s4 1983009808
    %v3869 = vunpack.c.0.s8 %v3868
    %v3870 = vlaneseq
    %v3871 = vshrl.u32 %v3870, 7
    %v3872 = vsub.s32 %v3869, %v3871
    %v3873 = vrot.slane %v3825, %v3872
    %3878 = vst [vmem:[#allocation3 + $0x8] sm:$0xff] %v3842
    %3879 = vst [vmem:[#allocation3 + $0x10] sm:$0x3] %v3849
    %3880 = vst [vmem:[#allocation3 + $0x20] sm:$0xff] %v3866
    %3881 = vst [vmem:[#allocation3 + $0x28] sm:$0x3] %v3873
    %v3882 = vld [vmem:[#allocation3 + $0x6] sm:$0xff]
    %v3883 = vld [vmem:[#allocation3 + $0xe] sm:$0x3f]
    %v3884 = vld [vmem:[#allocation3 + $0x1e] sm:$0xff]
    %v3885 = vld [vmem:[#allocation3 + $0x26] sm:$0x3f]
    %v3890 = vcombine.high %v3882, %v3882
    %v3891 = vcombine.high %v3884, %v3884
    %v3892 = vcombine.low %v3882, %v3890
    %v3893 = vcombine.low %v3883, %v3884
    %v3894 = vcombine.low %v3891, %v3885
    %v3898 = vpack.c.bf16 %v3893, %v3892
    %v3899 = vpack.c.bf16 %v3894, %v3894
    %v3900 = vld [vmem:[#allocation13] sm:$0xf]
    %v3901 = vld [vmem:[#allocation13 + $0x4] sm:$0xf]
    %v3902 = vld [vmem:[#allocation13 + $0x8] sm:$0xf]
    %v3903 = vld [vmem:[#allocation13 + $0xc] sm:$0xf]
    %v3904 = vld [vmem:[#allocation13 + $0x10] sm:$0xf]
    %v3905 = vld [vmem:[#allocation13 + $0x14] sm:$0xf]
    %v3906 = vld [vmem:[#allocation13 + $0x18] sm:$0xf]
    %v3907 = vld [vmem:[#allocation13 + $0x1c] sm:$0xf]
    %v3908 = vld [vmem:[#allocation13 + $0x20] sm:$0xf]
    %v3909 = vld [vmem:[#allocation13 + $0x24] sm:$0xf]
    %v3910 = vld [vmem:[#allocation13 + $0x28] sm:$0xf]
    %v3911 = vld [vmem:[#allocation13 + $0x2c] sm:$0xf]
    %v3912 = vld [vmem:[#allocation13 + $0x30] sm:$0xf]
    %v3913 = vld [vmem:[#allocation13 + $0x34] sm:$0xf]
    %v3914 = vld [vmem:[#allocation13 + $0x38] sm:$0xf]
    %v3915 = vld [vmem:[#allocation13 + $0x3c] sm:$0xf]
    %v3916 = vcombine.high %v3883, %v3883
    %v3917 = vcombine.high %v3885, %v3885
    %vm3918 = vcmask 1042432
    %vm3919 = vcmask 1046532
    %vm3920 = vmor %vm3918, %vm3919
    %v3921 = vrot.slane %v3882, 5
    %v3922 = vrot.slane %v3921, 4
    %v3923 = vrot.slane %v3890, 5
    %v3924 = vsel %vm3920, %v3922, %v3923
    %v3925 = vrot.slane %v3923, 4
    %v3926 = vrot.slane %v3883, 5
    %v3927 = vsel %vm3920, %v3925, %v3926
    %v3928 = vrot.slane %v3926, 4
    %v3929 = vrot.slane %v3916, 5
    %v3930 = vsel %vm3920, %v3928, %v3929
    %v3931 = vrot.slane %v3884, 5
    %v3932 = vrot.slane %v3931, 4
    %v3933 = vrot.slane %v3891, 5
    %v3934 = vsel %vm3920, %v3932, %v3933
    %v3935 = vrot.slane %v3933, 4
    %v3936 = vrot.slane %v3885, 5
    %v3937 = vsel %vm3920, %v3935, %v3936
    %v3938 = vrot.slane %v3936, 4
    %v3939 = vrot.slane %v3917, 5
    %v3940 = vsel %vm3920, %v3938, %v3939
    %v3941 = vcombine.low %v3924, %v3927
    %v3942 = vcombine.low %v3930, %v3934
    %v3943 = vcombine.low %v3937, %v3940
    %v3947 = vpack.c.bf16 %v3942, %v3941
    %v3948 = vpack.c.bf16 %v3943, %v3943
    %s3949 = scalar_lea.vmem [#allocation13], 64
    %v3950 = vld [vmem:[%s3949] sm:$0xf]
    %v3951 = vld [vmem:[%s3949 + $0x4] sm:$0xf]
    %v3952 = vld [vmem:[%s3949 + $0x8] sm:$0xf]
    %v3953 = vld [vmem:[%s3949 + $0xc] sm:$0xf]
    %v3954 = vld [vmem:[%s3949 + $0x10] sm:$0xf]
    %v3955 = vld [vmem:[%s3949 + $0x14] sm:$0xf]
    %v3956 = vld [vmem:[%s3949 + $0x18] sm:$0xf]
    %v3957 = vld [vmem:[%s3949 + $0x1c] sm:$0xf]
    %v3958 = vld [vmem:[%s3949 + $0x20] sm:$0xf]
    %v3959 = vld [vmem:[%s3949 + $0x24] sm:$0xf]
    %v3960 = vld [vmem:[%s3949 + $0x28] sm:$0xf]
    %v3961 = vld [vmem:[%s3949 + $0x2c] sm:$0xf]
    %v3962 = vld [vmem:[%s3949 + $0x30] sm:$0xf]
    %v3963 = vld [vmem:[%s3949 + $0x34] sm:$0xf]
    %v3964 = vld [vmem:[%s3949 + $0x38] sm:$0xf]
    %v3965 = vld [vmem:[%s3949 + $0x3c] sm:$0xf]
    %v3982 = vunpack.c.l.b16 %v3950
    %v3983 = vunpack.c.l.b16 %v3951
    %v3984 = vunpack.c.l.b16 %v3952
    %v3985 = vunpack.c.l.b16 %v3953
    %v3986 = vunpack.c.l.b16 %v3954
    %v3987 = vunpack.c.l.b16 %v3955
    %v3988 = vunpack.c.l.b16 %v3956
    %v3989 = vunpack.c.l.b16 %v3957
    %v3990 = vunpack.c.l.b16 %v3958
    %v3991 = vunpack.c.l.b16 %v3959
    %v3992 = vunpack.c.l.b16 %v3960
    %v3993 = vunpack.c.l.b16 %v3961
    %v3994 = vunpack.c.l.b16 %v3962
    %v3995 = vunpack.c.l.b16 %v3963
    %v3996 = vunpack.c.l.b16 %v3964
    %v3997 = vunpack.c.l.b16 %v3965
    %v3998 = vpack.c.b16 %v3983, %v3982
    %v3999 = vpack.c.b16 %v3985, %v3984
    %v4000 = vpack.c.b16 %v3987, %v3986
    %v4001 = vpack.c.b16 %v3989, %v3988
    %v4002 = vpack.c.b16 %v3991, %v3990
    %v4003 = vpack.c.b16 %v3993, %v3992
    %v4004 = vpack.c.b16 %v3995, %v3994
    %v4005 = vpack.c.b16 %v3997, %v3996
    %4014 = vmatprep.subr.bf16.mxu0 0
    %4015 = vmatpush1.bf16.msra.mxu0 %v3998
    %4016 = vmatprep.subr.bf16.mxu0 0
    %4017 = vmatpush1.bf16.msra.mxu0 %v3999
    %4018 = vmatprep.subr.bf16.mxu0 0
    %4019 = vmatpush1.bf16.msra.mxu0 %v4000
    %4020 = vmatprep.subr.bf16.mxu0 0
    %4021 = vmatpush1.bf16.msra.mxu0 %v4001
    %4022 = vmatprep.subr.bf16.mxu0 0
    %4023 = vmatpush1.bf16.msra.mxu0 %v4002
    %4024 = vmatprep.subr.bf16.mxu0 0
    %4025 = vmatpush1.bf16.msra.mxu0 %v4003
    %4026 = vmatprep.subr.bf16.mxu0 0
    %4027 = vmatpush1.bf16.msra.mxu0 %v4004
    %4028 = vmatprep.subr.bf16.mxu0 0
    %4029 = vmatpush1.bf16.msra.mxu0 %v4005
    %4030 = vmatprep.subr.bf16.mxu0 0
    %4031 = vmatpush1.bf16.msra.mxu0 0
    %4032 = vmatprep.subr.bf16.mxu0 0
    %4033 = vmatpush1.bf16.msra.mxu0 0
    %4034 = vmatprep.subr.bf16.mxu0 0
    %4035 = vmatpush1.bf16.msra.mxu0 0
    %4036 = vmatprep.subr.bf16.mxu0 0
    %4037 = vmatpush1.bf16.msra.mxu0 0
    %4038 = vmatprep.subr.bf16.mxu0 0
    %4039 = vmatpush1.bf16.msra.mxu0 0
    %4040 = vmatprep.subr.bf16.mxu0 0
    %4041 = vmatpush1.bf16.msra.mxu0 0
    %4042 = vmatprep.subr.bf16.mxu0 0
    %4043 = vmatpush1.bf16.msra.mxu0 0
    %4044 = vmatprep.subr.bf16.mxu0 0
    %4045 = vmatpush1.bf16.msra.mxu0 0
    %4046 = vmatprep.mubr.bf16.mxu0 0
    %4047 = vmatmul.mubr.bf16.gmra.mrb[0].mxu0 %v3947
    %v4048 = vpop.f32.mrb[0].mxu0
    %v4049 = vadd.f32 0.0, %v4048
    %v4050 = vpop.f32.mrb[0].mxu0
    %v4051 = vpop.f32.mrb[0].mxu0
    %v4052 = vadd.f32 0.0, %v4051
    %v4053 = vpop.f32.mrb[0].mxu0
    %4054 = vmatprep.mubr.bf16.mxu0 0
    %4055 = vmatmul.mubr.bf16.gmra.mrb[0].mxu0 %v3948
    %v4056 = vpop.f32.mrb[0].mxu0
    %v4057 = vadd.f32 0.0, %v4056
    %v4058 = vpop.f32.mrb[0].mxu0
    %v4059 = vpop.f32.mrb[0].mxu0
    %v4060 = vpop.f32.mrb[0].mxu0
    %4061 = vdwg.mxu0
    %v4078 = vunpack.c.l.b16 %v3900
    %v4079 = vunpack.c.l.b16 %v3901
    %v4080 = vunpack.c.l.b16 %v3902
    %v4081 = vunpack.c.l.b16 %v3903
    %v4082 = vunpack.c.l.b16 %v3904
    %v4083 = vunpack.c.l.b16 %v3905
    %v4084 = vunpack.c.l.b16 %v3906
    %v4085 = vunpack.c.l.b16 %v3907
    %v4086 = vunpack.c.l.b16 %v3908
    %v4087 = vunpack.c.l.b16 %v3909
    %v4088 = vunpack.c.l.b16 %v3910
    %v4089 = vunpack.c.l.b16 %v3911
    %v4090 = vunpack.c.l.b16 %v3912
    %v4091 = vunpack.c.l.b16 %v3913
    %v4092 = vunpack.c.l.b16 %v3914
    %v4093 = vunpack.c.l.b16 %v3915
    %v4094 = vpack.c.b16 %v4079, %v4078
    %v4095 = vpack.c.b16 %v4081, %v4080
    %v4096 = vpack.c.b16 %v4083, %v4082
    %v4097 = vpack.c.b16 %v4085, %v4084
    %v4098 = vpack.c.b16 %v4087, %v4086
    %v4099 = vpack.c.b16 %v4089, %v4088
    %v4100 = vpack.c.b16 %v4091, %v4090
    %v4101 = vpack.c.b16 %v4093, %v4092
    %4110 = vmatprep.subr.bf16.mxu0 0
    %4111 = vmatpush1.bf16.msra.mxu0 %v4094
    %4112 = vmatprep.subr.bf16.mxu0 0
    %4113 = vmatpush1.bf16.msra.mxu0 %v4095
    %4114 = vmatprep.subr.bf16.mxu0 0
    %4115 = vmatpush1.bf16.msra.mxu0 %v4096
    %4116 = vmatprep.subr.bf16.mxu0 0
    %4117 = vmatpush1.bf16.msra.mxu0 %v4097
    %4118 = vmatprep.subr.bf16.mxu0 0
    %4119 = vmatpush1.bf16.msra.mxu0 %v4098
    %4120 = vmatprep.subr.bf16.mxu0 0
    %4121 = vmatpush1.bf16.msra.mxu0 %v4099
    %4122 = vmatprep.subr.bf16.mxu0 0
    %4123 = vmatpush1.bf16.msra.mxu0 %v4100
    %4124 = vmatprep.subr.bf16.mxu0 0
    %4125 = vmatpush1.bf16.msra.mxu0 %v4101
    %4126 = vmatprep.subr.bf16.mxu0 0
    %4127 = vmatpush1.bf16.msra.mxu0 0
    %4128 = vmatprep.subr.bf16.mxu0 0
    %4129 = vmatpush1.bf16.msra.mxu0 0
    %4130 = vmatprep.subr.bf16.mxu0 0
    %4131 = vmatpush1.bf16.msra.mxu0 0
    %4132 = vmatprep.subr.bf16.mxu0 0
    %4133 = vmatpush1.bf16.msra.mxu0 0
    %4134 = vmatprep.subr.bf16.mxu0 0
    %4135 = vmatpush1.bf16.msra.mxu0 0
    %4136 = vmatprep.subr.bf16.mxu0 0
    %4137 = vmatpush1.bf16.msra.mxu0 0
    %4138 = vmatprep.subr.bf16.mxu0 0
    %4139 = vmatpush1.bf16.msra.mxu0 0
    %4140 = vmatprep.subr.bf16.mxu0 0
    %4141 = vmatpush1.bf16.msra.mxu0 0
    %4142 = vmatprep.mubr.bf16.mxu0 0
    %4143 = vmatmul.mubr.bf16.gmra.mrb[0].mxu0 %v3898
    %v4144 = vpop.f32.mrb[0].mxu0
    %v4145 = vadd.f32 %v4049, %v4144
    %v4146 = vpop.f32.mrb[0].mxu0
    %v4147 = vpop.f32.mrb[0].mxu0
    %v4148 = vadd.f32 %v4052, %v4147
    %v4149 = vpop.f32.mrb[0].mxu0
    %4150 = vmatprep.mubr.bf16.mxu0 0
    %4151 = vmatmul.mubr.bf16.gmra.mrb[0].mxu0 %v3899
    %v4152 = vpop.f32.mrb[0].mxu0
    %v4153 = vadd.f32 %v4057, %v4152
    %v4154 = vpop.f32.mrb[0].mxu0
    %v4155 = vpop.f32.mrb[0].mxu0
    %v4156 = vpop.f32.mrb[0].mxu0
    %4157 = vdwg.mxu0
    %vm4158 = vcmask 1041408
    %vm4159 = vcmask 1045508
    %vm4160 = vmor %vm4158, %vm4159
    %v4161 = vrot.slane %v3882, 6
    %v4162 = vrot.slane %v4161, 4
    %v4163 = vrot.slane %v3890, 6
    %v4164 = vsel %vm4160, %v4162, %v4163
    %v4165 = vrot.slane %v4163, 4
    %v4166 = vrot.slane %v3883, 6
    %v4167 = vsel %vm4160, %v4165, %v4166
    %v4168 = vrot.slane %v4166, 4
    %v4169 = vrot.slane %v3916, 6
    %v4170 = vsel %vm4160, %v4168, %v4169
    %v4171 = vrot.slane %v3884, 6
    %v4172 = vrot.slane %v4171, 4
    %v4173 = vrot.slane %v3891, 6
    %v4174 = vsel %vm4160, %v4172, %v4173
    %v4175 = vrot.slane %v4173, 4
    %v4176 = vrot.slane %v3885, 6
    %v4177 = vsel %vm4160, %v4175, %v4176
    %v4178 = vrot.slane %v4176, 4
    %v4179 = vrot.slane %v3917, 6
    %v4180 = vsel %vm4160, %v4178, %v4179
    %v4181 = vcombine.low %v4164, %v4167
    %v4182 = vcombine.low %v4170, %v4174
    %v4183 = vcombine.low %v4177, %v4180
    %v4187 = vpack.c.bf16 %v4182, %v4181
    %v4188 = vpack.c.bf16 %v4183, %v4183
    %s4189 = scalar_lea.vmem [#allocation13], 128
    %v4190 = vld [vmem:[%s4189] sm:$0xf]
    %v4191 = vld [vmem:[%s4189 + $0x4] sm:$0xf]
    %v4192 = vld [vmem:[%s4189 + $0x8] sm:$0xf]
    %v4193 = vld [vmem:[%s4189 + $0xc] sm:$0xf]
    %v4194 = vld [vmem:[%s4189 + $0x10] sm:$0xf]
    %v4195 = vld [vmem:[%s4189 + $0x14] sm:$0xf]
    %v4196 = vld [vmem:[%s4189 + $0x18] sm:$0xf]
    %v4197 = vld [vmem:[%s4189 + $0x1c] sm:$0xf]
    %v4198 = vld [vmem:[%s4189 + $0x20] sm:$0xf]
    %v4199 = vld [vmem:[%s4189 + $0x24] sm:$0xf]
    %v4200 = vld [vmem:[%s4189 + $0x28] sm:$0xf]
    %v4201 = vld [vmem:[%s4189 + $0x2c] sm:$0xf]
    %v4202 = vld [vmem:[%s4189 + $0x30] sm:$0xf]
    %v4203 = vld [vmem:[%s4189 + $0x34] sm:$0xf]
    %v4204 = vld [vmem:[%s4189 + $0x38] sm:$0xf]
    %v4205 = vld [vmem:[%s4189 + $0x3c] sm:$0xf]
    %v4222 = vunpack.c.l.b16 %v4190
    %v4223 = vunpack.c.l.b16 %v4191
    %v4224 = vunpack.c.l.b16 %v4192
    %v4225 = vunpack.c.l.b16 %v4193
    %v4226 = vunpack.c.l.b16 %v4194
    %v4227 = vunpack.c.l.b16 %v4195
    %v4228 = vunpack.c.l.b16 %v4196
    %v4229 = vunpack.c.l.b16 %v4197
    %v4230 = vunpack.c.l.b16 %v4198
    %v4231 = vunpack.c.l.b16 %v4199
    %v4232 = vunpack.c.l.b16 %v4200
    %v4233 = vunpack.c.l.b16 %v4201
    %v4234 = vunpack.c.l.b16 %v4202
    %v4235 = vunpack.c.l.b16 %v4203
    %v4236 = vunpack.c.l.b16 %v4204
    %v4237 = vunpack.c.l.b16 %v4205
    %v4238 = vpack.c.b16 %v4223, %v4222
    %v4239 = vpack.c.b16 %v4225, %v4224
    %v4240 = vpack.c.b16 %v4227, %v4226
    %v4241 = vpack.c.b16 %v4229, %v4228
    %v4242 = vpack.c.b16 %v4231, %v4230
    %v4243 = vpack.c.b16 %v4233, %v4232
    %v4244 = vpack.c.b16 %v4235, %v4234
    %v4245 = vpack.c.b16 %v4237, %v4236
    %4254 = vmatprep.subr.bf16.mxu0 0
    %4255 = vmatpush1.bf16.msra.mxu0 %v4238
    %4256 = vmatprep.subr.bf16.mxu0 0
    %4257 = vmatpush1.bf16.msra.mxu0 %v4239
    %4258 = vmatprep.subr.bf16.mxu0 0
    %4259 = vmatpush1.bf16.msra.mxu0 %v4240
    %4260 = vmatprep.subr.bf16.mxu0 0
    %4261 = vmatpush1.bf16.msra.mxu0 %v4241
    %4262 = vmatprep.subr.bf16.mxu0 0
    %4263 = vmatpush1.bf16.msra.mxu0 %v4242
    %4264 = vmatprep.subr.bf16.mxu0 0
    %4265 = vmatpush1.bf16.msra.mxu0 %v4243
    %4266 = vmatprep.subr.bf16.mxu0 0
    %4267 = vmatpush1.bf16.msra.mxu0 %v4244
    %4268 = vmatprep.subr.bf16.mxu0 0
    %4269 = vmatpush1.bf16.msra.mxu0 %v4245
    %4270 = vmatprep.subr.bf16.mxu0 0
    %4271 = vmatpush1.bf16.msra.mxu0 0
    %4272 = vmatprep.subr.bf16.mxu0 0
    %4273 = vmatpush1.bf16.msra.mxu0 0
    %4274 = vmatprep.subr.bf16.mxu0 0
    %4275 = vmatpush1.bf16.msra.mxu0 0
    %4276 = vmatprep.subr.bf16.mxu0 0
    %4277 = vmatpush1.bf16.msra.mxu0 0
    %4278 = vmatprep.subr.bf16.mxu0 0
    %4279 = vmatpush1.bf16.msra.mxu0 0
    %4280 = vmatprep.subr.bf16.mxu0 0
    %4281 = vmatpush1.bf16.msra.mxu0 0
    %4282 = vmatprep.subr.bf16.mxu0 0
    %4283 = vmatpush1.bf16.msra.mxu0 0
    %4284 = vmatprep.subr.bf16.mxu0 0
    %4285 = vmatpush1.bf16.msra.mxu0 0
    %4286 = vmatprep.mubr.bf16.mxu0 0
    %4287 = vmatmul.mubr.bf16.gmra.mrb[0].mxu0 %v4187
    %v4288 = vpop.f32.mrb[0].mxu0
    %v4289 = vadd.f32 0.0, %v4288
    %v4290 = vpop.f32.mrb[0].mxu0
    %v4291 = vpop.f32.mrb[0].mxu0
    %v4292 = vadd.f32 0.0, %v4291
    %v4293 = vpop.f32.mrb[0].mxu0
    %4294 = vmatprep.mubr.bf16.mxu0 0
    %4295 = vmatmul.mubr.bf16.gmra.mrb[0].mxu0 %v4188
    %v4296 = vpop.f32.mrb[0].mxu0
    %v4297 = vadd.f32 0.0, %v4296
    %v4298 = vpop.f32.mrb[0].mxu0
    %v4299 = vpop.f32.mrb[0].mxu0
    %v4300 = vpop.f32.mrb[0].mxu0
    %4301 = vdwg.mxu0
    %v4302 = vadd.f32 %v4145, %v4289
    %v4303 = vadd.f32 %v4148, %v4292
    %v4304 = vadd.f32 %v4153, %v4297
    %v4305 = vld [vmem:[%s17] sm:$0x1]
    %v4307 = vlaneseq
    %v4308 = vshrl.u32 %v4307, 7
    %v4309 = vsub.s32 0, %v4308
    %v4310 = vrot.slane %v4305, %v4309
    %v4312 = vadd.f32 %v4302, %v4310
    %v4313 = vadd.f32 %v4303, %v4310
    %v4314 = vadd.f32 %v4304, %v4310
    %v4315 = vadd.f32 %v4312, %v4313
    %v4316 = vadd.f32 %v4315, %v4314
    %v4317 = vrot.slane %v4316, 4
    %v4318 = vadd.f32 %v4316, %v4317
    %v4319 = vrot.slane %v4318, 2
    %v4320 = vadd.f32 %v4318, %v4319
    %v4321 = vrot.slane %v4320, 1
    %v4322 = vadd.f32 %v4320, %v4321
    %v4323 = vmul.f32 %v4322, %v1591
    %v4324 = vsub.f32 %v4312, %v4323
    %v4325 = vsub.f32 %v4313, %v4323
    %v4326 = vsub.f32 %v4314, %v4323
    %v4327 = vmul.f32 %v4324, %v4324
    %v4328 = vmul.f32 %v4325, %v4325
    %v4329 = vmul.f32 %v4326, %v4326
    %v4330 = vadd.f32 %v4327, %v4328
    %v4331 = vadd.f32 %v4330, %v4329
    %v4332 = vrot.slane %v4331, 4
    %v4333 = vadd.f32 %v4331, %v4332
    %v4334 = vrot.slane %v4333, 2
    %v4335 = vadd.f32 %v4333, %v4334
    %v4336 = vrot.slane %v4335, 1
    %v4337 = vadd.f32 %v4335, %v4336
    %v4338 = vmul.f32 %v4337, %v1591
    %v4339 = vadd.f32 %v4338, 1e-05
    %v4340 = vrsqrt.pop %v4339
    %v4341 = vmul.f32 %v4324, %v4340
    %v4342 = vmul.f32 %v4325, %v4340
    %v4343 = vmul.f32 %v4326, %v4340
    %v4344 = vld [vmem:[%s18] sm:$0x1]
    %v4346 = vlaneseq
    %v4347 = vshrl.u32 %v4346, 7
    %v4348 = vsub.s32 0, %v4347
    %v4349 = vrot.slane %v4344, %v4348
    %v4351 = vmul.f32 %v4341, %v4349
    %v4352 = vmul.f32 %v4342, %v4349
    %v4353 = vmul.f32 %v4343, %v4349
    %v4354 = vld [vmem:[%s19] sm:$0x1]
    %v4356 = vlaneseq
    %v4357 = vshrl.u32 %v4356, 7
    %v4358 = vsub.s32 0, %v4357
    %v4359 = vrot.slane %v4354, %v4358
    %v4361 = vadd.f32 %v4351, %v4359
    %v4362 = vadd.f32 %v4352, %v4359
    %v4363 = vadd.f32 %v4353, %v4359
    %vm4364 = vcmp.ge.f32.partialorder %v4361, 0.0
    %vm4365 = vcmp.ge.f32.partialorder %v4362, 0.0
    %vm4366 = vcmp.ge.f32.partialorder %v4363, 0.0
    %v4367 = vmul.f32 %v4361, 0.2
    %v4368 = vmul.f32 %v4362, 0.2
    %v4369 = vmul.f32 %v4363, 0.2
    %v4370 = vsel %vm4364, %v4361, %v4367
    %v4371 = vsel %vm4365, %v4362, %v4368
    %v4372 = vsel %vm4366, %v4363, %v4369
    %v4376 = vcombine.high %v4370, %v4370
    %v4377 = vcombine.high %v4371, %v4371
    %v4378 = vcombine.high %v4372, %v4372
    %v4380 = vcombine.low %v4370, %v4376
    %v4381 = vcombine.low %v4377, %v4372
    %4384 = vst [vmem:[#allocation3 + $0x8] sm:$0xff] %v4380
    %4385 = vst [vmem:[#allocation3 + $0x10] sm:$0xf] %v4371
    %4386 = vst [vmem:[#allocation3 + $0x20] sm:$0xff] %v4381
    %4387 = vst [vmem:[#allocation3 + $0x28] sm:$0xf] %v4378
    %v4388 = vld [vmem:[#allocation3 + $0x6] sm:$0xff]
    %v4389 = vld [vmem:[#allocation3 + $0xe] sm:$0xff]
    %v4390 = vld [vmem:[#allocation3 + $0x1e] sm:$0xff]
    %v4391 = vld [vmem:[#allocation3 + $0x26] sm:$0xff]
    %v4396 = vcombine.high %v4388, %v4388
    %v4398 = vunpack.c.l.s4 1983009808
    %v4399 = vunpack.c.0.s8 %v4398
    %v4400 = vlaneseq
    %v4401 = vshrl.u32 %v4400, 7
    %v4402 = vsub.s32 %v4399, %v4401
    %v4403 = vrot.slane %v4388, %v4402
    %v4405 = vunpack.c.l.s4 1983009808
    %v4406 = vunpack.c.0.s8 %v4405
    %v4407 = vlaneseq
    %v4408 = vshrl.u32 %v4407, 7
    %v4409 = vsub.s32 %v4406, %v4408
    %v4410 = vrot.slane %v4396, %v4409
    %v4411 = vcombine.high %v4403, %v4403
    %v4412 = vcombine.high %v4410, %v4410
    %v4413 = vcombine.high %v4389, %v4389
    %v4415 = vunpack.c.l.s4 1983009808
    %v4416 = vunpack.c.0.s8 %v4415
    %v4417 = vlaneseq
    %v4418 = vshrl.u32 %v4417, 7
    %v4419 = vsub.s32 %v4416, %v4418
    %v4420 = vrot.slane %v4389, %v4419
    %v4422 = vunpack.c.l.s4 1983009808
    %v4423 = vunpack.c.0.s8 %v4422
    %v4424 = vlaneseq
    %v4425 = vshrl.u32 %v4424, 7
    %v4426 = vsub.s32 %v4423, %v4425
    %v4427 = vrot.slane %v4413, %v4426
    %v4428 = vcombine.high %v4420, %v4420
    %v4429 = vcombine.high %v4390, %v4390
    %v4431 = vunpack.c.l.s4 1983009808
    %v4432 = vunpack.c.0.s8 %v4431
    %v4433 = vlaneseq
    %v4434 = vshrl.u32 %v4433, 7
    %v4435 = vsub.s32 %v4432, %v4434
    %v4436 = vrot.slane %v4390, %v4435
    %v4438 = vunpack.c.l.s4 1983009808
    %v4439 = vunpack.c.0.s8 %v4438
    %v4440 = vlaneseq
    %v4441 = vshrl.u32 %v4440, 7
    %v4442 = vsub.s32 %v4439, %v4441
    %v4443 = vrot.slane %v4429, %v4442
    %v4444 = vcombine.high %v4436, %v4436
    %v4445 = vcombine.high %v4443, %v4443
    %v4446 = vcombine.high %v4391, %v4391
    %v4448 = vunpack.c.l.s4 1983009808
    %v4449 = vunpack.c.0.s8 %v4448
    %v4450 = vlaneseq
    %v4451 = vshrl.u32 %v4450, 7
    %v4452 = vsub.s32 %v4449, %v4451
    %v4453 = vrot.slane %v4391, %v4452
    %v4455 = vunpack.c.l.s4 1983009808
    %v4456 = vunpack.c.0.s8 %v4455
    %v4457 = vlaneseq
    %v4458 = vshrl.u32 %v4457, 7
    %v4459 = vsub.s32 %v4456, %v4458
    %v4460 = vrot.slane %v4446, %v4459
    %v4461 = vcombine.high %v4453, %v4453
    %v4462 = vcombine.low %v4403, %v4411
    %v4463 = vcombine.low %v4410, %v4412
    %v4465 = vunpack.c.l.s4 1983009808
    %v4466 = vunpack.c.0.s8 %v4465
    %v4467 = vlaneseq
    %v4468 = vshrl.u32 %v4467, 7
    %v4469 = vsub.s32 %v4466, %v4468
    %v4470 = vrot.slane %v4462, %v4469
    %v4472 = vunpack.c.l.s4 1983009808
    %v4473 = vunpack.c.0.s8 %v4472
    %v4474 = vlaneseq
    %v4475 = vshrl.u32 %v4474, 7
    %v4476 = vsub.s32 %v4473, %v4475
    %v4477 = vrot.slane %v4463, %v4476
    %v4478 = vcombine.low %v4470, %v4477
    %v4479 = vcombine.low %v4420, %v4428
    %v4480 = vcombine.low %v4427, %v4436
    %v4482 = vunpack.c.l.s4 1983009808
    %v4483 = vunpack.c.0.s8 %v4482
    %v4484 = vlaneseq
    %v4485 = vshrl.u32 %v4484, 7
    %v4486 = vsub.s32 %v4483, %v4485
    %v4487 = vrot.slane %v4479, %v4486
    %v4489 = vunpack.c.l.s4 1983009808
    %v4490 = vunpack.c.0.s8 %v4489
    %v4491 = vlaneseq
    %v4492 = vshrl.u32 %v4491, 7
    %v4493 = vsub.s32 %v4490, %v4492
    %v4494 = vrot.slane %v4480, %v4493
    %v4495 = vcombine.low %v4487, %v4494
    %v4496 = vcombine.low %v4444, %v4443
    %v4497 = vcombine.low %v4445, %v4453
    %v4499 = vunpack.c.l.s4 1983009808
    %v4500 = vunpack.c.0.s8 %v4499
    %v4501 = vlaneseq
    %v4502 = vshrl.u32 %v4501, 7
    %v4503 = vsub.s32 %v4500, %v4502
    %v4504 = vrot.slane %v4496, %v4503
    %v4506 = vunpack.c.l.s4 1983009808
    %v4507 = vunpack.c.0.s8 %v4506
    %v4508 = vlaneseq
    %v4509 = vshrl.u32 %v4508, 7
    %v4510 = vsub.s32 %v4507, %v4509
    %v4511 = vrot.slane %v4497, %v4510
    %v4512 = vcombine.low %v4504, %v4511
    %v4513 = vcombine.low %v4461, %v4460
    %v4515 = vunpack.c.l.s4 1983009808
    %v4516 = vunpack.c.0.s8 %v4515
    %v4517 = vlaneseq
    %v4518 = vshrl.u32 %v4517, 7
    %v4519 = vsub.s32 %v4516, %v4518
    %v4520 = vrot.slane %v4513, %v4519
    %v4525 = vpack.c.bf16 %v4495, %v4478
    %v4526 = vpack.c.bf16 %v4520, %v4512
    %v4527 = vld [vmem:[#allocation15] sm:$0xf]
    %v4528 = vld [vmem:[#allocation15 + $0x4] sm:$0xf]
    %v4529 = vld [vmem:[#allocation15 + $0x8] sm:$0xf]
    %v4530 = vld [vmem:[#allocation15 + $0xc] sm:$0xf]
    %v4531 = vld [vmem:[#allocation15 + $0x10] sm:$0xf]
    %v4532 = vld [vmem:[#allocation15 + $0x14] sm:$0xf]
    %v4533 = vld [vmem:[#allocation15 + $0x18] sm:$0xf]
    %v4534 = vld [vmem:[#allocation15 + $0x1c] sm:$0xf]
    %v4535 = vld [vmem:[#allocation15 + $0x20] sm:$0xf]
    %v4536 = vld [vmem:[#allocation15 + $0x24] sm:$0xf]
    %v4537 = vld [vmem:[#allocation15 + $0x28] sm:$0xf]
    %v4538 = vld [vmem:[#allocation15 + $0x2c] sm:$0xf]
    %v4539 = vld [vmem:[#allocation15 + $0x30] sm:$0xf]
    %v4540 = vld [vmem:[#allocation15 + $0x34] sm:$0xf]
    %v4541 = vld [vmem:[#allocation15 + $0x38] sm:$0xf]
    %v4542 = vld [vmem:[#allocation15 + $0x3c] sm:$0xf]
    %v4543 = vcombine.high %v4427, %v4427
    %v4544 = vcombine.high %v4460, %v4460
    %v4545 = vrot.slane %v4403, 7
    %v4546 = vrot.slane %v4545, 2
    %v4547 = vrot.slane %v4411, 7
    %v4548 = vsel %vm376, %v4546, %v4547
    %v4549 = vrot.slane %v4547, 2
    %v4550 = vrot.slane %v4410, 7
    %v4551 = vsel %vm376, %v4549, %v4550
    %v4552 = vrot.slane %v4550, 2
    %v4553 = vrot.slane %v4412, 7
    %v4554 = vsel %vm376, %v4552, %v4553
    %v4555 = vrot.slane %v4553, 2
    %v4556 = vrot.slane %v4420, 7
    %v4557 = vsel %vm376, %v4555, %v4556
    %v4558 = vrot.slane %v4556, 2
    %v4559 = vrot.slane %v4428, 7
    %v4560 = vsel %vm376, %v4558, %v4559
    %v4561 = vrot.slane %v4559, 2
    %v4562 = vrot.slane %v4427, 7
    %v4563 = vsel %vm376, %v4561, %v4562
    %v4564 = vrot.slane %v4562, 2
    %v4565 = vrot.slane %v4543, 7
    %v4566 = vsel %vm376, %v4564, %v4565
    %v4567 = vrot.slane %v4436, 7
    %v4568 = vrot.slane %v4567, 2
    %v4569 = vrot.slane %v4444, 7
    %v4570 = vsel %vm376, %v4568, %v4569
    %v4571 = vrot.slane %v4569, 2
    %v4572 = vrot.slane %v4443, 7
    %v4573 = vsel %vm376, %v4571, %v4572
    %v4574 = vrot.slane %v4572, 2
    %v4575 = vrot.slane %v4445, 7
    %v4576 = vsel %vm376, %v4574, %v4575
    %v4577 = vrot.slane %v4575, 2
    %v4578 = vrot.slane %v4453, 7
    %v4579 = vsel %vm376, %v4577, %v4578
    %v4580 = vrot.slane %v4578, 2
    %v4581 = vrot.slane %v4461, 7
    %v4582 = vsel %vm376, %v4580, %v4581
    %v4583 = vrot.slane %v4581, 2
    %v4584 = vrot.slane %v4460, 7
    %v4585 = vsel %vm376, %v4583, %v4584
    %v4586 = vrot.slane %v4584, 2
    %v4587 = vrot.slane %v4544, 7
    %v4588 = vsel %vm376, %v4586, %v4587
    %v4589 = vcombine.low %v4548, %v4551
    %v4590 = vcombine.low %v4554, %v4557
    %v4592 = vunpack.c.l.s4 1983009808
    %v4593 = vunpack.c.0.s8 %v4592
    %v4594 = vlaneseq
    %v4595 = vshrl.u32 %v4594, 7
    %v4596 = vsub.s32 %v4593, %v4595
    %v4597 = vrot.slane %v4589, %v4596
    %v4599 = vunpack.c.l.s4 1983009808
    %v4600 = vunpack.c.0.s8 %v4599
    %v4601 = vlaneseq
    %v4602 = vshrl.u32 %v4601, 7
    %v4603 = vsub.s32 %v4600, %v4602
    %v4604 = vrot.slane %v4590, %v4603
    %v4605 = vcombine.low %v4597, %v4604
    %v4606 = vcombine.low %v4560, %v4563
    %v4607 = vcombine.low %v4566, %v4570
    %v4609 = vunpack.c.l.s4 1983009808
    %v4610 = vunpack.c.0.s8 %v4609
    %v4611 = vlaneseq
    %v4612 = vshrl.u32 %v4611, 7
    %v4613 = vsub.s32 %v4610, %v4612
    %v4614 = vrot.slane %v4606, %v4613
    %v4616 = vunpack.c.l.s4 1983009808
    %v4617 = vunpack.c.0.s8 %v4616
    %v4618 = vlaneseq
    %v4619 = vshrl.u32 %v4618, 7
    %v4620 = vsub.s32 %v4617, %v4619
    %v4621 = vrot.slane %v4607, %v4620
    %v4622 = vcombine.low %v4614, %v4621
    %v4623 = vcombine.low %v4573, %v4576
    %v4624 = vcombine.low %v4579, %v4582
    %v4626 = vunpack.c.l.s4 1983009808
    %v4627 = vunpack.c.0.s8 %v4626
    %v4628 = vlaneseq
    %v4629 = vshrl.u32 %v4628, 7
    %v4630 = vsub.s32 %v4627, %v4629
    %v4631 = vrot.slane %v4623, %v4630
    %v4633 = vunpack.c.l.s4 1983009808
    %v4634 = vunpack.c.0.s8 %v4633
    %v4635 = vlaneseq
    %v4636 = vshrl.u32 %v4635, 7
    %v4637 = vsub.s32 %v4634, %v4636
    %v4638 = vrot.slane %v4624, %v4637
    %v4639 = vcombine.low %v4631, %v4638
    %v4640 = vcombine.low %v4585, %v4588
    %v4642 = vunpack.c.l.s4 1983009808
    %v4643 = vunpack.c.0.s8 %v4642
    %v4644 = vlaneseq
    %v4645 = vshrl.u32 %v4644, 7
    %v4646 = vsub.s32 %v4643, %v4645
    %v4647 = vrot.slane %v4640, %v4646
    %v4652 = vpack.c.bf16 %v4622, %v4605
    %v4653 = vpack.c.bf16 %v4647, %v4639
    %s4654 = scalar_lea.vmem [#allocation15], 64
    %v4655 = vld [vmem:[%s4654] sm:$0xf]
    %v4656 = vld [vmem:[%s4654 + $0x4] sm:$0xf]
    %v4657 = vld [vmem:[%s4654 + $0x8] sm:$0xf]
    %v4658 = vld [vmem:[%s4654 + $0xc] sm:$0xf]
    %v4659 = vld [vmem:[%s4654 + $0x10] sm:$0xf]
    %v4660 = vld [vmem:[%s4654 + $0x14] sm:$0xf]
    %v4661 = vld [vmem:[%s4654 + $0x18] sm:$0xf]
    %v4662 = vld [vmem:[%s4654 + $0x1c] sm:$0xf]
    %v4663 = vld [vmem:[%s4654 + $0x20] sm:$0xf]
    %v4664 = vld [vmem:[%s4654 + $0x24] sm:$0xf]
    %v4665 = vld [vmem:[%s4654 + $0x28] sm:$0xf]
    %v4666 = vld [vmem:[%s4654 + $0x2c] sm:$0xf]
    %v4667 = vld [vmem:[%s4654 + $0x30] sm:$0xf]
    %v4668 = vld [vmem:[%s4654 + $0x34] sm:$0xf]
    %v4669 = vld [vmem:[%s4654 + $0x38] sm:$0xf]
    %v4670 = vld [vmem:[%s4654 + $0x3c] sm:$0xf]
    %v4687 = vunpack.c.l.b16 %v4655
    %v4688 = vunpack.c.l.b16 %v4656
    %v4689 = vunpack.c.l.b16 %v4657
    %v4690 = vunpack.c.l.b16 %v4658
    %v4691 = vunpack.c.l.b16 %v4659
    %v4692 = vunpack.c.l.b16 %v4660
    %v4693 = vunpack.c.l.b16 %v4661
    %v4694 = vunpack.c.l.b16 %v4662
    %v4695 = vunpack.c.l.b16 %v4663
    %v4696 = vunpack.c.l.b16 %v4664
    %v4697 = vunpack.c.l.b16 %v4665
    %v4698 = vunpack.c.l.b16 %v4666
    %v4699 = vunpack.c.l.b16 %v4667
    %v4700 = vunpack.c.l.b16 %v4668
    %v4701 = vunpack.c.l.b16 %v4669
    %v4702 = vunpack.c.l.b16 %v4670
    %v4703 = vpack.c.b16 %v4688, %v4687
    %v4704 = vpack.c.b16 %v4690, %v4689
    %v4705 = vpack.c.b16 %v4692, %v4691
    %v4706 = vpack.c.b16 %v4694, %v4693
    %v4707 = vpack.c.b16 %v4696, %v4695
    %v4708 = vpack.c.b16 %v4698, %v4697
    %v4709 = vpack.c.b16 %v4700, %v4699
    %v4710 = vpack.c.b16 %v4702, %v4701
    %4719 = vmatprep.subr.bf16.mxu0 0
    %4720 = vmatpush1.bf16.msra.mxu0 %v4703
    %4721 = vmatprep.subr.bf16.mxu0 0
    %4722 = vmatpush1.bf16.msra.mxu0 %v4704
    %4723 = vmatprep.subr.bf16.mxu0 0
    %4724 = vmatpush1.bf16.msra.mxu0 %v4705
    %4725 = vmatprep.subr.bf16.mxu0 0
    %4726 = vmatpush1.bf16.msra.mxu0 %v4706
    %4727 = vmatprep.subr.bf16.mxu0 0
    %4728 = vmatpush1.bf16.msra.mxu0 %v4707
    %4729 = vmatprep.subr.bf16.mxu0 0
    %4730 = vmatpush1.bf16.msra.mxu0 %v4708
    %4731 = vmatprep.subr.bf16.mxu0 0
    %4732 = vmatpush1.bf16.msra.mxu0 %v4709
    %4733 = vmatprep.subr.bf16.mxu0 0
    %4734 = vmatpush1.bf16.msra.mxu0 %v4710
    %4735 = vmatprep.subr.bf16.mxu0 0
    %4736 = vmatpush1.bf16.msra.mxu0 0
    %4737 = vmatprep.subr.bf16.mxu0 0
    %4738 = vmatpush1.bf16.msra.mxu0 0
    %4739 = vmatprep.subr.bf16.mxu0 0
    %4740 = vmatpush1.bf16.msra.mxu0 0
    %4741 = vmatprep.subr.bf16.mxu0 0
    %4742 = vmatpush1.bf16.msra.mxu0 0
    %4743 = vmatprep.subr.bf16.mxu0 0
    %4744 = vmatpush1.bf16.msra.mxu0 0
    %4745 = vmatprep.subr.bf16.mxu0 0
    %4746 = vmatpush1.bf16.msra.mxu0 0
    %4747 = vmatprep.subr.bf16.mxu0 0
    %4748 = vmatpush1.bf16.msra.mxu0 0
    %4749 = vmatprep.subr.bf16.mxu0 0
    %4750 = vmatpush1.bf16.msra.mxu0 0
    %4751 = vmatprep.mubr.bf16.mxu0 0
    %4752 = vmatmul.mubr.bf16.gmra.mrb[0].mxu0 %v4652
    %v4753 = vpop.f32.mrb[0].mxu0
    %v4754 = vadd.f32 0.0, %v4753
    %v4755 = vpop.f32.mrb[0].mxu0
    %v4756 = vpop.f32.mrb[0].mxu0
    %v4757 = vadd.f32 0.0, %v4756
    %v4758 = vpop.f32.mrb[0].mxu0
    %4759 = vmatprep.mubr.bf16.mxu0 0
    %4760 = vmatmul.mubr.bf16.gmra.mrb[0].mxu0 %v4653
    %v4761 = vpop.f32.mrb[0].mxu0
    %v4762 = vadd.f32 0.0, %v4761
    %v4763 = vpop.f32.mrb[0].mxu0
    %v4764 = vpop.f32.mrb[0].mxu0
    %v4765 = vadd.f32 0.0, %v4764
    %v4766 = vpop.f32.mrb[0].mxu0
    %4767 = vdwg.mxu0
    %v4784 = vunpack.c.l.b16 %v4527
    %v4785 = vunpack.c.l.b16 %v4528
    %v4786 = vunpack.c.l.b16 %v4529
    %v4787 = vunpack.c.l.b16 %v4530
    %v4788 = vunpack.c.l.b16 %v4531
    %v4789 = vunpack.c.l.b16 %v4532
    %v4790 = vunpack.c.l.b16 %v4533
    %v4791 = vunpack.c.l.b16 %v4534
    %v4792 = vunpack.c.l.b16 %v4535
    %v4793 = vunpack.c.l.b16 %v4536
    %v4794 = vunpack.c.l.b16 %v4537
    %v4795 = vunpack.c.l.b16 %v4538
    %v4796 = vunpack.c.l.b16 %v4539
    %v4797 = vunpack.c.l.b16 %v4540
    %v4798 = vunpack.c.l.b16 %v4541
    %v4799 = vunpack.c.l.b16 %v4542
    %v4800 = vpack.c.b16 %v4785, %v4784
    %v4801 = vpack.c.b16 %v4787, %v4786
    %v4802 = vpack.c.b16 %v4789, %v4788
    %v4803 = vpack.c.b16 %v4791, %v4790
    %v4804 = vpack.c.b16 %v4793, %v4792
    %v4805 = vpack.c.b16 %v4795, %v4794
    %v4806 = vpack.c.b16 %v4797, %v4796
    %v4807 = vpack.c.b16 %v4799, %v4798
    %4816 = vmatprep.subr.bf16.mxu0 0
    %4817 = vmatpush1.bf16.msra.mxu0 %v4800
    %4818 = vmatprep.subr.bf16.mxu0 0
    %4819 = vmatpush1.bf16.msra.mxu0 %v4801
    %4820 = vmatprep.subr.bf16.mxu0 0
    %4821 = vmatpush1.bf16.msra.mxu0 %v4802
    %4822 = vmatprep.subr.bf16.mxu0 0
    %4823 = vmatpush1.bf16.msra.mxu0 %v4803
    %4824 = vmatprep.subr.bf16.mxu0 0
    %4825 = vmatpush1.bf16.msra.mxu0 %v4804
    %4826 = vmatprep.subr.bf16.mxu0 0
    %4827 = vmatpush1.bf16.msra.mxu0 %v4805
    %4828 = vmatprep.subr.bf16.mxu0 0
    %4829 = vmatpush1.bf16.msra.mxu0 %v4806
    %4830 = vmatprep.subr.bf16.mxu0 0
    %4831 = vmatpush1.bf16.msra.mxu0 %v4807
    %4832 = vmatprep.subr.bf16.mxu0 0
    %4833 = vmatpush1.bf16.msra.mxu0 0
    %4834 = vmatprep.subr.bf16.mxu0 0
    %4835 = vmatpush1.bf16.msra.mxu0 0
    %4836 = vmatprep.subr.bf16.mxu0 0
    %4837 = vmatpush1.bf16.msra.mxu0 0
    %4838 = vmatprep.subr.bf16.mxu0 0
    %4839 = vmatpush1.bf16.msra.mxu0 0
    %4840 = vmatprep.subr.bf16.mxu0 0
    %4841 = vmatpush1.bf16.msra.mxu0 0
    %4842 = vmatprep.subr.bf16.mxu0 0
    %4843 = vmatpush1.bf16.msra.mxu0 0
    %4844 = vmatprep.subr.bf16.mxu0 0
    %4845 = vmatpush1.bf16.msra.mxu0 0
    %4846 = vmatprep.subr.bf16.mxu0 0
    %4847 = vmatpush1.bf16.msra.mxu0 0
    %4848 = vmatprep.mubr.bf16.mxu0 0
    %4849 = vmatmul.mubr.bf16.gmra.mrb[0].mxu0 %v4525
    %v4850 = vpop.f32.mrb[0].mxu0
    %v4851 = vadd.f32 %v4754, %v4850
    %v4852 = vpop.f32.mrb[0].mxu0
    %v4853 = vpop.f32.mrb[0].mxu0
    %v4854 = vadd.f32 %v4757, %v4853
    %v4855 = vpop.f32.mrb[0].mxu0
    %4856 = vmatprep.mubr.bf16.mxu0 0
    %4857 = vmatmul.mubr.bf16.gmra.mrb[0].mxu0 %v4526
    %v4858 = vpop.f32.mrb[0].mxu0
    %v4859 = vadd.f32 %v4762, %v4858
    %v4860 = vpop.f32.mrb[0].mxu0
    %v4861 = vpop.f32.mrb[0].mxu0
    %v4862 = vadd.f32 %v4765, %v4861
    %v4863 = vpop.f32.mrb[0].mxu0
    %4864 = vdwg.mxu0
    %v4865 = vcombine.low %v4411, %v4410
    %v4866 = vcombine.low %v4412, %v4420
    %v4868 = vunpack.c.l.s4 1983009808
    %v4869 = vunpack.c.0.s8 %v4868
    %v4870 = vlaneseq
    %v4871 = vshrl.u32 %v4870, 7
    %v4872 = vsub.s32 %v4869, %v4871
    %v4873 = vrot.slane %v4865, %v4872
    %v4875 = vunpack.c.l.s4 1983009808
    %v4876 = vunpack.c.0.s8 %v4875
    %v4877 = vlaneseq
    %v4878 = vshrl.u32 %v4877, 7
    %v4879 = vsub.s32 %v4876, %v4878
    %v4880 = vrot.slane %v4866, %v4879
    %v4881 = vcombine.low %v4873, %v4880
    %v4882 = vcombine.low %v4428, %v4427
    %v4883 = vcombine.low %v4543, %v4444
    %v4885 = vunpack.c.l.s4 1983009808
    %v4886 = vunpack.c.0.s8 %v4885
    %v4887 = vlaneseq
    %v4888 = vshrl.u32 %v4887, 7
    %v4889 = vsub.s32 %v4886, %v4888
    %v4890 = vrot.slane %v4882, %v4889
    %v4892 = vunpack.c.l.s4 1983009808
    %v4893 = vunpack.c.0.s8 %v4892
    %v4894 = vlaneseq
    %v4895 = vshrl.u32 %v4894, 7
    %v4896 = vsub.s32 %v4893, %v4895
    %v4897 = vrot.slane %v4883, %v4896
    %v4898 = vcombine.low %v4890, %v4897
    %v4899 = vcombine.low %v4443, %v4445
    %v4900 = vcombine.low %v4453, %v4461
    %v4902 = vunpack.c.l.s4 1983009808
    %v4903 = vunpack.c.0.s8 %v4902
    %v4904 = vlaneseq
    %v4905 = vshrl.u32 %v4904, 7
    %v4906 = vsub.s32 %v4903, %v4905
    %v4907 = vrot.slane %v4899, %v4906
    %v4909 = vunpack.c.l.s4 1983009808
    %v4910 = vunpack.c.0.s8 %v4909
    %v4911 = vlaneseq
    %v4912 = vshrl.u32 %v4911, 7
    %v4913 = vsub.s32 %v4910, %v4912
    %v4914 = vrot.slane %v4900, %v4913
    %v4915 = vcombine.low %v4907, %v4914
    %v4916 = vcombine.low %v4460, %v4544
    %v4918 = vunpack.c.l.s4 1983009808
    %v4919 = vunpack.c.0.s8 %v4918
    %v4920 = vlaneseq
    %v4921 = vshrl.u32 %v4920, 7
    %v4922 = vsub.s32 %v4919, %v4921
    %v4923 = vrot.slane %v4916, %v4922
    %v4928 = vpack.c.bf16 %v4898, %v4881
    %v4929 = vpack.c.bf16 %v4923, %v4915
    %s4930 = scalar_lea.vmem [#allocation15], 128
    %v4931 = vld [vmem:[%s4930] sm:$0xf]
    %v4932 = vld [vmem:[%s4930 + $0x4] sm:$0xf]
    %v4933 = vld [vmem:[%s4930 + $0x8] sm:$0xf]
    %v4934 = vld [vmem:[%s4930 + $0xc] sm:$0xf]
    %v4935 = vld [vmem:[%s4930 + $0x10] sm:$0xf]
    %v4936 = vld [vmem:[%s4930 + $0x14] sm:$0xf]
    %v4937 = vld [vmem:[%s4930 + $0x18] sm:$0xf]
    %v4938 = vld [vmem:[%s4930 + $0x1c] sm:$0xf]
    %v4939 = vld [vmem:[%s4930 + $0x20] sm:$0xf]
    %v4940 = vld [vmem:[%s4930 + $0x24] sm:$0xf]
    %v4941 = vld [vmem:[%s4930 + $0x28] sm:$0xf]
    %v4942 = vld [vmem:[%s4930 + $0x2c] sm:$0xf]
    %v4943 = vld [vmem:[%s4930 + $0x30] sm:$0xf]
    %v4944 = vld [vmem:[%s4930 + $0x34] sm:$0xf]
    %v4945 = vld [vmem:[%s4930 + $0x38] sm:$0xf]
    %v4946 = vld [vmem:[%s4930 + $0x3c] sm:$0xf]
    %v4963 = vunpack.c.l.b16 %v4931
    %v4964 = vunpack.c.l.b16 %v4932
    %v4965 = vunpack.c.l.b16 %v4933
    %v4966 = vunpack.c.l.b16 %v4934
    %v4967 = vunpack.c.l.b16 %v4935
    %v4968 = vunpack.c.l.b16 %v4936
    %v4969 = vunpack.c.l.b16 %v4937
    %v4970 = vunpack.c.l.b16 %v4938
    %v4971 = vunpack.c.l.b16 %v4939
    %v4972 = vunpack.c.l.b16 %v4940
    %v4973 = vunpack.c.l.b16 %v4941
    %v4974 = vunpack.c.l.b16 %v4942
    %v4975 = vunpack.c.l.b16 %v4943
    %v4976 = vunpack.c.l.b16 %v4944
    %v4977 = vunpack.c.l.b16 %v4945
    %v4978 = vunpack.c.l.b16 %v4946
    %v4979 = vpack.c.b16 %v4964, %v4963
    %v4980 = vpack.c.b16 %v4966, %v4965
    %v4981 = vpack.c.b16 %v4968, %v4967
    %v4982 = vpack.c.b16 %v4970, %v4969
    %v4983 = vpack.c.b16 %v4972, %v4971
    %v4984 = vpack.c.b16 %v4974, %v4973
    %v4985 = vpack.c.b16 %v4976, %v4975
    %v4986 = vpack.c.b16 %v4978, %v4977
    %4995 = vmatprep.subr.bf16.mxu0 0
    %4996 = vmatpush1.bf16.msra.mxu0 %v4979
    %4997 = vmatprep.subr.bf16.mxu0 0
    %4998 = vmatpush1.bf16.msra.mxu0 %v4980
    %4999 = vmatprep.subr.bf16.mxu0 0
    %5000 = vmatpush1.bf16.msra.mxu0 %v4981
    %5001 = vmatprep.subr.bf16.mxu0 0
    %5002 = vmatpush1.bf16.msra.mxu0 %v4982
    %5003 = vmatprep.subr.bf16.mxu0 0
    %5004 = vmatpush1.bf16.msra.mxu0 %v4983
    %5005 = vmatprep.subr.bf16.mxu0 0
    %5006 = vmatpush1.bf16.msra.mxu0 %v4984
    %5007 = vmatprep.subr.bf16.mxu0 0
    %5008 = vmatpush1.bf16.msra.mxu0 %v4985
    %5009 = vmatprep.subr.bf16.mxu0 0
    %5010 = vmatpush1.bf16.msra.mxu0 %v4986
    %5011 = vmatprep.subr.bf16.mxu0 0
    %5012 = vmatpush1.bf16.msra.mxu0 0
    %5013 = vmatprep.subr.bf16.mxu0 0
    %5014 = vmatpush1.bf16.msra.mxu0 0
    %5015 = vmatprep.subr.bf16.mxu0 0
    %5016 = vmatpush1.bf16.msra.mxu0 0
    %5017 = vmatprep.subr.bf16.mxu0 0
    %5018 = vmatpush1.bf16.msra.mxu0 0
    %5019 = vmatprep.subr.bf16.mxu0 0
    %5020 = vmatpush1.bf16.msra.mxu0 0
    %5021 = vmatprep.subr.bf16.mxu0 0
    %5022 = vmatpush1.bf16.msra.mxu0 0
    %5023 = vmatprep.subr.bf16.mxu0 0
    %5024 = vmatpush1.bf16.msra.mxu0 0
    %5025 = vmatprep.subr.bf16.mxu0 0
    %5026 = vmatpush1.bf16.msra.mxu0 0
    %5027 = vmatprep.mubr.bf16.mxu0 0
    %5028 = vmatmul.mubr.bf16.gmra.mrb[0].mxu0 %v4928
    %v5029 = vpop.f32.mrb[0].mxu0
    %v5030 = vadd.f32 0.0, %v5029
    %v5031 = vpop.f32.mrb[0].mxu0
    %v5032 = vpop.f32.mrb[0].mxu0
    %v5033 = vadd.f32 0.0, %v5032
    %v5034 = vpop.f32.mrb[0].mxu0
    %5035 = vmatprep.mubr.bf16.mxu0 0
    %5036 = vmatmul.mubr.bf16.gmra.mrb[0].mxu0 %v4929
    %v5037 = vpop.f32.mrb[0].mxu0
    %v5038 = vadd.f32 0.0, %v5037
    %v5039 = vpop.f32.mrb[0].mxu0
    %v5040 = vpop.f32.mrb[0].mxu0
    %v5041 = vadd.f32 0.0, %v5040
    %v5042 = vpop.f32.mrb[0].mxu0
    %5043 = vdwg.mxu0
    %v5044 = vadd.f32 %v4851, %v5030
    %v5045 = vadd.f32 %v4854, %v5033
    %v5046 = vadd.f32 %v4859, %v5038
    %v5047 = vadd.f32 %v4862, %v5041
    %v5048 = vld [vmem:[%s21] sm:$0x1]
    %v5050 = vlaneseq
    %v5051 = vshrl.u32 %v5050, 7
    %v5052 = vsub.s32 0, %v5051
    %v5053 = vrot.slane %v5048, %v5052
    %v5055 = vadd.f32 %v5044, %v5053
    %v5056 = vadd.f32 %v5045, %v5053
    %v5057 = vadd.f32 %v5046, %v5053
    %v5058 = vadd.f32 %v5047, %v5053
    %v5059 = vadd.f32 %v5055, %v5056
    %v5060 = vadd.f32 %v5059, %v5057
    %v5061 = vsel %vm893, %v5058, 0.0
    %v5062 = vadd.f32 %v5060, %v5061
    %v5063 = vrot.slane %v5062, 4
    %v5064 = vadd.f32 %v5062, %v5063
    %v5065 = vrot.slane %v5064, 2
    %v5066 = vadd.f32 %v5064, %v5065
    %v5067 = vrot.slane %v5066, 1
    %v5068 = vadd.f32 %v5066, %v5067
    %v5069 = vmul.f32 %v5068, %v902
    %v5070 = vsub.f32 %v5055, %v5069
    %v5071 = vsub.f32 %v5056, %v5069
    %v5072 = vsub.f32 %v5057, %v5069
    %v5073 = vsub.f32 %v5058, %v5069
    %v5074 = vmul.f32 %v5070, %v5070
    %v5075 = vmul.f32 %v5071, %v5071
    %v5076 = vmul.f32 %v5072, %v5072
    %v5077 = vmul.f32 %v5073, %v5073
    %v5078 = vadd.f32 %v5074, %v5075
    %v5079 = vadd.f32 %v5078, %v5076
    %v5080 = vsel %vm893, %v5077, 0.0
    %v5081 = vadd.f32 %v5079, %v5080
    %v5082 = vrot.slane %v5081, 4
    %v5083 = vadd.f32 %v5081, %v5082
    %v5084 = vrot.slane %v5083, 2
    %v5085 = vadd.f32 %v5083, %v5084
    %v5086 = vrot.slane %v5085, 1
    %v5087 = vadd.f32 %v5085, %v5086
    %v5088 = vmul.f32 %v5087, %v902
    %v5089 = vadd.f32 %v5088, 1e-05
    %v5090 = vrsqrt.pop %v5089
    %v5091 = vmul.f32 %v5070, %v5090
    %v5092 = vmul.f32 %v5071, %v5090
    %v5093 = vmul.f32 %v5072, %v5090
    %v5094 = vmul.f32 %v5073, %v5090
    %v5095 = vld [vmem:[%s22] sm:$0x1]
    %v5097 = vlaneseq
    %v5098 = vshrl.u32 %v5097, 7
    %v5099 = vsub.s32 0, %v5098
    %v5100 = vrot.slane %v5095, %v5099
    %v5102 = vmul.f32 %v5091, %v5100
    %v5103 = vmul.f32 %v5092, %v5100
    %v5104 = vmul.f32 %v5093, %v5100
    %v5105 = vmul.f32 %v5094, %v5100
    %v5106 = vld [vmem:[%s23] sm:$0x1]
    %v5108 = vlaneseq
    %v5109 = vshrl.u32 %v5108, 7
    %v5110 = vsub.s32 0, %v5109
    %v5111 = vrot.slane %v5106, %v5110
    %v5113 = vadd.f32 %v5102, %v5111
    %v5114 = vadd.f32 %v5103, %v5111
    %v5115 = vadd.f32 %v5104, %v5111
    %v5116 = vadd.f32 %v5105, %v5111
    %vm5117 = vcmp.ge.f32.partialorder %v5113, 0.0
    %vm5118 = vcmp.ge.f32.partialorder %v5114, 0.0
    %vm5119 = vcmp.ge.f32.partialorder %v5115, 0.0
    %vm5120 = vcmp.ge.f32.partialorder %v5116, 0.0
    %v5121 = vmul.f32 %v5113, 0.2
    %v5122 = vmul.f32 %v5114, 0.2
    %v5123 = vmul.f32 %v5115, 0.2
    %v5124 = vmul.f32 %v5116, 0.2
    %v5125 = vsel %vm5117, %v5113, %v5121
    %v5126 = vsel %vm5118, %v5114, %v5122
    %v5127 = vsel %vm5119, %v5115, %v5123
    %v5128 = vsel %vm5120, %v5116, %v5124
    %v5133 = vcombine.high %v5125, %v5125
    %v5135 = vunpack.c.l.s4 1983009808
    %v5136 = vunpack.c.0.s8 %v5135
    %v5137 = vlaneseq
    %v5138 = vshrl.u32 %v5137, 7
    %v5139 = vsub.s32 %v5136, %v5138
    %v5140 = vrot.slane %v5125, %v5139
    %v5142 = vunpack.c.l.s4 1983009808
    %v5143 = vunpack.c.0.s8 %v5142
    %v5144 = vlaneseq
    %v5145 = vshrl.u32 %v5144, 7
    %v5146 = vsub.s32 %v5143, %v5145
    %v5147 = vrot.slane %v5133, %v5146
    %v5148 = vcombine.high %v5140, %v5140
    %v5149 = vcombine.high %v5147, %v5147
    %v5150 = vcombine.high %v5126, %v5126
    %v5152 = vunpack.c.l.s4 1983009808
    %v5153 = vunpack.c.0.s8 %v5152
    %v5154 = vlaneseq
    %v5155 = vshrl.u32 %v5154, 7
    %v5156 = vsub.s32 %v5153, %v5155
    %v5157 = vrot.slane %v5126, %v5156
    %v5159 = vunpack.c.l.s4 1983009808
    %v5160 = vunpack.c.0.s8 %v5159
    %v5161 = vlaneseq
    %v5162 = vshrl.u32 %v5161, 7
    %v5163 = vsub.s32 %v5160, %v5162
    %v5164 = vrot.slane %v5150, %v5163
    %v5165 = vcombine.high %v5157, %v5157
    %v5166 = vcombine.high %v5164, %v5164
    %v5167 = vcombine.high %v5127, %v5127
    %v5169 = vunpack.c.l.s4 1983009808
    %v5170 = vunpack.c.0.s8 %v5169
    %v5171 = vlaneseq
    %v5172 = vshrl.u32 %v5171, 7
    %v5173 = vsub.s32 %v5170, %v5172
    %v5174 = vrot.slane %v5127, %v5173
    %v5176 = vunpack.c.l.s4 1983009808
    %v5177 = vunpack.c.0.s8 %v5176
    %v5178 = vlaneseq
    %v5179 = vshrl.u32 %v5178, 7
    %v5180 = vsub.s32 %v5177, %v5179
    %v5181 = vrot.slane %v5167, %v5180
    %v5182 = vcombine.high %v5174, %v5174
    %v5183 = vcombine.high %v5181, %v5181
    %v5185 = vunpack.c.l.s4 1983009808
    %v5186 = vunpack.c.0.s8 %v5185
    %v5187 = vlaneseq
    %v5188 = vshrl.u32 %v5187, 7
    %v5189 = vsub.s32 %v5186, %v5188
    %v5190 = vrot.slane %v5128, %v5189
    %v5191 = vcombine.high %v5190, %v5190
    %v5192 = vcombine.low %v5140, %v5148
    %v5193 = vcombine.low %v5147, %v5149
    %v5195 = vunpack.c.l.s4 1983009808
    %v5196 = vunpack.c.0.s8 %v5195
    %v5197 = vlaneseq
    %v5198 = vshrl.u32 %v5197, 7
    %v5199 = vsub.s32 %v5196, %v5198
    %v5200 = vrot.slane %v5192, %v5199
    %v5202 = vunpack.c.l.s4 1983009808
    %v5203 = vunpack.c.0.s8 %v5202
    %v5204 = vlaneseq
    %v5205 = vshrl.u32 %v5204, 7
    %v5206 = vsub.s32 %v5203, %v5205
    %v5207 = vrot.slane %v5193, %v5206
    %v5208 = vcombine.low %v5200, %v5207
    %v5209 = vcombine.low %v5157, %v5165
    %v5211 = vunpack.c.l.s4 1983009808
    %v5212 = vunpack.c.0.s8 %v5211
    %v5213 = vlaneseq
    %v5214 = vshrl.u32 %v5213, 7
    %v5215 = vsub.s32 %v5212, %v5214
    %v5216 = vrot.slane %v5209, %v5215
    %v5218 = vunpack.c.l.s4 1983009808
    %v5219 = vunpack.c.0.s8 %v5218
    %v5220 = vlaneseq
    %v5221 = vshrl.u32 %v5220, 7
    %v5222 = vsub.s32 %v5219, %v5221
    %v5223 = vrot.slane %v5164, %v5222
    %v5224 = vcombine.low %v5216, %v5223
    %v5225 = vcombine.low %v5166, %v5174
    %v5226 = vcombine.low %v5182, %v5181
    %v5228 = vunpack.c.l.s4 1983009808
    %v5229 = vunpack.c.0.s8 %v5228
    %v5230 = vlaneseq
    %v5231 = vshrl.u32 %v5230, 7
    %v5232 = vsub.s32 %v5229, %v5231
    %v5233 = vrot.slane %v5225, %v5232
    %v5235 = vunpack.c.l.s4 1983009808
    %v5236 = vunpack.c.0.s8 %v5235
    %v5237 = vlaneseq
    %v5238 = vshrl.u32 %v5237, 7
    %v5239 = vsub.s32 %v5236, %v5238
    %v5240 = vrot.slane %v5226, %v5239
    %v5241 = vcombine.low %v5233, %v5240
    %v5242 = vcombine.low %v5183, %v5190
    %v5244 = vunpack.c.l.s4 1983009808
    %v5245 = vunpack.c.0.s8 %v5244
    %v5246 = vlaneseq
    %v5247 = vshrl.u32 %v5246, 7
    %v5248 = vsub.s32 %v5245, %v5247
    %v5249 = vrot.slane %v5242, %v5248
    %v5251 = vunpack.c.l.s4 1983009808
    %v5252 = vunpack.c.0.s8 %v5251
    %v5253 = vlaneseq
    %v5254 = vshrl.u32 %v5253, 7
    %v5255 = vsub.s32 %v5252, %v5254
    %v5256 = vrot.slane %v5191, %v5255
    %v5257 = vcombine.low %v5249, %v5256
    %5262 = vst [vmem:[#allocation3 + $0x8] sm:$0xff] %v5208
    %5263 = vst [vmem:[#allocation3 + $0x10] sm:$0x3f] %v5224
    %5264 = vst [vmem:[#allocation3 + $0x20] sm:$0xff] %v5241
    %5265 = vst [vmem:[#allocation3 + $0x28] sm:$0x3f] %v5257
    %v5266 = vld [vmem:[#allocation3 + $0x6] sm:$0xff]
    %v5267 = vld [vmem:[#allocation3 + $0xe] sm:$0xff]
    %v5268 = vld [vmem:[#allocation3 + $0x16] sm:$0x3]
    %v5269 = vld [vmem:[#allocation3 + $0x1e] sm:$0xff]
    %v5270 = vld [vmem:[#allocation3 + $0x26] sm:$0xff]
    %v5271 = vld [vmem:[#allocation3 + $0x2e] sm:$0x3]
    %v5272 = vpack.c.bf16 %v5267, %v5266
    %v5273 = vpack.c.bf16 %v5270, %v5269
    %v5274 = vld [vmem:[#allocation16] sm:$0xf]
    %v5275 = vld [vmem:[#allocation16 + $0x4] sm:$0xf]
    %v5276 = vld [vmem:[#allocation16 + $0x8] sm:$0xf]
    %v5277 = vld [vmem:[#allocation16 + $0xc] sm:$0xf]
    %v5278 = vld [vmem:[#allocation16 + $0x10] sm:$0xf]
    %v5279 = vld [vmem:[#allocation16 + $0x14] sm:$0xf]
    %v5280 = vld [vmem:[#allocation16 + $0x18] sm:$0xf]
    %v5281 = vld [vmem:[#allocation16 + $0x1c] sm:$0xf]
    %v5282 = vld [vmem:[#allocation16 + $0x20] sm:$0xf]
    %v5283 = vld [vmem:[#allocation16 + $0x24] sm:$0xf]
    %v5284 = vld [vmem:[#allocation16 + $0x28] sm:$0xf]
    %v5285 = vld [vmem:[#allocation16 + $0x2c] sm:$0xf]
    %v5286 = vld [vmem:[#allocation16 + $0x30] sm:$0xf]
    %v5287 = vld [vmem:[#allocation16 + $0x34] sm:$0xf]
    %v5288 = vld [vmem:[#allocation16 + $0x38] sm:$0xf]
    %v5289 = vld [vmem:[#allocation16 + $0x3c] sm:$0xf]
    %vm5296 = vcmask 1046528
    %v5297 = vrot.slane %v5266, 1
    %v5298 = vrot.slane %v5267, 1
    %v5299 = vsel %vm5296, %v5297, %v5298
    %v5300 = vrot.slane %v5268, 1
    %v5301 = vsel %vm5296, %v5298, %v5300
    %v5302 = vrot.slane %v5269, 1
    %v5303 = vrot.slane %v5270, 1
    %v5304 = vsel %vm5296, %v5302, %v5303
    %v5305 = vrot.slane %v5271, 1
    %v5306 = vsel %vm5296, %v5303, %v5305
    %v5311 = vpack.c.bf16 %v5301, %v5299
    %v5312 = vpack.c.bf16 %v5306, %v5304
    %s5313 = scalar_lea.vmem [#allocation16], 64
    %v5314 = vld [vmem:[%s5313] sm:$0xf]
    %v5315 = vld [vmem:[%s5313 + $0x4] sm:$0xf]
    %v5316 = vld [vmem:[%s5313 + $0x8] sm:$0xf]
    %v5317 = vld [vmem:[%s5313 + $0xc] sm:$0xf]
    %v5318 = vld [vmem:[%s5313 + $0x10] sm:$0xf]
    %v5319 = vld [vmem:[%s5313 + $0x14] sm:$0xf]
    %v5320 = vld [vmem:[%s5313 + $0x18] sm:$0xf]
    %v5321 = vld [vmem:[%s5313 + $0x1c] sm:$0xf]
    %v5322 = vld [vmem:[%s5313 + $0x20] sm:$0xf]
    %v5323 = vld [vmem:[%s5313 + $0x24] sm:$0xf]
    %v5324 = vld [vmem:[%s5313 + $0x28] sm:$0xf]
    %v5325 = vld [vmem:[%s5313 + $0x2c] sm:$0xf]
    %v5326 = vld [vmem:[%s5313 + $0x30] sm:$0xf]
    %v5327 = vld [vmem:[%s5313 + $0x34] sm:$0xf]
    %v5328 = vld [vmem:[%s5313 + $0x38] sm:$0xf]
    %v5329 = vld [vmem:[%s5313 + $0x3c] sm:$0xf]
    %v5346 = vunpack.c.l.b16 %v5314
    %v5347 = vunpack.c.l.b16 %v5315
    %v5348 = vunpack.c.l.b16 %v5316
    %v5349 = vunpack.c.l.b16 %v5317
    %v5350 = vunpack.c.l.b16 %v5318
    %v5351 = vunpack.c.l.b16 %v5319
    %v5352 = vunpack.c.l.b16 %v5320
    %v5353 = vunpack.c.l.b16 %v5321
    %v5354 = vunpack.c.l.b16 %v5322
    %v5355 = vunpack.c.l.b16 %v5323
    %v5356 = vunpack.c.l.b16 %v5324
    %v5357 = vunpack.c.l.b16 %v5325
    %v5358 = vunpack.c.l.b16 %v5326
    %v5359 = vunpack.c.l.b16 %v5327
    %v5360 = vunpack.c.l.b16 %v5328
    %v5361 = vunpack.c.l.b16 %v5329
    %v5362 = vpack.c.b16 %v5347, %v5346
    %v5363 = vpack.c.b16 %v5349, %v5348
    %v5364 = vpack.c.b16 %v5351, %v5350
    %v5365 = vpack.c.b16 %v5353, %v5352
    %v5366 = vpack.c.b16 %v5355, %v5354
    %v5367 = vpack.c.b16 %v5357, %v5356
    %v5368 = vpack.c.b16 %v5359, %v5358
    %v5369 = vpack.c.b16 %v5361, %v5360
    %5378 = vmatprep.subr.bf16.mxu0 0
    %5379 = vmatpush1.bf16.msra.mxu0 %v5362
    %5380 = vmatprep.subr.bf16.mxu0 0
    %5381 = vmatpush1.bf16.msra.mxu0 %v5363
    %5382 = vmatprep.subr.bf16.mxu0 0
    %5383 = vmatpush1.bf16.msra.mxu0 %v5364
    %5384 = vmatprep.subr.bf16.mxu0 0
    %5385 = vmatpush1.bf16.msra.mxu0 %v5365
    %5386 = vmatprep.subr.bf16.mxu0 0
    %5387 = vmatpush1.bf16.msra.mxu0 %v5366
    %5388 = vmatprep.subr.bf16.mxu0 0
    %5389 = vmatpush1.bf16.msra.mxu0 %v5367
    %5390 = vmatprep.subr.bf16.mxu0 0
    %5391 = vmatpush1.bf16.msra.mxu0 %v5368
    %5392 = vmatprep.subr.bf16.mxu0 0
    %5393 = vmatpush1.bf16.msra.mxu0 %v5369
    %5394 = vmatprep.subr.bf16.mxu0 0
    %5395 = vmatpush1.bf16.msra.mxu0 0
    %5396 = vmatprep.subr.bf16.mxu0 0
    %5397 = vmatpush1.bf16.msra.mxu0 0
    %5398 = vmatprep.subr.bf16.mxu0 0
    %5399 = vmatpush1.bf16.msra.mxu0 0
    %5400 = vmatprep.subr.bf16.mxu0 0
    %5401 = vmatpush1.bf16.msra.mxu0 0
    %5402 = vmatprep.subr.bf16.mxu0 0
    %5403 = vmatpush1.bf16.msra.mxu0 0
    %5404 = vmatprep.subr.bf16.mxu0 0
    %5405 = vmatpush1.bf16.msra.mxu0 0
    %5406 = vmatprep.subr.bf16.mxu0 0
    %5407 = vmatpush1.bf16.msra.mxu0 0
    %5408 = vmatprep.subr.bf16.mxu0 0
    %5409 = vmatpush1.bf16.msra.mxu0 0
    %5410 = vmatprep.mubr.bf16.mxu0 0
    %5411 = vmatmul.mubr.bf16.gmra.mrb[0].mxu0 %v5311
    %v5412 = vpop.f32.mrb[0].mxu0
    %v5413 = vadd.f32 0.0, %v5412
    %v5414 = vpop.f32.mrb[0].mxu0
    %v5415 = vpop.f32.mrb[0].mxu0
    %v5416 = vadd.f32 0.0, %v5415
    %v5417 = vpop.f32.mrb[0].mxu0
    %5418 = vmatprep.mubr.bf16.mxu0 0
    %5419 = vmatmul.mubr.bf16.gmra.mrb[0].mxu0 %v5312
    %v5420 = vpop.f32.mrb[0].mxu0
    %v5421 = vadd.f32 0.0, %v5420
    %v5422 = vpop.f32.mrb[0].mxu0
    %v5423 = vpop.f32.mrb[0].mxu0
    %v5424 = vadd.f32 0.0, %v5423
    %v5425 = vpop.f32.mrb[0].mxu0
    %5426 = vdwg.mxu0
    %v5443 = vunpack.c.l.b16 %v5274
    %v5444 = vunpack.c.l.b16 %v5275
    %v5445 = vunpack.c.l.b16 %v5276
    %v5446 = vunpack.c.l.b16 %v5277
    %v5447 = vunpack.c.l.b16 %v5278
    %v5448 = vunpack.c.l.b16 %v5279
    %v5449 = vunpack.c.l.b16 %v5280
    %v5450 = vunpack.c.l.b16 %v5281
    %v5451 = vunpack.c.l.b16 %v5282
    %v5452 = vunpack.c.l.b16 %v5283
    %v5453 = vunpack.c.l.b16 %v5284
    %v5454 = vunpack.c.l.b16 %v5285
    %v5455 = vunpack.c.l.b16 %v5286
    %v5456 = vunpack.c.l.b16 %v5287
    %v5457 = vunpack.c.l.b16 %v5288
    %v5458 = vunpack.c.l.b16 %v5289
    %v5459 = vpack.c.b16 %v5444, %v5443
    %v5460 = vpack.c.b16 %v5446, %v5445
    %v5461 = vpack.c.b16 %v5448, %v5447
    %v5462 = vpack.c.b16 %v5450, %v5449
    %v5463 = vpack.c.b16 %v5452, %v5451
    %v5464 = vpack.c.b16 %v5454, %v5453
    %v5465 = vpack.c.b16 %v5456, %v5455
    %v5466 = vpack.c.b16 %v5458, %v5457
    %5475 = vmatprep.subr.bf16.mxu0 0
    %5476 = vmatpush1.bf16.msra.mxu0 %v5459
    %5477 = vmatprep.subr.bf16.mxu0 0
    %5478 = vmatpush1.bf16.msra.mxu0 %v5460
    %5479 = vmatprep.subr.bf16.mxu0 0
    %5480 = vmatpush1.bf16.msra.mxu0 %v5461
    %5481 = vmatprep.subr.bf16.mxu0 0
    %5482 = vmatpush1.bf16.msra.mxu0 %v5462
    %5483 = vmatprep.subr.bf16.mxu0 0
    %5484 = vmatpush1.bf16.msra.mxu0 %v5463
    %5485 = vmatprep.subr.bf16.mxu0 0
    %5486 = vmatpush1.bf16.msra.mxu0 %v5464
    %5487 = vmatprep.subr.bf16.mxu0 0
    %5488 = vmatpush1.bf16.msra.mxu0 %v5465
    %5489 = vmatprep.subr.bf16.mxu0 0
    %5490 = vmatpush1.bf16.msra.mxu0 %v5466
    %5491 = vmatprep.subr.bf16.mxu0 0
    %5492 = vmatpush1.bf16.msra.mxu0 0
    %5493 = vmatprep.subr.bf16.mxu0 0
    %5494 = vmatpush1.bf16.msra.mxu0 0
    %5495 = vmatprep.subr.bf16.mxu0 0
    %5496 = vmatpush1.bf16.msra.mxu0 0
    %5497 = vmatprep.subr.bf16.mxu0 0
    %5498 = vmatpush1.bf16.msra.mxu0 0
    %5499 = vmatprep.subr.bf16.mxu0 0
    %5500 = vmatpush1.bf16.msra.mxu0 0
    %5501 = vmatprep.subr.bf16.mxu0 0
    %5502 = vmatpush1.bf16.msra.mxu0 0
    %5503 = vmatprep.subr.bf16.mxu0 0
    %5504 = vmatpush1.bf16.msra.mxu0 0
    %5505 = vmatprep.subr.bf16.mxu0 0
    %5506 = vmatpush1.bf16.msra.mxu0 0
    %5507 = vmatprep.mubr.bf16.mxu0 0
    %5508 = vmatmul.mubr.bf16.gmra.mrb[0].mxu0 %v5272
    %v5509 = vpop.f32.mrb[0].mxu0
    %v5510 = vadd.f32 %v5413, %v5509
    %v5511 = vpop.f32.mrb[0].mxu0
    %v5512 = vpop.f32.mrb[0].mxu0
    %v5513 = vadd.f32 %v5416, %v5512
    %v5514 = vpop.f32.mrb[0].mxu0
    %5515 = vmatprep.mubr.bf16.mxu0 0
    %5516 = vmatmul.mubr.bf16.gmra.mrb[0].mxu0 %v5273
    %v5517 = vpop.f32.mrb[0].mxu0
    %v5518 = vadd.f32 %v5421, %v5517
    %v5519 = vpop.f32.mrb[0].mxu0
    %v5520 = vpop.f32.mrb[0].mxu0
    %v5521 = vadd.f32 %v5424, %v5520
    %v5522 = vpop.f32.mrb[0].mxu0
    %5523 = vdwg.mxu0
    %vm5524 = vcmask 1045504
    %v5525 = vrot.slane %v5266, 2
    %v5526 = vrot.slane %v5267, 2
    %v5527 = vsel %vm5524, %v5525, %v5526
    %v5528 = vrot.slane %v5268, 2
    %v5529 = vsel %vm5524, %v5526, %v5528
    %v5530 = vrot.slane %v5269, 2
    %v5531 = vrot.slane %v5270, 2
    %v5532 = vsel %vm5524, %v5530, %v5531
    %v5533 = vrot.slane %v5271, 2
    %v5534 = vsel %vm5524, %v5531, %v5533
    %v5539 = vpack.c.bf16 %v5529, %v5527
    %v5540 = vpack.c.bf16 %v5534, %v5532
    %s5541 = scalar_lea.vmem [#allocation16], 128
    %v5542 = vld [vmem:[%s5541] sm:$0xf]
    %v5543 = vld [vmem:[%s5541 + $0x4] sm:$0xf]
    %v5544 = vld [vmem:[%s5541 + $0x8] sm:$0xf]
    %v5545 = vld [vmem:[%s5541 + $0xc] sm:$0xf]
    %v5546 = vld [vmem:[%s5541 + $0x10] sm:$0xf]
    %v5547 = vld [vmem:[%s5541 + $0x14] sm:$0xf]
    %v5548 = vld [vmem:[%s5541 + $0x18] sm:$0xf]
    %v5549 = vld [vmem:[%s5541 + $0x1c] sm:$0xf]
    %v5550 = vld [vmem:[%s5541 + $0x20] sm:$0xf]
    %v5551 = vld [vmem:[%s5541 + $0x24] sm:$0xf]
    %v5552 = vld [vmem:[%s5541 + $0x28] sm:$0xf]
    %v5553 = vld [vmem:[%s5541 + $0x2c] sm:$0xf]
    %v5554 = vld [vmem:[%s5541 + $0x30] sm:$0xf]
    %v5555 = vld [vmem:[%s5541 + $0x34] sm:$0xf]
    %v5556 = vld [vmem:[%s5541 + $0x38] sm:$0xf]
    %v5557 = vld [vmem:[%s5541 + $0x3c] sm:$0xf]
    %v5574 = vunpack.c.l.b16 %v5542
    %v5575 = vunpack.c.l.b16 %v5543
    %v5576 = vunpack.c.l.b16 %v5544
    %v5577 = vunpack.c.l.b16 %v5545
    %v5578 = vunpack.c.l.b16 %v5546
    %v5579 = vunpack.c.l.b16 %v5547
    %v5580 = vunpack.c.l.b16 %v5548
    %v5581 = vunpack.c.l.b16 %v5549
    %v5582 = vunpack.c.l.b16 %v5550
    %v5583 = vunpack.c.l.b16 %v5551
    %v5584 = vunpack.c.l.b16 %v5552
    %v5585 = vunpack.c.l.b16 %v5553
    %v5586 = vunpack.c.l.b16 %v5554
    %v5587 = vunpack.c.l.b16 %v5555
    %v5588 = vunpack.c.l.b16 %v5556
    %v5589 = vunpack.c.l.b16 %v5557
    %v5590 = vpack.c.b16 %v5575, %v5574
    %v5591 = vpack.c.b16 %v5577, %v5576
    %v5592 = vpack.c.b16 %v5579, %v5578
    %v5593 = vpack.c.b16 %v5581, %v5580
    %v5594 = vpack.c.b16 %v5583, %v5582
    %v5595 = vpack.c.b16 %v5585, %v5584
    %v5596 = vpack.c.b16 %v5587, %v5586
    %v5597 = vpack.c.b16 %v5589, %v5588
    %5606 = vmatprep.subr.bf16.mxu0 0
    %5607 = vmatpush1.bf16.msra.mxu0 %v5590
    %5608 = vmatprep.subr.bf16.mxu0 0
    %5609 = vmatpush1.bf16.msra.mxu0 %v5591
    %5610 = vmatprep.subr.bf16.mxu0 0
    %5611 = vmatpush1.bf16.msra.mxu0 %v5592
    %5612 = vmatprep.subr.bf16.mxu0 0
    %5613 = vmatpush1.bf16.msra.mxu0 %v5593
    %5614 = vmatprep.subr.bf16.mxu0 0
    %5615 = vmatpush1.bf16.msra.mxu0 %v5594
    %5616 = vmatprep.subr.bf16.mxu0 0
    %5617 = vmatpush1.bf16.msra.mxu0 %v5595
    %5618 = vmatprep.subr.bf16.mxu0 0
    %5619 = vmatpush1.bf16.msra.mxu0 %v5596
    %5620 = vmatprep.subr.bf16.mxu0 0
    %5621 = vmatpush1.bf16.msra.mxu0 %v5597
    %5622 = vmatprep.subr.bf16.mxu0 0
    %5623 = vmatpush1.bf16.msra.mxu0 0
    %5624 = vmatprep.subr.bf16.mxu0 0
    %5625 = vmatpush1.bf16.msra.mxu0 0
    %5626 = vmatprep.subr.bf16.mxu0 0
    %5627 = vmatpush1.bf16.msra.mxu0 0
    %5628 = vmatprep.subr.bf16.mxu0 0
    %5629 = vmatpush1.bf16.msra.mxu0 0
    %5630 = vmatprep.subr.bf16.mxu0 0
    %5631 = vmatpush1.bf16.msra.mxu0 0
    %5632 = vmatprep.subr.bf16.mxu0 0
    %5633 = vmatpush1.bf16.msra.mxu0 0
    %5634 = vmatprep.subr.bf16.mxu0 0
    %5635 = vmatpush1.bf16.msra.mxu0 0
    %5636 = vmatprep.subr.bf16.mxu0 0
    %5637 = vmatpush1.bf16.msra.mxu0 0
    %5638 = vmatprep.mubr.bf16.mxu0 0
    %5639 = vmatmul.mubr.bf16.gmra.mrb[0].mxu0 %v5539
    %v5640 = vpop.f32.mrb[0].mxu0
    %v5641 = vadd.f32 0.0, %v5640
    %v5642 = vpop.f32.mrb[0].mxu0
    %v5643 = vpop.f32.mrb[0].mxu0
    %v5644 = vadd.f32 0.0, %v5643
    %v5645 = vpop.f32.mrb[0].mxu0
    %5646 = vmatprep.mubr.bf16.mxu0 0
    %5647 = vmatmul.mubr.bf16.gmra.mrb[0].mxu0 %v5540
    %v5648 = vpop.f32.mrb[0].mxu0
    %v5649 = vadd.f32 0.0, %v5648
    %v5650 = vpop.f32.mrb[0].mxu0
    %v5651 = vpop.f32.mrb[0].mxu0
    %v5652 = vadd.f32 0.0, %v5651
    %v5653 = vpop.f32.mrb[0].mxu0
    %5654 = vdwg.mxu0
    %v5655 = vadd.f32 %v5510, %v5641
    %v5656 = vadd.f32 %v5513, %v5644
    %v5657 = vadd.f32 %v5518, %v5649
    %v5658 = vadd.f32 %v5521, %v5652
    %v5659 = vld [vmem:[%s25] sm:$0x1]
    %v5661 = vlaneseq
    %v5662 = vshrl.u32 %v5661, 7
    %v5663 = vsub.s32 0, %v5662
    %v5664 = vrot.slane %v5659, %v5663
    %v5666 = vadd.f32 %v5655, %v5664
    %v5667 = vadd.f32 %v5656, %v5664
    %v5668 = vadd.f32 %v5657, %v5664
    %v5669 = vadd.f32 %v5658, %v5664
    %v5670 = vsub.f32 %v5666, %v213
    %v5671 = vsub.f32 %v5667, %v214
    %v5672 = vsub.f32 %v5668, %v215
    %v5673 = vsub.f32 %v5669, %v216
    %v5674 = vmul.f32 %v5670, %v5670
    %v5675 = vmul.f32 %v5671, %v5671
    %v5676 = vmul.f32 %v5672, %v5672
    %v5677 = vmul.f32 %v5673, %v5673
    %v5678 = vadd.f32 %v5674, %v5675
    %v5679 = vadd.f32 %v5678, %v5676
    %v5680 = vadd.f32 %v5679, %v5677
    %5681 = vadd.xlane.f32.xlu0 %v5680
    %v5682 = vpop.xlane.xlu0 %5681
    %v5683 = vrot.slane %v5682, 4
    %v5684 = vadd.f32 %v5682, %v5683
    %v5685 = vrot.slane %v5684, 2
    %v5686 = vadd.f32 %v5684, %v5685
    %v5687 = vrot.slane %v5686, 1
    %v5688 = vadd.f32 %v5686, %v5687
    %s5689 = vtos %v5688
    %s5690 = smul.f32 %s5689, 0.010416667
    %v5691 = vstv %s5690
    %vm5692 = vcmask 0
    %5693 = vst.msk [vmem:[#allocation18] sm:$0x1] %vm5692, %v5691
    // Predicated region
    $region138: #{mae_forward.1} parent=1 // pred_check
      _
    $region139: #{mae_forward.1} parent=1 // pred_check_branch
      %5695 = sbr.rel (0) target = $region141
    $region140: #{mae_forward.1} parent=1 // pred_region
      %s5697 = ssub.s32 16, 16
      %5698 = vsyncadd [#allocation6], %s5697
      %s5700 = sshll.u32 [#allocation18], 4
      %s5701 = int_to_ptr.vmem [resolvable:$true] %s5700
      %5703 = dma.vmem_to_hbm [thread:$0]  %s5701, 16, %s26, [#allocation6]
    $region141: #{mae_forward.1} parent=1 // pred_fallthru
      _
    // Predicated region
    $region142: #{mae_forward.1} parent=1 // pred_check
      _
    $region143: #{mae_forward.1} parent=1 // pred_check_branch
      %5705 = sbr.rel (0) target = $region145
    $region144: #{mae_forward.1} parent=1 // pred_region
      %5706 = dma.done [#allocation6], 16
    $region145: #{mae_forward.1} parent=1 // pred_fallthru
      _
    %5707 = vsyncpa [#allocation5], 1
    %5708 = vsyncpa [#allocation8], 1
    %5709 = vsyncpa [#allocation11], 1
    %5710 = vsyncpa [#allocation14], 1
    %5711 = vsyncpa [#allocation17], 1
    %5712 = vsyncpa [#allocation6], 1

</llo_original>
